<compile_context>
chip_gen: v7x
topology: tpu7x:2x2x1
jax: 0.10.0
libtpu: 0.0.40
codegen_flags: <defaults>
</compile_context>

<pallas_src>
import functools
import math

import jax
import jax.numpy as jnp
import numpy as np
from jax.experimental import pallas as pl
from jax.experimental.pallas import tpu as pltpu

F32 = jnp.float32
BF16 = jnp.bfloat16
_VMEM = pl.BlockSpec(memory_space=pltpu.MemorySpace.VMEM)


# ----------------------------------------------------------------------------
# Small Pallas kernels (Conv2dSubsampling front-end + final LayerNorm)
# ----------------------------------------------------------------------------
def _linear_kernel(x_ref, w_ref, b_ref, o_ref, *, act):
    y = jnp.dot(x_ref[...], w_ref[...], preferred_element_type=jnp.float32)
    y = y + b_ref[...]
    if act == "relu":
        y = jnp.maximum(y, 0.0)
    o_ref[...] = y


def linear(x2d, w, b, act=None):
    m, _ = x2d.shape
    n = w.shape[1]
    return pl.pallas_call(
        functools.partial(_linear_kernel, act=act),
        out_shape=jax.ShapeDtypeStruct((m, n), F32),
        in_specs=[_VMEM, _VMEM, _VMEM],
        out_specs=_VMEM,
    )(x2d, w, b.reshape(1, n))


def _layernorm_kernel(x_ref, g_ref, b_ref, o_ref, *, eps):
    x = x_ref[...]
    mu = jnp.mean(x, axis=-1, keepdims=True)
    var = jnp.mean(jnp.square(x - mu), axis=-1, keepdims=True)
    o_ref[...] = (x - mu) * jax.lax.rsqrt(var + eps) * g_ref[...] + b_ref[...]


def layer_norm(x, gamma, beta, eps=1e-5):
    B, T, D = x.shape
    out = pl.pallas_call(
        functools.partial(_layernorm_kernel, eps=eps),
        out_shape=jax.ShapeDtypeStruct((B * T, D), F32),
        in_specs=[_VMEM] * 3,
        out_specs=_VMEM,
    )(x.reshape(B * T, D), gamma.reshape(1, D), beta.reshape(1, D))
    return out.reshape(B, T, D)


# ----------------------------------------------------------------------------
# Fused Conformer EncoderLayer kernel (one grid point = one batch element)
# ----------------------------------------------------------------------------
def _encoder_layer_kernel(
    x_ref, mask_ref, gate_ref, pos_ref,
    ln_g_ref, ln_b_ref,
    ff_w1_ref, ff_b1_ref, ff_w2_ref, ff_b2_ref,
    qkv_w_ref, qkv_b_ref, wpos_ref, bias_u_ref, bias_v_ref, wo_ref, bo_ref,
    cv_wv_ref, cv_bv_ref, cv_wg_ref, cv_bg_ref,
    dw_w_ref, dw_b_ref, bn_s_ref, bn_b_ref, pw2_w_ref, pw2_b_ref,
    o_ref, *, T, D, H, K, eps):
    dk = D // H
    scale = 1.0 / math.sqrt(dk)

    x = x_ref[0]                               # (T, D) f32
    ln_g = ln_g_ref[...]                       # (5, D)  [ff_pre, mha, conv, ff, final]
    ln_b = ln_b_ref[...]

    def layer_norm_in(v, idx):
        mu = jnp.mean(v, axis=-1, keepdims=True)
        var = jnp.mean(jnp.square(v - mu), axis=-1, keepdims=True)
        return (v - mu) * jax.lax.rsqrt(var + eps) * ln_g[idx:idx + 1, :] \
            + ln_b[idx:idx + 1, :]

    def ffn(v):                                # PositionwiseFeedForward (SiLU)
        h = jnp.dot(v.astype(BF16), ff_w1_ref[...],
                    preferred_element_type=jnp.float32) + ff_b1_ref[...]
        h = h * jax.nn.sigmoid(h)              # SiLU
        return jnp.dot(h.astype(BF16), ff_w2_ref[...],
                       preferred_element_type=jnp.float32) + ff_b2_ref[...]

    # ---- 1) first feed-forward (half-step residual) -------------------------
    x = x + 0.5 * ffn(layer_norm_in(x, 0))

    # ---- 2) relative-position multi-head self-attention ----------------------
    h = layer_norm_in(x, 1)
    qkv = jnp.dot(h.astype(BF16), qkv_w_ref[...],
                  preferred_element_type=jnp.float32) + qkv_b_ref[...]   # (T, 3D)
    q = qkv[:, :D]
    k = qkv[:, D:2 * D]
    v = qkv[:, 2 * D:]
    # positional projection (linear_pos has no bias); (2T-1, D)
    pe = jnp.dot(pos_ref[0].astype(BF16), wpos_ref[...],
                 preferred_element_type=jnp.float32)
    q_u = q + bias_u_ref[...]                  # pos_bias_u flattened to (1, D)
    q_v = q + bias_v_ref[...]

    neg = jnp.float32(np.finfo(np.float32).min)
    key_mask = mask_ref[0]                     # (1, T): 1 = valid, 0 = masked
    is_masked = key_mask == 0.0

    ctx_heads = []
    for hh in range(H):
        sl = slice(hh * dk, (hh + 1) * dk)
        qu_h, qv_h = q_u[:, sl], q_v[:, sl]
        k_h, v_h, pe_h = k[:, sl], v[:, sl], pe[:, sl]
        # matrix_ac = (q + u) @ k^T
        ac = jax.lax.dot_general(qu_h, k_h, (((1,), (1,)), ((), ())),
                                 preferred_element_type=jnp.float32)       # (T, T)
        # matrix_bd = (q + v) @ pe^T, then ESPnet rel_shift:
        #   bd[i, j] = bd_full[i, T-1-i+j]   (static per-row slices, in-VMEM)
        bd_full = jax.lax.dot_general(qv_h, pe_h, (((1,), (1,)), ((), ())),
                                      preferred_element_type=jnp.float32)  # (T, 2T-1)
        bd = jnp.concatenate(
            [bd_full[i:i + 1, T - 1 - i:2 * T - 1 - i] for i in range(T)], axis=0)
        s = (ac + bd) * scale
        s = jnp.where(is_masked, neg, s)
        s = s - jnp.max(s, axis=-1, keepdims=True)
        e = jnp.exp(s)
        p = e * pl.reciprocal(jnp.sum(e, axis=-1, keepdims=True), approx=True)
        p = jnp.where(is_masked, 0.0, p)
        ctx_heads.append(jnp.dot(p, v_h, preferred_element_type=jnp.float32))
    ctx = jnp.concatenate(ctx_heads, axis=-1)                               # (T, D)
    x = x + (jnp.dot(ctx.astype(BF16), wo_ref[...],
                     preferred_element_type=jnp.float32) + bo_ref[...])

    # ---- 3) convolution module ------------------------------------------------
    h = layer_norm_in(x, 2)
    # pointwise_conv1 split into value/gate halves (GLU(dim=channels)), each
    # lane-aligned:  g = val * sigmoid(gate)
    val = jnp.dot(h.astype(BF16), cv_wv_ref[...],
                  preferred_element_type=jnp.float32) + cv_bv_ref[...]
    gate = jnp.dot(h.astype(BF16), cv_wg_ref[...],
                   preferred_element_type=jnp.float32) + cv_bg_ref[...]
    g = val * jax.nn.sigmoid(gate)
    # Depthwise conv (kernel K, 'same' zero padding) expressed as K tiny 0/1
    # selection matmuls built from iota (no unaligned sublane slices).
    row = jax.lax.broadcasted_iota(jnp.int32, (T, T), 0)
    col = jax.lax.broadcasted_iota(jnp.int32, (T, T), 1)
    dw_w = dw_w_ref[...]                                                    # (K, D)
    pad = (K - 1) // 2
    acc = jnp.zeros((T, D), jnp.float32)
    for kk in range(K):
        sel = (col == row + (kk - pad)).astype(jnp.float32)                 # (T, T)
        acc = acc + jnp.dot(sel, g,
                            preferred_element_type=jnp.float32) * dw_w[kk:kk + 1, :]
    acc = acc + dw_b_ref[...]
    # TODO(synk): BatchNorm1d implemented in eval mode (running stats, pre-folded).
    acc = acc * bn_s_ref[...] + bn_b_ref[...]
    acc = acc * jax.nn.sigmoid(acc)                                         # SiLU
    conv_out = jnp.dot(acc.astype(BF16), pw2_w_ref[...],
                       preferred_element_type=jnp.float32) + pw2_b_ref[...]
    # Matches the PyTorch reference verbatim:
    #   x = residual + conv_module(x) * (1 - mask.transpose(1, 2))
    x = x + conv_out * gate_ref[0]

    # ---- 4) second feed-forward (shared weights) + final LayerNorm ------------
    x = x + 0.5 * ffn(layer_norm_in(x, 3))
    o_ref[0] = layer_norm_in(x, 4)


def encoder_layer(x, attn_mask, conv_gate, pos_emb, lp, num_heads, cnn_k):
    B, T, D = x.shape
    Np = pos_emb.shape[1]
    weight_names = (
        "ln_g", "ln_b",
        "ff_w1", "ff_b1", "ff_w2", "ff_b2",
        "qkv_w", "qkv_b", "wpos", "bias_u", "bias_v", "wo", "bo",
        "cv_wv", "cv_bv", "cv_wg", "cv_bg",
        "dw_w", "dw_b", "bn_s", "bn_b", "pw2_w", "pw2_b",
    )
    weights = [lp[n] for n in weight_names]
    in_specs = [
        pl.BlockSpec((1, T, D), lambda b: (b, 0, 0)),     # x
        pl.BlockSpec((1, 1, T), lambda b: (b, 0, 0)),     # attention key mask
        pl.BlockSpec((1, T, 1), lambda b: (b, 0, 0)),     # (1 - mask)^T conv gate
        pl.BlockSpec((1, Np, D), lambda b: (0, 0, 0)),    # shared pos_emb
    ] + [pl.BlockSpec(w.shape, lambda b: (0, 0)) for w in weights]
    return pl.pallas_call(
        functools.partial(_encoder_layer_kernel, T=T, D=D, H=num_heads,
                          K=cnn_k, eps=1e-5),
        grid=(B,),
        out_shape=jax.ShapeDtypeStruct((B, T, D), F32),
        in_specs=in_specs,
        out_specs=pl.BlockSpec((1, T, D), lambda b: (b, 0, 0)),
        compiler_params=pltpu.CompilerParams(dimension_semantics=("parallel",)),
    )(x, attn_mask, conv_gate, pos_emb, *weights)


# ----------------------------------------------------------------------------
# Model glue (reshapes / parameter plumbing in plain JAX)
# ----------------------------------------------------------------------------
def rel_positional_encoding(T, D):
    # Matches ESPnet RelPositionalEncoding.extend_pe / slicing (length 2T-1).
    pos = np.arange(T, dtype=np.float32)[:, None]
    div = np.exp(np.arange(0, D, 2, dtype=np.float32) * -(math.log(10000.0) / D))
    pe_pos = np.zeros((T, D), np.float32)
    pe_neg = np.zeros((T, D), np.float32)
    pe_pos[:, 0::2] = np.sin(pos * div)
    pe_pos[:, 1::2] = np.cos(pos * div)
    pe_neg[:, 0::2] = np.sin(-pos * div)
    pe_neg[:, 1::2] = np.cos(-pos * div)
    pe = np.concatenate([pe_pos[::-1], pe_neg[1:]], axis=0)  # (2T-1, D)
    return jnp.asarray(pe)[None]                             # (1, 2T-1, D)


def im2col(x, k, s):
    # x: (B, C, H, W) NCHW, valid conv, stride s; patch flatten order (C, ki, kj).
    B, C, H, W = x.shape
    Ho = (H - k) // s + 1
    Wo = (W - k) // s + 1
    patches = []
    for i in range(k):
        for j in range(k):
            patches.append(x[:, :, i:i + s * (Ho - 1) + 1:s, j:j + s * (Wo - 1) + 1:s])
    pt = jnp.stack(patches, axis=2)                        # (B, C, k*k, Ho, Wo)
    pt = jnp.transpose(pt, (0, 3, 4, 1, 2)).reshape(B, Ho * Wo, C * k * k)
    return pt, Ho, Wo


def conv2d_subsampling(x, mask, p, odim):
    # TODO(synk): style_tts Conv2dSubsampling assumed to be conv-relu-conv-relu-linear
    # without an internal absolute positional encoding (pos enc applied outside).
    B, L, Fdim = x.shape
    h = x[:, None, :, :]                                   # (B, 1, L, F) NCHW
    pt, H1, W1 = im2col(h, 3, 2)
    y = linear(pt.reshape(B * H1 * W1, -1), p["conv1_w"], p["conv1_b"], act="relu")
    y = jnp.transpose(y.reshape(B, H1, W1, odim), (0, 3, 1, 2))
    pt2, H2, W2 = im2col(y, 3, 2)
    y2 = linear(pt2.reshape(B * H2 * W2, -1), p["conv2_w"], p["conv2_b"], act="relu")
    y2 = jnp.transpose(y2.reshape(B, H2, W2, odim), (0, 3, 1, 2))   # (B, C, T, F')
    flat = jnp.transpose(y2, (0, 2, 1, 3)).reshape(B, H2, odim * W2)  # (c,f) flatten
    out = linear(flat.reshape(B * H2, odim * W2), p["out_w"], p["out_b"])
    out = out.reshape(B, H2, odim)
    new_mask = mask[:, :, :-2:2][:, :, :-2:2]
    return out, new_mask


def conformer_forward(x, mask, packed, num_heads, cnn_k):
    d = packed["after_norm_g"].shape[0]
    x, mask = conv2d_subsampling(x, mask, packed["embed"], d)
    _, T, _ = x.shape
    # RelPositionalEncoding: xscale=sqrt(d) is folded into embed.out_w/out_b
    # (see pack_params); dropout = identity.
    pos_emb = rel_positional_encoding(T, d)
    attn_mask = mask                                     # (B, 1, T); 1 = valid
    conv_gate = 1.0 - jnp.transpose(mask, (0, 2, 1))     # (B, T, 1)
    for lp in packed["layers"]:
        x = encoder_layer(x, attn_mask, conv_gate, pos_emb, lp, num_heads, cnn_k)
    x = layer_norm(x, packed["after_norm_g"], packed["after_norm_b"])
    # last_layer: dim_out == 0 -> Identity
    return x, mask


# ----------------------------------------------------------------------------
# Parameter init (synthetic, PyTorch-layout) + packing for the fused kernel
# ----------------------------------------------------------------------------
def init_params(key, dim_in, d, h, dff, blocks, cnn_k):
    keys = iter(jax.random.split(key, 32 * blocks + 32))

    def nrm(shape):
        return jax.random.normal(next(keys), shape, F32) * (1.0 / math.sqrt(shape[0]))

    zeros = lambda s: jnp.zeros(s, F32)
    ones = lambda s: jnp.ones(s, F32)

    f1 = (dim_in - 3) // 2 + 1
    f2 = (f1 - 3) // 2 + 1
    embed = dict(conv1_w=nrm((9, d)), conv1_b=zeros((d,)),
                 conv2_w=nrm((d * 9, d)), conv2_b=zeros((d,)),
                 out_w=nrm((d * f2, d)), out_b=zeros((d,)))
    dk = d // h
    layers = []
    for _ in range(blocks):
        layers.append(dict(
            norm_ff_pre_g=ones((d,)), norm_ff_pre_b=zeros((d,)),
            norm_mha_g=ones((d,)), norm_mha_b=zeros((d,)),
            norm_conv_g=ones((d,)), norm_conv_b=zeros((d,)),
            norm_ff_g=ones((d,)), norm_ff_b=zeros((d,)),
            norm_final_g=ones((d,)), norm_final_b=zeros((d,)),
            ff=dict(w1=nrm((d, dff)), b1=zeros((dff,)),
                    w2=nrm((dff, d)), b2=zeros((d,))),
            mha=dict(wq=nrm((d, d)), bq=zeros((d,)),
                     wk=nrm((d, d)), bk=zeros((d,)),
                     wv=nrm((d, d)), bv=zeros((d,)),
                     wo=nrm((d, d)), bo=zeros((d,)),
                     wpos=nrm((d, d)),
                     pos_bias_u=nrm((h, dk)) * 0.1,
                     pos_bias_v=nrm((h, dk)) * 0.1),
            # pw1 output columns ordered [value | gate] to match GLU(dim=channels).
            conv=dict(pw1_w=nrm((d, 2 * d)), pw1_b=zeros((2 * d,)),
                      dw_w=nrm((cnn_k, d)), dw_b=zeros((d,)),
                      bn_gamma=ones((d,)), bn_beta=zeros((d,)),
                      bn_mean=zeros((d,)), bn_var=ones((d,)),
                      pw2_w=nrm((d, d)), pw2_b=zeros((d,))),
        ))
    return dict(embed=embed, layers=layers,
                after_norm_g=ones((d,)), after_norm_b=zeros((d,)))


def pack_layer_params(p, d):
    """Pack one EncoderLayer's params into fused-kernel operands:
    bf16 matmul weights, f32 (1, D) biases/stats, stacked LayerNorm params."""
    ff, mha, cv = p["ff"], p["mha"], p["conv"]
    bn_scale = cv["bn_gamma"] / jnp.sqrt(cv["bn_var"] + 1e-5)
    bn_bias = cv["bn_beta"] - cv["bn_mean"] * bn_scale
    return dict(
        ln_g=jnp.stack([p["norm_ff_pre_g"], p["norm_mha_g"], p["norm_conv_g"],
                        p["norm_ff_g"], p["norm_final_g"]]),
        ln_b=jnp.stack([p["norm_ff_pre_b"], p["norm_mha_b"], p["norm_conv_b"],
                        p["norm_ff_b"], p["norm_final_b"]]),
        ff_w1=ff["w1"].astype(BF16), ff_b1=ff["b1"].reshape(1, -1),
        ff_w2=ff["w2"].astype(BF16), ff_b2=ff["b2"].reshape(1, -1),
        qkv_w=jnp.concatenate([mha["wq"], mha["wk"], mha["wv"]], axis=1).astype(BF16),
        qkv_b=jnp.concatenate([mha["bq"], mha["bk"], mha["bv"]]).reshape(1, 3 * d),
        wpos=mha["wpos"].astype(BF16),
        bias_u=mha["pos_bias_u"].reshape(1, d),
        bias_v=mha["pos_bias_v"].reshape(1, d),
        wo=mha["wo"].astype(BF16), bo=mha["bo"].reshape(1, d),
        cv_wv=cv["pw1_w"][:, :d].astype(BF16), cv_bv=cv["pw1_b"][:d].reshape(1, d),
        cv_wg=cv["pw1_w"][:, d:].astype(BF16), cv_bg=cv["pw1_b"][d:].reshape(1, d),
        dw_w=cv["dw_w"], dw_b=cv["dw_b"].reshape(1, d),
        bn_s=bn_scale.reshape(1, d), bn_b=bn_bias.reshape(1, d),
        pw2_w=cv["pw2_w"].astype(BF16), pw2_b=cv["pw2_b"].reshape(1, d),
    )


def pack_params(params, d):
    embed = dict(params["embed"])
    # Fold RelPositionalEncoding xscale = sqrt(d) into the subsampling output
    # projection (applied immediately after the embed module in the reference).
    xscale = math.sqrt(d)
    embed["out_w"] = embed["out_w"] * xscale
    embed["out_b"] = embed["out_b"] * xscale
    return dict(
        embed=embed,
        layers=[pack_layer_params(lp, d) for lp in params["layers"]],
        after_norm_g=params["after_norm_g"],
        after_norm_b=params["after_norm_b"],
    )


if __name__ == "__main__":
    # Small shapes consistent with the module's forward:
    #   x (B, L, dim_in), mask (B, 1, L); conv subsampling -> T = ((L-1)//2 - 1)//2
    B, L, DIM_IN = 2, 35, 21
    D, NUM_HEADS, DFF, NUM_BLOCKS, CNN_K = 32, 4, 64, 2, 7

    key = jax.random.PRNGKey(0)
    kx, kp = jax.random.split(key)
    x = jax.random.normal(kx, (B, L, DIM_IN), F32)
    mask = jnp.ones((B, 1, L), F32).at[:, :, 20:].set(0.0)   # 1=unmasked, 0=masked

    params = init_params(kp, DIM_IN, D, NUM_HEADS, DFF, NUM_BLOCKS, CNN_K)
    packed = pack_params(params, D)

    fwd = jax.jit(lambda xx, mm: conformer_forward(xx, mm, packed, NUM_HEADS, CNN_K))
    out, out_mask = fwd(x, mask)
    jax.block_until_ready(out)

    T_expected = ((L - 1) // 2 - 1) // 2
    assert out.shape == (B, T_expected, D), out.shape
    assert out_mask.shape == (B, 1, T_expected), out_mask.shape
    assert bool(jnp.all(jnp.isfinite(out)))
    print("KERNEL_OK")
</pallas_src>

<mosaic_0001>
module attributes {stable_mosaic.version = 11 : i64} {
  func.func @_linear_kernel(%arg0: memref<340x9xf32, #tpu.memory_space<vmem>>, %arg1: memref<9x32xf32, #tpu.memory_space<vmem>>, %arg2: memref<1x32xf32, #tpu.memory_space<vmem>>, %arg3: memref<340x32xf32, #tpu.memory_space<vmem>>) attributes {dimension_semantics = [], scalar_prefetch = 0 : i64, scratch_operands = 0 : i64, tpu.core_type = #tpu.core_type<tc>} {
    %c0 = arith.constant 0 : index
    %c0_0 = arith.constant 0 : index
    %0 = vector.load %arg0[%c0, %c0_0] : memref<340x9xf32, #tpu.memory_space<vmem>>, vector<340x9xf32>
    %c0_1 = arith.constant 0 : index
    %c0_2 = arith.constant 0 : index
    %1 = vector.load %arg1[%c0_1, %c0_2] : memref<9x32xf32, #tpu.memory_space<vmem>>, vector<9x32xf32>
    %cst = arith.constant dense<0.000000e+00> : vector<340x32xf32>
    %2 = tpu.matmul %0, %1, %cst {dimension_numbers = #tpu.dot_dimension_numbers<[1], [0], [0], [1], [0, 0, 1, 1], [], []>} : vector<340x9xf32>, vector<9x32xf32>, vector<340x32xf32> -> vector<340x32xf32>
    %c0_3 = arith.constant 0 : index
    %c0_4 = arith.constant 0 : index
    %3 = vector.load %arg2[%c0_3, %c0_4] : memref<1x32xf32, #tpu.memory_space<vmem>>, vector<1x32xf32>
    %4 = vector.broadcast %3 : vector<1x32xf32> to vector<340x32xf32>
    %5 = arith.addf %2, %4 : vector<340x32xf32>
    %cst_5 = arith.constant 0.000000e+00 : f32
    %6 = vector.broadcast %cst_5 : f32 to vector<340x32xf32>
    %7 = arith.maximumf %5, %6 : vector<340x32xf32>
    %c0_6 = arith.constant 0 : index
    %c0_7 = arith.constant 0 : index
    %8 = vector.load %arg3[%c0_6, %c0_7] : memref<340x32xf32, #tpu.memory_space<vmem>>, vector<340x32xf32>
    tpu.vector_store %arg3[%c0_6, %c0_7], %7 {strides = array<i32>} : memref<340x32xf32, #tpu.memory_space<vmem>>, vector<340x32xf32>,
    return
  }
}

module attributes {stable_mosaic.version = 11 : i64} {
  func.func @_linear_kernel(%arg0: memref<64x288xf32, #tpu.memory_space<vmem>>, %arg1: memref<288x32xf32, #tpu.memory_space<vmem>>, %arg2: memref<1x32xf32, #tpu.memory_space<vmem>>, %arg3: memref<64x32xf32, #tpu.memory_space<vmem>>) attributes {dimension_semantics = [], scalar_prefetch = 0 : i64, scratch_operands = 0 : i64, tpu.core_type = #tpu.core_type<tc>} {
    %c0 = arith.constant 0 : index
    %c0_0 = arith.constant 0 : index
    %0 = vector.load %arg0[%c0, %c0_0] : memref<64x288xf32, #tpu.memory_space<vmem>>, vector<64x288xf32>
    %c0_1 = arith.constant 0 : index
    %c0_2 = arith.constant 0 : index
    %1 = vector.load %arg1[%c0_1, %c0_2] : memref<288x32xf32, #tpu.memory_space<vmem>>, vector<288x32xf32>
    %cst = arith.constant dense<0.000000e+00> : vector<64x32xf32>
    %2 = tpu.matmul %0, %1, %cst {dimension_numbers = #tpu.dot_dimension_numbers<[1], [0], [0], [1], [0, 0, 1, 1], [], []>} : vector<64x288xf32>, vector<288x32xf32>, vector<64x32xf32> -> vector<64x32xf32>
    %c0_3 = arith.constant 0 : index
    %c0_4 = arith.constant 0 : index
    %3 = vector.load %arg2[%c0_3, %c0_4] : memref<1x32xf32, #tpu.memory_space<vmem>>, vector<1x32xf32>
    %4 = vector.broadcast %3 : vector<1x32xf32> to vector<64x32xf32>
    %5 = arith.addf %2, %4 : vector<64x32xf32>
    %cst_5 = arith.constant 0.000000e+00 : f32
    %6 = vector.broadcast %cst_5 : f32 to vector<64x32xf32>
    %7 = arith.maximumf %5, %6 : vector<64x32xf32>
    %c0_6 = arith.constant 0 : index
    %c0_7 = arith.constant 0 : index
    %8 = vector.load %arg3[%c0_6, %c0_7] : memref<64x32xf32, #tpu.memory_space<vmem>>, vector<64x32xf32>
    tpu.vector_store %arg3[%c0_6, %c0_7], %7 {strides = array<i32>} : memref<64x32xf32, #tpu.memory_space<vmem>>, vector<64x32xf32>,
    return
  }
}

module attributes {stable_mosaic.version = 11 : i64} {
  func.func @_linear_kernel(%arg0: memref<16x128xf32, #tpu.memory_space<vmem>>, %arg1: memref<128x32xf32, #tpu.memory_space<vmem>>, %arg2: memref<1x32xf32, #tpu.memory_space<vmem>>, %arg3: memref<16x32xf32, #tpu.memory_space<vmem>>) attributes {dimension_semantics = [], scalar_prefetch = 0 : i64, scratch_operands = 0 : i64, tpu.core_type = #tpu.core_type<tc>} {
    %c0 = arith.constant 0 : index
    %c0_0 = arith.constant 0 : index
    %0 = vector.load %arg0[%c0, %c0_0] : memref<16x128xf32, #tpu.memory_space<vmem>>, vector<16x128xf32>
    %c0_1 = arith.constant 0 : index
    %c0_2 = arith.constant 0 : index
    %1 = vector.load %arg1[%c0_1, %c0_2] : memref<128x32xf32, #tpu.memory_space<vmem>>, vector<128x32xf32>
    %cst = arith.constant dense<0.000000e+00> : vector<16x32xf32>
    %2 = tpu.matmul %0, %1, %cst {dimension_numbers = #tpu.dot_dimension_numbers<[1], [0], [0], [1], [0, 0, 1, 1], [], []>} : vector<16x128xf32>, vector<128x32xf32>, vector<16x32xf32> -> vector<16x32xf32>
    %c0_3 = arith.constant 0 : index
    %c0_4 = arith.constant 0 : index
    %3 = vector.load %arg2[%c0_3, %c0_4] : memref<1x32xf32, #tpu.memory_space<vmem>>, vector<1x32xf32>
    %4 = vector.broadcast %3 : vector<1x32xf32> to vector<16x32xf32>
    %5 = arith.addf %2, %4 : vector<16x32xf32>
    %c0_5 = arith.constant 0 : index
    %c0_6 = arith.constant 0 : index
    %6 = vector.load %arg3[%c0_5, %c0_6] : memref<16x32xf32, #tpu.memory_space<vmem>>, vector<16x32xf32>
    tpu.vector_store %arg3[%c0_5, %c0_6], %5 {strides = array<i32>} : memref<16x32xf32, #tpu.memory_space<vmem>>, vector<16x32xf32>,
    return
  }
}

module attributes {stable_mosaic.version = 11 : i64} {
  func.func @_layernorm_kernel(%arg0: memref<16x32xf32, #tpu.memory_space<vmem>>, %arg1: memref<1x32xf32, #tpu.memory_space<vmem>>, %arg2: memref<1x32xf32, #tpu.memory_space<vmem>>, %arg3: memref<16x32xf32, #tpu.memory_space<vmem>>) attributes {dimension_semantics = [], scalar_prefetch = 0 : i64, scratch_operands = 0 : i64, tpu.core_type = #tpu.core_type<tc>} {
    %c0 = arith.constant 0 : index
    %c0_0 = arith.constant 0 : index
    %0 = vector.load %arg0[%c0, %c0_0] : memref<16x32xf32, #tpu.memory_space<vmem>>, vector<16x32xf32>
    %cst = arith.constant dense<0.000000e+00> : vector<16xf32>
    %1 = vector.multi_reduction <add>, %0, %cst [1] : vector<16x32xf32> to vector<16xf32>
    %2 = vector.shape_cast %1 : vector<16xf32> to vector<16x1xf32>
    %cst_1 = arith.constant 3.200000e+01 : f32
    %3 = vector.broadcast %cst_1 : f32 to vector<16x1xf32>
    %4 = arith.divf %2, %3 : vector<16x1xf32>
    %5 = vector.broadcast %4 : vector<16x1xf32> to vector<16x32xf32>
    %6 = arith.subf %0, %5 : vector<16x32xf32>
    %7 = arith.mulf %6, %6 : vector<16x32xf32>
    %cst_2 = arith.constant dense<0.000000e+00> : vector<16xf32>
    %8 = vector.multi_reduction <add>, %7, %cst_2 [1] : vector<16x32xf32> to vector<16xf32>
    %9 = vector.shape_cast %8 : vector<16xf32> to vector<16x1xf32>
    %cst_3 = arith.constant 3.200000e+01 : f32
    %10 = vector.broadcast %cst_3 : f32 to vector<16x1xf32>
    %11 = arith.divf %9, %10 : vector<16x1xf32>
    %12 = vector.broadcast %4 : vector<16x1xf32> to vector<16x32xf32>
    %13 = arith.subf %0, %12 : vector<16x32xf32>
    %cst_4 = arith.constant 9.99999974E-6 : f32
    %14 = vector.broadcast %cst_4 : f32 to vector<16x1xf32>
    %15 = arith.addf %11, %14 : vector<16x1xf32>
    %16 = math.rsqrt %15 : vector<16x1xf32>
    %17 = vector.broadcast %16 : vector<16x1xf32> to vector<16x32xf32>
    %18 = arith.mulf %13, %17 : vector<16x32xf32>
    %c0_5 = arith.constant 0 : index
    %c0_6 = arith.constant 0 : index
    %19 = vector.load %arg1[%c0_5, %c0_6] : memref<1x32xf32, #tpu.memory_space<vmem>>, vector<1x32xf32>
    %20 = vector.broadcast %19 : vector<1x32xf32> to vector<16x32xf32>
    %21 = arith.mulf %18, %20 : vector<16x32xf32>
    %c0_7 = arith.constant 0 : index
    %c0_8 = arith.constant 0 : index
    %22 = vector.load %arg2[%c0_7, %c0_8] : memref<1x32xf32, #tpu.memory_space<vmem>>, vector<1x32xf32>
    %23 = vector.broadcast %22 : vector<1x32xf32> to vector<16x32xf32>
    %24 = arith.addf %21, %23 : vector<16x32xf32>
    %c0_9 = arith.constant 0 : index
    %c0_10 = arith.constant 0 : index
    %25 = vector.load %arg3[%c0_9, %c0_10] : memref<16x32xf32, #tpu.memory_space<vmem>>, vector<16x32xf32>
    tpu.vector_store %arg3[%c0_9, %c0_10], %24 {strides = array<i32>} : memref<16x32xf32, #tpu.memory_space<vmem>>, vector<16x32xf32>,
    return
  }
}

module attributes {stable_mosaic.version = 11 : i64} {
  func.func @_encoder_layer_kernel(%arg0: i32, %arg1: memref<1x8x32xf32, #tpu.memory_space<vmem>>, %arg2: memref<1x1x8xf32, #tpu.memory_space<vmem>>, %arg3: memref<1x8x1xf32, #tpu.memory_space<vmem>>, %arg4: memref<1x15x32xf32, #tpu.memory_space<vmem>>, %arg5: memref<5x32xf32, #tpu.memory_space<vmem>>, %arg6: memref<5x32xf32, #tpu.memory_space<vmem>>, %arg7: memref<32x64xbf16, #tpu.memory_space<vmem>>, %arg8: memref<1x64xf32, #tpu.memory_space<vmem>>, %arg9: memref<64x32xbf16, #tpu.memory_space<vmem>>, %arg10: memref<1x32xf32, #tpu.memory_space<vmem>>, %arg11: memref<32x96xbf16, #tpu.memory_space<vmem>>, %arg12: memref<1x96xf32, #tpu.memory_space<vmem>>, %arg13: memref<32x32xbf16, #tpu.memory_space<vmem>>, %arg14: memref<1x32xf32, #tpu.memory_space<vmem>>, %arg15: memref<1x32xf32, #tpu.memory_space<vmem>>, %arg16: memref<32x32xbf16, #tpu.memory_space<vmem>>, %arg17: memref<1x32xf32, #tpu.memory_space<vmem>>, %arg18: memref<32x32xbf16, #tpu.memory_space<vmem>>, %arg19: memref<1x32xf32, #tpu.memory_space<vmem>>, %arg20: memref<32x32xbf16, #tpu.memory_space<vmem>>, %arg21: memref<1x32xf32, #tpu.memory_space<vmem>>, %arg22: memref<7x32xf32, #tpu.memory_space<vmem>>, %arg23: memref<1x32xf32, #tpu.memory_space<vmem>>, %arg24: memref<1x32xf32, #tpu.memory_space<vmem>>, %arg25: memref<1x32xf32, #tpu.memory_space<vmem>>, %arg26: memref<32x32xbf16, #tpu.memory_space<vmem>>, %arg27: memref<1x32xf32, #tpu.memory_space<vmem>>, %arg28: memref<1x8x32xf32, #tpu.memory_space<vmem>>) attributes {dimension_semantics = [#tpu.dimension_semantics<parallel>], iteration_bounds = array<i64: 2>, scalar_prefetch = 0 : i64, scratch_operands = 0 : i64, tpu.core_type = #tpu.core_type<tc>, window_params = [{transform_indices = @transform_0, window_bounds = array<i64: 1, 8, 32>}, {transform_indices = @transform_1, window_bounds = array<i64: 1, 1, 8>}, {transform_indices = @transform_2, window_bounds = array<i64: 1, 8, 1>}, {pipeline_mode = #tpu.pipeline_mode<synchronous>, transform_indices = @transform_3, window_bounds = array<i64: 1, 15, 32>}, {pipeline_mode = #tpu.pipeline_mode<synchronous>, transform_indices = @transform_4, window_bounds = array<i64: 5, 32>}, {pipeline_mode = #tpu.pipeline_mode<synchronous>, transform_indices = @transform_5, window_bounds = array<i64: 5, 32>}, {pipeline_mode = #tpu.pipeline_mode<synchronous>, transform_indices = @transform_6, window_bounds = array<i64: 32, 64>}, {pipeline_mode = #tpu.pipeline_mode<synchronous>, transform_indices = @transform_7, window_bounds = array<i64: 1, 64>}, {pipeline_mode = #tpu.pipeline_mode<synchronous>, transform_indices = @transform_8, window_bounds = array<i64: 64, 32>}, {pipeline_mode = #tpu.pipeline_mode<synchronous>, transform_indices = @transform_9, window_bounds = array<i64: 1, 32>}, {pipeline_mode = #tpu.pipeline_mode<synchronous>, transform_indices = @transform_10, window_bounds = array<i64: 32, 96>}, {pipeline_mode = #tpu.pipeline_mode<synchronous>, transform_indices = @transform_11, window_bounds = array<i64: 1, 96>}, {pipeline_mode = #tpu.pipeline_mode<synchronous>, transform_indices = @transform_12, window_bounds = array<i64: 32, 32>}, {pipeline_mode = #tpu.pipeline_mode<synchronous>, transform_indices = @transform_13, window_bounds = array<i64: 1, 32>}, {pipeline_mode = #tpu.pipeline_mode<synchronous>, transform_indices = @transform_14, window_bounds = array<i64: 1, 32>}, {pipeline_mode = #tpu.pipeline_mode<synchronous>, transform_indices = @transform_15, window_bounds = array<i64: 32, 32>}, {pipeline_mode = #tpu.pipeline_mode<synchronous>, transform_indices = @transform_16, window_bounds = array<i64: 1, 32>}, {pipeline_mode = #tpu.pipeline_mode<synchronous>, transform_indices = @transform_17, window_bounds = array<i64: 32, 32>}, {pipeline_mode = #tpu.pipeline_mode<synchronous>, transform_indices = @transform_18, window_bounds = array<i64: 1, 32>}, {pipeline_mode = #tpu.pipeline_mode<synchronous>, transform_indices = @transform_19, window_bounds = array<i64: 32, 32>}, {pipeline_mode = #tpu.pipeline_mode<synchronous>, transform_indices = @transform_20, window_bounds = array<i64: 1, 32>}, {pipeline_mode = #tpu.pipeline_mode<synchronous>, transform_indices = @transform_21, window_bounds = array<i64: 7, 32>}, {pipeline_mode = #tpu.pipeline_mode<synchronous>, transform_indices = @transform_22, window_bounds = array<i64: 1, 32>}, {pipeline_mode = #tpu.pipeline_mode<synchronous>, transform_indices = @transform_23, window_bounds = array<i64: 1, 32>}, {pipeline_mode = #tpu.pipeline_mode<synchronous>, transform_indices = @transform_24, window_bounds = array<i64: 1, 32>}, {pipeline_mode = #tpu.pipeline_mode<synchronous>, transform_indices = @transform_25, window_bounds = array<i64: 32, 32>}, {pipeline_mode = #tpu.pipeline_mode<synchronous>, transform_indices = @transform_26, window_bounds = array<i64: 1, 32>}, {transform_indices = @transform_27, window_bounds = array<i64: 1, 8, 32>}]} {
    %c0 = arith.constant 0 : index
    %c0_0 = arith.constant 0 : index
    %c0_1 = arith.constant 0 : index
    %0 = vector.load %arg1[%c0, %c0_0, %c0_1] : memref<1x8x32xf32, #tpu.memory_space<vmem>>, vector<1x8x32xf32>
    %1 = vector.shape_cast %0 : vector<1x8x32xf32> to vector<8x32xf32>
    %c0_2 = arith.constant 0 : index
    %c0_3 = arith.constant 0 : index
    %2 = vector.load %arg5[%c0_2, %c0_3] : memref<5x32xf32, #tpu.memory_space<vmem>>, vector<5x32xf32>
    %c0_4 = arith.constant 0 : index
    %c0_5 = arith.constant 0 : index
    %3 = vector.load %arg6[%c0_4, %c0_5] : memref<5x32xf32, #tpu.memory_space<vmem>>, vector<5x32xf32>
    %cst = arith.constant dense<0.000000e+00> : vector<8xf32>
    %4 = vector.multi_reduction <add>, %1, %cst [1] : vector<8x32xf32> to vector<8xf32>
    %5 = vector.shape_cast %4 : vector<8xf32> to vector<8x1xf32>
    %cst_6 = arith.constant 3.200000e+01 : f32
    %6 = vector.broadcast %cst_6 : f32 to vector<8x1xf32>
    %7 = arith.divf %5, %6 : vector<8x1xf32>
    %8 = vector.broadcast %7 : vector<8x1xf32> to vector<8x32xf32>
    %9 = arith.subf %1, %8 : vector<8x32xf32>
    %10 = arith.mulf %9, %9 : vector<8x32xf32>
    %cst_7 = arith.constant dense<0.000000e+00> : vector<8xf32>
    %11 = vector.multi_reduction <add>, %10, %cst_7 [1] : vector<8x32xf32> to vector<8xf32>
    %12 = vector.shape_cast %11 : vector<8xf32> to vector<8x1xf32>
    %cst_8 = arith.constant 3.200000e+01 : f32
    %13 = vector.broadcast %cst_8 : f32 to vector<8x1xf32>
    %14 = arith.divf %12, %13 : vector<8x1xf32>
    %15 = vector.broadcast %7 : vector<8x1xf32> to vector<8x32xf32>
    %16 = arith.subf %1, %15 : vector<8x32xf32>
    %cst_9 = arith.constant 9.99999974E-6 : f32
    %17 = vector.broadcast %cst_9 : f32 to vector<8x1xf32>
    %18 = arith.addf %14, %17 : vector<8x1xf32>
    %19 = math.rsqrt %18 : vector<8x1xf32>
    %20 = vector.broadcast %19 : vector<8x1xf32> to vector<8x32xf32>
    %21 = arith.mulf %16, %20 : vector<8x32xf32>
    %22 = vector.extract_strided_slice %2 {offsets = [0, 0], sizes = [1, 32], strides = [1, 1]} : vector<5x32xf32> to vector<1x32xf32>
    %23 = vector.broadcast %22 : vector<1x32xf32> to vector<8x32xf32>
    %24 = arith.mulf %21, %23 : vector<8x32xf32>
    %25 = vector.extract_strided_slice %3 {offsets = [0, 0], sizes = [1, 32], strides = [1, 1]} : vector<5x32xf32> to vector<1x32xf32>
    %26 = vector.broadcast %25 : vector<1x32xf32> to vector<8x32xf32>
    %27 = arith.addf %24, %26 : vector<8x32xf32>
    %28 = arith.truncf %27 : vector<8x32xf32> to vector<8x32xbf16>
    %c0_10 = arith.constant 0 : index
    %c0_11 = arith.constant 0 : index
    %29 = vector.load %arg7[%c0_10, %c0_11] : memref<32x64xbf16, #tpu.memory_space<vmem>>, vector<32x64xbf16>
    %cst_12 = arith.constant dense<0.000000e+00> : vector<8x64xf32>
    %30 = tpu.matmul %28, %29, %cst_12 {dimension_numbers = #tpu.dot_dimension_numbers<[1], [0], [0], [1], [0, 0, 1, 1], [], []>} : vector<8x32xbf16>, vector<32x64xbf16>, vector<8x64xf32> -> vector<8x64xf32>
    %c0_13 = arith.constant 0 : index
    %c0_14 = arith.constant 0 : index
    %31 = vector.load %arg8[%c0_13, %c0_14] : memref<1x64xf32, #tpu.memory_space<vmem>>, vector<1x64xf32>
    %32 = vector.broadcast %31 : vector<1x64xf32> to vector<8x64xf32>
    %33 = arith.addf %30, %32 : vector<8x64xf32>
    %34 = arith.negf %33 : vector<8x64xf32>
    %35 = math.exp %34 : vector<8x64xf32>
    %cst_15 = arith.constant 1.000000e+00 : f32
    %36 = vector.broadcast %cst_15 : f32 to vector<8x64xf32>
    %37 = arith.addf %36, %35 : vector<8x64xf32>
    %38 = arith.divf %36, %37 : vector<8x64xf32>
    %39 = arith.mulf %33, %38 : vector<8x64xf32>
    %40 = arith.truncf %39 : vector<8x64xf32> to vector<8x64xbf16>
    %c0_16 = arith.constant 0 : index
    %c0_17 = arith.constant 0 : index
    %41 = vector.load %arg9[%c0_16, %c0_17] : memref<64x32xbf16, #tpu.memory_space<vmem>>, vector<64x32xbf16>
    %cst_18 = arith.constant dense<0.000000e+00> : vector<8x32xf32>
    %42 = tpu.matmul %40, %41, %cst_18 {dimension_numbers = #tpu.dot_dimension_numbers<[1], [0], [0], [1], [0, 0, 1, 1], [], []>} : vector<8x64xbf16>, vector<64x32xbf16>, vector<8x32xf32> -> vector<8x32xf32>
    %c0_19 = arith.constant 0 : index
    %c0_20 = arith.constant 0 : index
    %43 = vector.load %arg10[%c0_19, %c0_20] : memref<1x32xf32, #tpu.memory_space<vmem>>, vector<1x32xf32>
    %44 = vector.broadcast %43 : vector<1x32xf32> to vector<8x32xf32>
    %45 = arith.addf %42, %44 : vector<8x32xf32>
    %cst_21 = arith.constant 5.000000e-01 : f32
    %46 = vector.broadcast %cst_21 : f32 to vector<8x32xf32>
    %47 = arith.mulf %46, %45 : vector<8x32xf32>
    %48 = arith.addf %1, %47 : vector<8x32xf32>
    %cst_22 = arith.constant dense<0.000000e+00> : vector<8xf32>
    %49 = vector.multi_reduction <add>, %48, %cst_22 [1] : vector<8x32xf32> to vector<8xf32>
    %50 = vector.shape_cast %49 : vector<8xf32> to vector<8x1xf32>
    %cst_23 = arith.constant 3.200000e+01 : f32
    %51 = vector.broadcast %cst_23 : f32 to vector<8x1xf32>
    %52 = arith.divf %50, %51 : vector<8x1xf32>
    %53 = vector.broadcast %52 : vector<8x1xf32> to vector<8x32xf32>
    %54 = arith.subf %48, %53 : vector<8x32xf32>
    %55 = arith.mulf %54, %54 : vector<8x32xf32>
    %cst_24 = arith.constant dense<0.000000e+00> : vector<8xf32>
    %56 = vector.multi_reduction <add>, %55, %cst_24 [1] : vector<8x32xf32> to vector<8xf32>
    %57 = vector.shape_cast %56 : vector<8xf32> to vector<8x1xf32>
    %cst_25 = arith.constant 3.200000e+01 : f32
    %58 = vector.broadcast %cst_25 : f32 to vector<8x1xf32>
    %59 = arith.divf %57, %58 : vector<8x1xf32>
    %60 = vector.broadcast %52 : vector<8x1xf32> to vector<8x32xf32>
    %61 = arith.subf %48, %60 : vector<8x32xf32>
    %cst_26 = arith.constant 9.99999974E-6 : f32
    %62 = vector.broadcast %cst_26 : f32 to vector<8x1xf32>
    %63 = arith.addf %59, %62 : vector<8x1xf32>
    %64 = math.rsqrt %63 : vector<8x1xf32>
    %65 = vector.broadcast %64 : vector<8x1xf32> to vector<8x32xf32>
    %66 = arith.mulf %61, %65 : vector<8x32xf32>
    %67 = vector.extract_strided_slice %2 {offsets = [1, 0], sizes = [1, 32], strides = [1, 1]} : vector<5x32xf32> to vector<1x32xf32>
    %68 = vector.broadcast %67 : vector<1x32xf32> to vector<8x32xf32>
    %69 = arith.mulf %66, %68 : vector<8x32xf32>
    %70 = vector.extract_strided_slice %3 {offsets = [1, 0], sizes = [1, 32], strides = [1, 1]} : vector<5x32xf32> to vector<1x32xf32>
    %71 = vector.broadcast %70 : vector<1x32xf32> to vector<8x32xf32>
    %72 = arith.addf %69, %71 : vector<8x32xf32>
    %73 = arith.truncf %72 : vector<8x32xf32> to vector<8x32xbf16>
    %c0_27 = arith.constant 0 : index
    %c0_28 = arith.constant 0 : index
    %74 = vector.load %arg11[%c0_27, %c0_28] : memref<32x96xbf16, #tpu.memory_space<vmem>>, vector<32x96xbf16>
    %cst_29 = arith.constant dense<0.000000e+00> : vector<8x96xf32>
    %75 = tpu.matmul %73, %74, %cst_29 {dimension_numbers = #tpu.dot_dimension_numbers<[1], [0], [0], [1], [0, 0, 1, 1], [], []>} : vector<8x32xbf16>, vector<32x96xbf16>, vector<8x96xf32> -> vector<8x96xf32>
    %c0_30 = arith.constant 0 : index
    %c0_31 = arith.constant 0 : index
    %76 = vector.load %arg12[%c0_30, %c0_31] : memref<1x96xf32, #tpu.memory_space<vmem>>, vector<1x96xf32>
    %77 = vector.broadcast %76 : vector<1x96xf32> to vector<8x96xf32>
    %78 = arith.addf %75, %77 : vector<8x96xf32>
    %79 = vector.extract_strided_slice %78 {offsets = [0, 0], sizes = [8, 32], strides = [1, 1]} : vector<8x96xf32> to vector<8x32xf32>
    %80 = vector.extract_strided_slice %78 {offsets = [0, 32], sizes = [8, 32], strides = [1, 1]} : vector<8x96xf32> to vector<8x32xf32>
    %81 = vector.extract_strided_slice %78 {offsets = [0, 64], sizes = [8, 32], strides = [1, 1]} : vector<8x96xf32> to vector<8x32xf32>
    %c0_32 = arith.constant 0 : index
    %c0_33 = arith.constant 0 : index
    %c0_34 = arith.constant 0 : index
    %82 = vector.load %arg4[%c0_32, %c0_33, %c0_34] : memref<1x15x32xf32, #tpu.memory_space<vmem>>, vector<1x15x32xf32>
    %83 = vector.shape_cast %82 : vector<1x15x32xf32> to vector<15x32xf32>
    %84 = arith.truncf %83 : vector<15x32xf32> to vector<15x32xbf16>
    %c0_35 = arith.constant 0 : index
    %c0_36 = arith.constant 0 : index
    %85 = vector.load %arg13[%c0_35, %c0_36] : memref<32x32xbf16, #tpu.memory_space<vmem>>, vector<32x32xbf16>
    %cst_37 = arith.constant dense<0.000000e+00> : vector<15x32xf32>
    %86 = tpu.matmul %84, %85, %cst_37 {dimension_numbers = #tpu.dot_dimension_numbers<[1], [0], [0], [1], [0, 0, 1, 1], [], []>} : vector<15x32xbf16>, vector<32x32xbf16>, vector<15x32xf32> -> vector<15x32xf32>
    %c0_38 = arith.constant 0 : index
    %c0_39 = arith.constant 0 : index
    %87 = vector.load %arg14[%c0_38, %c0_39] : memref<1x32xf32, #tpu.memory_space<vmem>>, vector<1x32xf32>
    %88 = vector.broadcast %87 : vector<1x32xf32> to vector<8x32xf32>
    %89 = arith.addf %79, %88 : vector<8x32xf32>
    %c0_40 = arith.constant 0 : index
    %c0_41 = arith.constant 0 : index
    %90 = vector.load %arg15[%c0_40, %c0_41] : memref<1x32xf32, #tpu.memory_space<vmem>>, vector<1x32xf32>
    %91 = vector.broadcast %90 : vector<1x32xf32> to vector<8x32xf32>
    %92 = arith.addf %79, %91 : vector<8x32xf32>
    %c0_42 = arith.constant 0 : index
    %c0_43 = arith.constant 0 : index
    %c0_44 = arith.constant 0 : index
    %93 = vector.load %arg2[%c0_42, %c0_43, %c0_44] : memref<1x1x8xf32, #tpu.memory_space<vmem>>, vector<1x1x8xf32>
    %94 = vector.shape_cast %93 : vector<1x1x8xf32> to vector<1x8xf32>
    %cst_45 = arith.constant 0.000000e+00 : f32
    %95 = vector.broadcast %cst_45 : f32 to vector<1x8xf32>
    %96 = arith.cmpf oeq, %94, %95 : vector<1x8xf32>
    %97 = vector.extract_strided_slice %89 {offsets = [0, 0], sizes = [8, 8], strides = [1, 1]} : vector<8x32xf32> to vector<8x8xf32>
    %98 = vector.extract_strided_slice %92 {offsets = [0, 0], sizes = [8, 8], strides = [1, 1]} : vector<8x32xf32> to vector<8x8xf32>
    %99 = vector.extract_strided_slice %80 {offsets = [0, 0], sizes = [8, 8], strides = [1, 1]} : vector<8x32xf32> to vector<8x8xf32>
    %100 = vector.extract_strided_slice %81 {offsets = [0, 0], sizes = [8, 8], strides = [1, 1]} : vector<8x32xf32> to vector<8x8xf32>
    %101 = vector.extract_strided_slice %86 {offsets = [0, 0], sizes = [15, 8], strides = [1, 1]} : vector<15x32xf32> to vector<15x8xf32>
    %cst_46 = arith.constant dense<0.000000e+00> : vector<8x8xf32>
    %102 = tpu.matmul %97, %99, %cst_46 {dimension_numbers = #tpu.dot_dimension_numbers<[1], [1], [0], [0], [0, 0, 1, 0], [], []>} : vector<8x8xf32>, vector<8x8xf32>, vector<8x8xf32> -> vector<8x8xf32>
    %cst_47 = arith.constant dense<0.000000e+00> : vector<8x15xf32>
    %103 = tpu.matmul %98, %101, %cst_47 {dimension_numbers = #tpu.dot_dimension_numbers<[1], [1], [0], [0], [0, 0, 1, 0], [], []>} : vector<8x8xf32>, vector<15x8xf32>, vector<8x15xf32> -> vector<8x15xf32>
    %104 = vector.extract_strided_slice %103 {offsets = [0, 7], sizes = [1, 8], strides = [1, 1]} : vector<8x15xf32> to vector<1x8xf32>
    %105 = vector.extract_strided_slice %103 {offsets = [1, 6], sizes = [1, 8], strides = [1, 1]} : vector<8x15xf32> to vector<1x8xf32>
    %106 = vector.extract_strided_slice %103 {offsets = [2, 5], sizes = [1, 8], strides = [1, 1]} : vector<8x15xf32> to vector<1x8xf32>
    %107 = vector.extract_strided_slice %103 {offsets = [3, 4], sizes = [1, 8], strides = [1, 1]} : vector<8x15xf32> to vector<1x8xf32>
    %108 = vector.extract_strided_slice %103 {offsets = [4, 3], sizes = [1, 8], strides = [1, 1]} : vector<8x15xf32> to vector<1x8xf32>
    %109 = vector.extract_strided_slice %103 {offsets = [5, 2], sizes = [1, 8], strides = [1, 1]} : vector<8x15xf32> to vector<1x8xf32>
    %110 = vector.extract_strided_slice %103 {offsets = [6, 1], sizes = [1, 8], strides = [1, 1]} : vector<8x15xf32> to vector<1x8xf32>
    %111 = vector.extract_strided_slice %103 {offsets = [7, 0], sizes = [1, 8], strides = [1, 1]} : vector<8x15xf32> to vector<1x8xf32>
    %112 = tpu.concatenate %104, %105, %106, %107, %108, %109, %110, %111 in 0 : vector<1x8xf32>, vector<1x8xf32>, vector<1x8xf32>, vector<1x8xf32>, vector<1x8xf32>, vector<1x8xf32>, vector<1x8xf32>, vector<1x8xf32> -> vector<8x8xf32>
    %113 = arith.addf %102, %112 : vector<8x8xf32>
    %cst_48 = arith.constant 0.353553385 : f32
    %114 = vector.broadcast %cst_48 : f32 to vector<8x8xf32>
    %115 = arith.mulf %113, %114 : vector<8x8xf32>
    %cst_49 = arith.constant -3.40282347E+38 : f32
    %116 = vector.shape_cast %96 : vector<1x8xi1> to vector<1x8xi1>
    %117 = vector.broadcast %116 : vector<1x8xi1> to vector<8x8xi1>
    %118 = vector.broadcast %cst_49 : f32 to vector<8x8xf32>
    %119 = arith.select %117, %118, %115 : vector<8x8xi1>, vector<8x8xf32>
    %cst_50 = arith.constant dense<0xFF800000> : vector<8xf32>
    %120 = vector.multi_reduction <maximumf>, %119, %cst_50 [1] : vector<8x8xf32> to vector<8xf32>
    %121 = vector.shape_cast %120 : vector<8xf32> to vector<8x1xf32>
    %122 = vector.broadcast %121 : vector<8x1xf32> to vector<8x8xf32>
    %123 = arith.subf %119, %122 : vector<8x8xf32>
    %124 = math.exp %123 : vector<8x8xf32>
    %cst_51 = arith.constant dense<0.000000e+00> : vector<8xf32>
    %125 = vector.multi_reduction <add>, %124, %cst_51 [1] : vector<8x8xf32> to vector<8xf32>
    %126 = vector.shape_cast %125 : vector<8xf32> to vector<8x1xf32>
    %127 = tpu.reciprocal %126 {approx = true} : vector<8x1xf32> -> vector<8x1xf32>
    %128 = vector.broadcast %127 : vector<8x1xf32> to vector<8x8xf32>
    %129 = arith.mulf %124, %128 : vector<8x8xf32>
    %cst_52 = arith.constant 0.000000e+00 : f32
    %130 = vector.shape_cast %96 : vector<1x8xi1> to vector<1x8xi1>
    %131 = vector.broadcast %130 : vector<1x8xi1> to vector<8x8xi1>
    %132 = vector.broadcast %cst_52 : f32 to vector<8x8xf32>
    %133 = arith.select %131, %132, %129 : vector<8x8xi1>, vector<8x8xf32>
    %cst_53 = arith.constant dense<0.000000e+00> : vector<8x8xf32>
    %134 = tpu.matmul %133, %100, %cst_53 {dimension_numbers = #tpu.dot_dimension_numbers<[1], [0], [0], [1], [0, 0, 1, 1], [], []>} : vector<8x8xf32>, vector<8x8xf32>, vector<8x8xf32> -> vector<8x8xf32>
    %135 = vector.extract_strided_slice %89 {offsets = [0, 8], sizes = [8, 8], strides = [1, 1]} : vector<8x32xf32> to vector<8x8xf32>
    %136 = vector.extract_strided_slice %92 {offsets = [0, 8], sizes = [8, 8], strides = [1, 1]} : vector<8x32xf32> to vector<8x8xf32>
    %137 = vector.extract_strided_slice %80 {offsets = [0, 8], sizes = [8, 8], strides = [1, 1]} : vector<8x32xf32> to vector<8x8xf32>
    %138 = vector.extract_strided_slice %81 {offsets = [0, 8], sizes = [8, 8], strides = [1, 1]} : vector<8x32xf32> to vector<8x8xf32>
    %139 = vector.extract_strided_slice %86 {offsets = [0, 8], sizes = [15, 8], strides = [1, 1]} : vector<15x32xf32> to vector<15x8xf32>
    %cst_54 = arith.constant dense<0.000000e+00> : vector<8x8xf32>
    %140 = tpu.matmul %135, %137, %cst_54 {dimension_numbers = #tpu.dot_dimension_numbers<[1], [1], [0], [0], [0, 0, 1, 0], [], []>} : vector<8x8xf32>, vector<8x8xf32>, vector<8x8xf32> -> vector<8x8xf32>
    %cst_55 = arith.constant dense<0.000000e+00> : vector<8x15xf32>
    %141 = tpu.matmul %136, %139, %cst_55 {dimension_numbers = #tpu.dot_dimension_numbers<[1], [1], [0], [0], [0, 0, 1, 0], [], []>} : vector<8x8xf32>, vector<15x8xf32>, vector<8x15xf32> -> vector<8x15xf32>
    %142 = vector.extract_strided_slice %141 {offsets = [0, 7], sizes = [1, 8], strides = [1, 1]} : vector<8x15xf32> to vector<1x8xf32>
    %143 = vector.extract_strided_slice %141 {offsets = [1, 6], sizes = [1, 8], strides = [1, 1]} : vector<8x15xf32> to vector<1x8xf32>
    %144 = vector.extract_strided_slice %141 {offsets = [2, 5], sizes = [1, 8], strides = [1, 1]} : vector<8x15xf32> to vector<1x8xf32>
    %145 = vector.extract_strided_slice %141 {offsets = [3, 4], sizes = [1, 8], strides = [1, 1]} : vector<8x15xf32> to vector<1x8xf32>
    %146 = vector.extract_strided_slice %141 {offsets = [4, 3], sizes = [1, 8], strides = [1, 1]} : vector<8x15xf32> to vector<1x8xf32>
    %147 = vector.extract_strided_slice %141 {offsets = [5, 2], sizes = [1, 8], strides = [1, 1]} : vector<8x15xf32> to vector<1x8xf32>
    %148 = vector.extract_strided_slice %141 {offsets = [6, 1], sizes = [1, 8], strides = [1, 1]} : vector<8x15xf32> to vector<1x8xf32>
    %149 = vector.extract_strided_slice %141 {offsets = [7, 0], sizes = [1, 8], strides = [1, 1]} : vector<8x15xf32> to vector<1x8xf32>
    %150 = tpu.concatenate %142, %143, %144, %145, %146, %147, %148, %149 in 0 : vector<1x8xf32>, vector<1x8xf32>, vector<1x8xf32>, vector<1x8xf32>, vector<1x8xf32>, vector<1x8xf32>, vector<1x8xf32>, vector<1x8xf32> -> vector<8x8xf32>
    %151 = arith.addf %140, %150 : vector<8x8xf32>
    %cst_56 = arith.constant 0.353553385 : f32
    %152 = vector.broadcast %cst_56 : f32 to vector<8x8xf32>
    %153 = arith.mulf %151, %152 : vector<8x8xf32>
    %cst_57 = arith.constant -3.40282347E+38 : f32
    %154 = vector.shape_cast %96 : vector<1x8xi1> to vector<1x8xi1>
    %155 = vector.broadcast %154 : vector<1x8xi1> to vector<8x8xi1>
    %156 = vector.broadcast %cst_57 : f32 to vector<8x8xf32>
    %157 = arith.select %155, %156, %153 : vector<8x8xi1>, vector<8x8xf32>
    %cst_58 = arith.constant dense<0xFF800000> : vector<8xf32>
    %158 = vector.multi_reduction <maximumf>, %157, %cst_58 [1] : vector<8x8xf32> to vector<8xf32>
    %159 = vector.shape_cast %158 : vector<8xf32> to vector<8x1xf32>
    %160 = vector.broadcast %159 : vector<8x1xf32> to vector<8x8xf32>
    %161 = arith.subf %157, %160 : vector<8x8xf32>
    %162 = math.exp %161 : vector<8x8xf32>
    %cst_59 = arith.constant dense<0.000000e+00> : vector<8xf32>
    %163 = vector.multi_reduction <add>, %162, %cst_59 [1] : vector<8x8xf32> to vector<8xf32>
    %164 = vector.shape_cast %163 : vector<8xf32> to vector<8x1xf32>
    %165 = tpu.reciprocal %164 {approx = true} : vector<8x1xf32> -> vector<8x1xf32>
    %166 = vector.broadcast %165 : vector<8x1xf32> to vector<8x8xf32>
    %167 = arith.mulf %162, %166 : vector<8x8xf32>
    %cst_60 = arith.constant 0.000000e+00 : f32
    %168 = vector.shape_cast %96 : vector<1x8xi1> to vector<1x8xi1>
    %169 = vector.broadcast %168 : vector<1x8xi1> to vector<8x8xi1>
    %170 = vector.broadcast %cst_60 : f32 to vector<8x8xf32>
    %171 = arith.select %169, %170, %167 : vector<8x8xi1>, vector<8x8xf32>
    %cst_61 = arith.constant dense<0.000000e+00> : vector<8x8xf32>
    %172 = tpu.matmul %171, %138, %cst_61 {dimension_numbers = #tpu.dot_dimension_numbers<[1], [0], [0], [1], [0, 0, 1, 1], [], []>} : vector<8x8xf32>, vector<8x8xf32>, vector<8x8xf32> -> vector<8x8xf32>
    %173 = vector.extract_strided_slice %89 {offsets = [0, 16], sizes = [8, 8], strides = [1, 1]} : vector<8x32xf32> to vector<8x8xf32>
    %174 = vector.extract_strided_slice %92 {offsets = [0, 16], sizes = [8, 8], strides = [1, 1]} : vector<8x32xf32> to vector<8x8xf32>
    %175 = vector.extract_strided_slice %80 {offsets = [0, 16], sizes = [8, 8], strides = [1, 1]} : vector<8x32xf32> to vector<8x8xf32>
    %176 = vector.extract_strided_slice %81 {offsets = [0, 16], sizes = [8, 8], strides = [1, 1]} : vector<8x32xf32> to vector<8x8xf32>
    %177 = vector.extract_strided_slice %86 {offsets = [0, 16], sizes = [15, 8], strides = [1, 1]} : vector<15x32xf32> to vector<15x8xf32>
    %cst_62 = arith.constant dense<0.000000e+00> : vector<8x8xf32>
    %178 = tpu.matmul %173, %175, %cst_62 {dimension_numbers = #tpu.dot_dimension_numbers<[1], [1], [0], [0], [0, 0, 1, 0], [], []>} : vector<8x8xf32>, vector<8x8xf32>, vector<8x8xf32> -> vector<8x8xf32>
    %cst_63 = arith.constant dense<0.000000e+00> : vector<8x15xf32>
    %179 = tpu.matmul %174, %177, %cst_63 {dimension_numbers = #tpu.dot_dimension_numbers<[1], [1], [0], [0], [0, 0, 1, 0], [], []>} : vector<8x8xf32>, vector<15x8xf32>, vector<8x15xf32> -> vector<8x15xf32>
    %180 = vector.extract_strided_slice %179 {offsets = [0, 7], sizes = [1, 8], strides = [1, 1]} : vector<8x15xf32> to vector<1x8xf32>
    %181 = vector.extract_strided_slice %179 {offsets = [1, 6], sizes = [1, 8], strides = [1, 1]} : vector<8x15xf32> to vector<1x8xf32>
    %182 = vector.extract_strided_slice %179 {offsets = [2, 5], sizes = [1, 8], strides = [1, 1]} : vector<8x15xf32> to vector<1x8xf32>
    %183 = vector.extract_strided_slice %179 {offsets = [3, 4], sizes = [1, 8], strides = [1, 1]} : vector<8x15xf32> to vector<1x8xf32>
    %184 = vector.extract_strided_slice %179 {offsets = [4, 3], sizes = [1, 8], strides = [1, 1]} : vector<8x15xf32> to vector<1x8xf32>
    %185 = vector.extract_strided_slice %179 {offsets = [5, 2], sizes = [1, 8], strides = [1, 1]} : vector<8x15xf32> to vector<1x8xf32>
    %186 = vector.extract_strided_slice %179 {offsets = [6, 1], sizes = [1, 8], strides = [1, 1]} : vector<8x15xf32> to vector<1x8xf32>
    %187 = vector.extract_strided_slice %179 {offsets = [7, 0], sizes = [1, 8], strides = [1, 1]} : vector<8x15xf32> to vector<1x8xf32>
    %188 = tpu.concatenate %180, %181, %182, %183, %184, %185, %186, %187 in 0 : vector<1x8xf32>, vector<1x8xf32>, vector<1x8xf32>, vector<1x8xf32>, vector<1x8xf32>, vector<1x8xf32>, vector<1x8xf32>, vector<1x8xf32> -> vector<8x8xf32>
    %189 = arith.addf %178, %188 : vector<8x8xf32>
    %cst_64 = arith.constant 0.353553385 : f32
    %190 = vector.broadcast %cst_64 : f32 to vector<8x8xf32>
    %191 = arith.mulf %189, %190 : vector<8x8xf32>
    %cst_65 = arith.constant -3.40282347E+38 : f32
    %192 = vector.shape_cast %96 : vector<1x8xi1> to vector<1x8xi1>
    %193 = vector.broadcast %192 : vector<1x8xi1> to vector<8x8xi1>
    %194 = vector.broadcast %cst_65 : f32 to vector<8x8xf32>
    %195 = arith.select %193, %194, %191 : vector<8x8xi1>, vector<8x8xf32>
    %cst_66 = arith.constant dense<0xFF800000> : vector<8xf32>
    %196 = vector.multi_reduction <maximumf>, %195, %cst_66 [1] : vector<8x8xf32> to vector<8xf32>
    %197 = vector.shape_cast %196 : vector<8xf32> to vector<8x1xf32>
    %198 = vector.broadcast %197 : vector<8x1xf32> to vector<8x8xf32>
    %199 = arith.subf %195, %198 : vector<8x8xf32>
    %200 = math.exp %199 : vector<8x8xf32>
    %cst_67 = arith.constant dense<0.000000e+00> : vector<8xf32>
    %201 = vector.multi_reduction <add>, %200, %cst_67 [1] : vector<8x8xf32> to vector<8xf32>
    %202 = vector.shape_cast %201 : vector<8xf32> to vector<8x1xf32>
    %203 = tpu.reciprocal %202 {approx = true} : vector<8x1xf32> -> vector<8x1xf32>
    %204 = vector.broadcast %203 : vector<8x1xf32> to vector<8x8xf32>
    %205 = arith.mulf %200, %204 : vector<8x8xf32>
    %cst_68 = arith.constant 0.000000e+00 : f32
    %206 = vector.shape_cast %96 : vector<1x8xi1> to vector<1x8xi1>
    %207 = vector.broadcast %206 : vector<1x8xi1> to vector<8x8xi1>
    %208 = vector.broadcast %cst_68 : f32 to vector<8x8xf32>
    %209 = arith.select %207, %208, %205 : vector<8x8xi1>, vector<8x8xf32>
    %cst_69 = arith.constant dense<0.000000e+00> : vector<8x8xf32>
    %210 = tpu.matmul %209, %176, %cst_69 {dimension_numbers = #tpu.dot_dimension_numbers<[1], [0], [0], [1], [0, 0, 1, 1], [], []>} : vector<8x8xf32>, vector<8x8xf32>, vector<8x8xf32> -> vector<8x8xf32>
    %211 = vector.extract_strided_slice %89 {offsets = [0, 24], sizes = [8, 8], strides = [1, 1]} : vector<8x32xf32> to vector<8x8xf32>
    %212 = vector.extract_strided_slice %92 {offsets = [0, 24], sizes = [8, 8], strides = [1, 1]} : vector<8x32xf32> to vector<8x8xf32>
    %213 = vector.extract_strided_slice %80 {offsets = [0, 24], sizes = [8, 8], strides = [1, 1]} : vector<8x32xf32> to vector<8x8xf32>
    %214 = vector.extract_strided_slice %81 {offsets = [0, 24], sizes = [8, 8], strides = [1, 1]} : vector<8x32xf32> to vector<8x8xf32>
    %215 = vector.extract_strided_slice %86 {offsets = [0, 24], sizes = [15, 8], strides = [1, 1]} : vector<15x32xf32> to vector<15x8xf32>
    %cst_70 = arith.constant dense<0.000000e+00> : vector<8x8xf32>
    %216 = tpu.matmul %211, %213, %cst_70 {dimension_numbers = #tpu.dot_dimension_numbers<[1], [1], [0], [0], [0, 0, 1, 0], [], []>} : vector<8x8xf32>, vector<8x8xf32>, vector<8x8xf32> -> vector<8x8xf32>
    %cst_71 = arith.constant dense<0.000000e+00> : vector<8x15xf32>
    %217 = tpu.matmul %212, %215, %cst_71 {dimension_numbers = #tpu.dot_dimension_numbers<[1], [1], [0], [0], [0, 0, 1, 0], [], []>} : vector<8x8xf32>, vector<15x8xf32>, vector<8x15xf32> -> vector<8x15xf32>
    %218 = vector.extract_strided_slice %217 {offsets = [0, 7], sizes = [1, 8], strides = [1, 1]} : vector<8x15xf32> to vector<1x8xf32>
    %219 = vector.extract_strided_slice %217 {offsets = [1, 6], sizes = [1, 8], strides = [1, 1]} : vector<8x15xf32> to vector<1x8xf32>
    %220 = vector.extract_strided_slice %217 {offsets = [2, 5], sizes = [1, 8], strides = [1, 1]} : vector<8x15xf32> to vector<1x8xf32>
    %221 = vector.extract_strided_slice %217 {offsets = [3, 4], sizes = [1, 8], strides = [1, 1]} : vector<8x15xf32> to vector<1x8xf32>
    %222 = vector.extract_strided_slice %217 {offsets = [4, 3], sizes = [1, 8], strides = [1, 1]} : vector<8x15xf32> to vector<1x8xf32>
    %223 = vector.extract_strided_slice %217 {offsets = [5, 2], sizes = [1, 8], strides = [1, 1]} : vector<8x15xf32> to vector<1x8xf32>
    %224 = vector.extract_strided_slice %217 {offsets = [6, 1], sizes = [1, 8], strides = [1, 1]} : vector<8x15xf32> to vector<1x8xf32>
    %225 = vector.extract_strided_slice %217 {offsets = [7, 0], sizes = [1, 8], strides = [1, 1]} : vector<8x15xf32> to vector<1x8xf32>
    %226 = tpu.concatenate %218, %219, %220, %221, %222, %223, %224, %225 in 0 : vector<1x8xf32>, vector<1x8xf32>, vector<1x8xf32>, vector<1x8xf32>, vector<1x8xf32>, vector<1x8xf32>, vector<1x8xf32>, vector<1x8xf32> -> vector<8x8xf32>
    %227 = arith.addf %216, %226 : vector<8x8xf32>
    %cst_72 = arith.constant 0.353553385 : f32
    %228 = vector.broadcast %cst_72 : f32 to vector<8x8xf32>
    %229 = arith.mulf %227, %228 : vector<8x8xf32>
    %cst_73 = arith.constant -3.40282347E+38 : f32
    %230 = vector.shape_cast %96 : vector<1x8xi1> to vector<1x8xi1>
    %231 = vector.broadcast %230 : vector<1x8xi1> to vector<8x8xi1>
    %232 = vector.broadcast %cst_73 : f32 to vector<8x8xf32>
    %233 = arith.select %231, %232, %229 : vector<8x8xi1>, vector<8x8xf32>
    %cst_74 = arith.constant dense<0xFF800000> : vector<8xf32>
    %234 = vector.multi_reduction <maximumf>, %233, %cst_74 [1] : vector<8x8xf32> to vector<8xf32>
    %235 = vector.shape_cast %234 : vector<8xf32> to vector<8x1xf32>
    %236 = vector.broadcast %235 : vector<8x1xf32> to vector<8x8xf32>
    %237 = arith.subf %233, %236 : vector<8x8xf32>
    %238 = math.exp %237 : vector<8x8xf32>
    %cst_75 = arith.constant dense<0.000000e+00> : vector<8xf32>
    %239 = vector.multi_reduction <add>, %238, %cst_75 [1] : vector<8x8xf32> to vector<8xf32>
    %240 = vector.shape_cast %239 : vector<8xf32> to vector<8x1xf32>
    %241 = tpu.reciprocal %240 {approx = true} : vector<8x1xf32> -> vector<8x1xf32>
    %242 = vector.broadcast %241 : vector<8x1xf32> to vector<8x8xf32>
    %243 = arith.mulf %238, %242 : vector<8x8xf32>
    %cst_76 = arith.constant 0.000000e+00 : f32
    %244 = vector.shape_cast %96 : vector<1x8xi1> to vector<1x8xi1>
    %245 = vector.broadcast %244 : vector<1x8xi1> to vector<8x8xi1>
    %246 = vector.broadcast %cst_76 : f32 to vector<8x8xf32>
    %247 = arith.select %245, %246, %243 : vector<8x8xi1>, vector<8x8xf32>
    %cst_77 = arith.constant dense<0.000000e+00> : vector<8x8xf32>
    %248 = tpu.matmul %247, %214, %cst_77 {dimension_numbers = #tpu.dot_dimension_numbers<[1], [0], [0], [1], [0, 0, 1, 1], [], []>} : vector<8x8xf32>, vector<8x8xf32>, vector<8x8xf32> -> vector<8x8xf32>
    %249 = tpu.concatenate %134, %172, %210, %248 in 1 : vector<8x8xf32>, vector<8x8xf32>, vector<8x8xf32>, vector<8x8xf32> -> vector<8x32xf32>
    %250 = arith.truncf %249 : vector<8x32xf32> to vector<8x32xbf16>
    %c0_78 = arith.constant 0 : index
    %c0_79 = arith.constant 0 : index
    %251 = vector.load %arg16[%c0_78, %c0_79] : memref<32x32xbf16, #tpu.memory_space<vmem>>, vector<32x32xbf16>
    %cst_80 = arith.constant dense<0.000000e+00> : vector<8x32xf32>
    %252 = tpu.matmul %250, %251, %cst_80 {dimension_numbers = #tpu.dot_dimension_numbers<[1], [0], [0], [1], [0, 0, 1, 1], [], []>} : vector<8x32xbf16>, vector<32x32xbf16>, vector<8x32xf32> -> vector<8x32xf32>
    %c0_81 = arith.constant 0 : index
    %c0_82 = arith.constant 0 : index
    %253 = vector.load %arg17[%c0_81, %c0_82] : memref<1x32xf32, #tpu.memory_space<vmem>>, vector<1x32xf32>
    %254 = vector.broadcast %253 : vector<1x32xf32> to vector<8x32xf32>
    %255 = arith.addf %252, %254 : vector<8x32xf32>
    %256 = arith.addf %48, %255 : vector<8x32xf32>
    %cst_83 = arith.constant dense<0.000000e+00> : vector<8xf32>
    %257 = vector.multi_reduction <add>, %256, %cst_83 [1] : vector<8x32xf32> to vector<8xf32>
    %258 = vector.shape_cast %257 : vector<8xf32> to vector<8x1xf32>
    %cst_84 = arith.constant 3.200000e+01 : f32
    %259 = vector.broadcast %cst_84 : f32 to vector<8x1xf32>
    %260 = arith.divf %258, %259 : vector<8x1xf32>
    %261 = vector.broadcast %260 : vector<8x1xf32> to vector<8x32xf32>
    %262 = arith.subf %256, %261 : vector<8x32xf32>
    %263 = arith.mulf %262, %262 : vector<8x32xf32>
    %cst_85 = arith.constant dense<0.000000e+00> : vector<8xf32>
    %264 = vector.multi_reduction <add>, %263, %cst_85 [1] : vector<8x32xf32> to vector<8xf32>
    %265 = vector.shape_cast %264 : vector<8xf32> to vector<8x1xf32>
    %cst_86 = arith.constant 3.200000e+01 : f32
    %266 = vector.broadcast %cst_86 : f32 to vector<8x1xf32>
    %267 = arith.divf %265, %266 : vector<8x1xf32>
    %268 = vector.broadcast %260 : vector<8x1xf32> to vector<8x32xf32>
    %269 = arith.subf %256, %268 : vector<8x32xf32>
    %cst_87 = arith.constant 9.99999974E-6 : f32
    %270 = vector.broadcast %cst_87 : f32 to vector<8x1xf32>
    %271 = arith.addf %267, %270 : vector<8x1xf32>
    %272 = math.rsqrt %271 : vector<8x1xf32>
    %273 = vector.broadcast %272 : vector<8x1xf32> to vector<8x32xf32>
    %274 = arith.mulf %269, %273 : vector<8x32xf32>
    %275 = vector.extract_strided_slice %2 {offsets = [2, 0], sizes = [1, 32], strides = [1, 1]} : vector<5x32xf32> to vector<1x32xf32>
    %276 = vector.broadcast %275 : vector<1x32xf32> to vector<8x32xf32>
    %277 = arith.mulf %274, %276 : vector<8x32xf32>
    %278 = vector.extract_strided_slice %3 {offsets = [2, 0], sizes = [1, 32], strides = [1, 1]} : vector<5x32xf32> to vector<1x32xf32>
    %279 = vector.broadcast %278 : vector<1x32xf32> to vector<8x32xf32>
    %280 = arith.addf %277, %279 : vector<8x32xf32>
    %281 = arith.truncf %280 : vector<8x32xf32> to vector<8x32xbf16>
    %c0_88 = arith.constant 0 : index
    %c0_89 = arith.constant 0 : index
    %282 = vector.load %arg18[%c0_88, %c0_89] : memref<32x32xbf16, #tpu.memory_space<vmem>>, vector<32x32xbf16>
    %cst_90 = arith.constant dense<0.000000e+00> : vector<8x32xf32>
    %283 = tpu.matmul %281, %282, %cst_90 {dimension_numbers = #tpu.dot_dimension_numbers<[1], [0], [0], [1], [0, 0, 1, 1], [], []>} : vector<8x32xbf16>, vector<32x32xbf16>, vector<8x32xf32> -> vector<8x32xf32>
    %c0_91 = arith.constant 0 : index
    %c0_92 = arith.constant 0 : index
    %284 = vector.load %arg19[%c0_91, %c0_92] : memref<1x32xf32, #tpu.memory_space<vmem>>, vector<1x32xf32>
    %285 = vector.broadcast %284 : vector<1x32xf32> to vector<8x32xf32>
    %286 = arith.addf %283, %285 : vector<8x32xf32>
    %287 = arith.truncf %280 : vector<8x32xf32> to vector<8x32xbf16>
    %c0_93 = arith.constant 0 : index
    %c0_94 = arith.constant 0 : index
    %288 = vector.load %arg20[%c0_93, %c0_94] : memref<32x32xbf16, #tpu.memory_space<vmem>>, vector<32x32xbf16>
    %cst_95 = arith.constant dense<0.000000e+00> : vector<8x32xf32>
    %289 = tpu.matmul %287, %288, %cst_95 {dimension_numbers = #tpu.dot_dimension_numbers<[1], [0], [0], [1], [0, 0, 1, 1], [], []>} : vector<8x32xbf16>, vector<32x32xbf16>, vector<8x32xf32> -> vector<8x32xf32>
    %c0_96 = arith.constant 0 : index
    %c0_97 = arith.constant 0 : index
    %290 = vector.load %arg21[%c0_96, %c0_97] : memref<1x32xf32, #tpu.memory_space<vmem>>, vector<1x32xf32>
    %291 = vector.broadcast %290 : vector<1x32xf32> to vector<8x32xf32>
    %292 = arith.addf %289, %291 : vector<8x32xf32>
    %293 = arith.negf %292 : vector<8x32xf32>
    %294 = math.exp %293 : vector<8x32xf32>
    %cst_98 = arith.constant 1.000000e+00 : f32
    %295 = vector.broadcast %cst_98 : f32 to vector<8x32xf32>
    %296 = arith.addf %295, %294 : vector<8x32xf32>
    %297 = arith.divf %295, %296 : vector<8x32xf32>
    %298 = arith.mulf %286, %297 : vector<8x32xf32>
    %299 = tpu.iota {dimensions = array<i32: 0>} : vector<8x8xi32>
    %300 = tpu.iota {dimensions = array<i32: 1>} : vector<8x8xi32>
    %c0_99 = arith.constant 0 : index
    %c0_100 = arith.constant 0 : index
    %301 = vector.load %arg22[%c0_99, %c0_100] : memref<7x32xf32, #tpu.memory_space<vmem>>, vector<7x32xf32>
    %cst_101 = arith.constant 0.000000e+00 : f32
    %302 = vector.broadcast %cst_101 : f32 to vector<8x32xf32>
    %c-3_i32 = arith.constant -3 : i32
    %303 = vector.broadcast %c-3_i32 : i32 to vector<8x8xi32>
    %304 = arith.addi %299, %303 : vector<8x8xi32>
    %305 = arith.cmpi eq, %300, %304 : vector<8x8xi32>
    %306 = arith.extui %305 : vector<8x8xi1> to vector<8x8xi32>
    %307 = arith.sitofp %306 : vector<8x8xi32> to vector<8x8xf32>
    %cst_102 = arith.constant dense<0.000000e+00> : vector<8x32xf32>
    %308 = tpu.matmul %307, %298, %cst_102 {dimension_numbers = #tpu.dot_dimension_numbers<[1], [0], [0], [1], [0, 0, 1, 1], [], []>} : vector<8x8xf32>, vector<8x32xf32>, vector<8x32xf32> -> vector<8x32xf32>
    %309 = vector.extract_strided_slice %301 {offsets = [0, 0], sizes = [1, 32], strides = [1, 1]} : vector<7x32xf32> to vector<1x32xf32>
    %310 = vector.broadcast %309 : vector<1x32xf32> to vector<8x32xf32>
    %311 = arith.mulf %308, %310 : vector<8x32xf32>
    %312 = arith.addf %302, %311 : vector<8x32xf32>
    %c-2_i32 = arith.constant -2 : i32
    %313 = vector.broadcast %c-2_i32 : i32 to vector<8x8xi32>
    %314 = arith.addi %299, %313 : vector<8x8xi32>
    %315 = arith.cmpi eq, %300, %314 : vector<8x8xi32>
    %316 = arith.extui %315 : vector<8x8xi1> to vector<8x8xi32>
    %317 = arith.sitofp %316 : vector<8x8xi32> to vector<8x8xf32>
    %cst_103 = arith.constant dense<0.000000e+00> : vector<8x32xf32>
    %318 = tpu.matmul %317, %298, %cst_103 {dimension_numbers = #tpu.dot_dimension_numbers<[1], [0], [0], [1], [0, 0, 1, 1], [], []>} : vector<8x8xf32>, vector<8x32xf32>, vector<8x32xf32> -> vector<8x32xf32>
    %319 = vector.extract_strided_slice %301 {offsets = [1, 0], sizes = [1, 32], strides = [1, 1]} : vector<7x32xf32> to vector<1x32xf32>
    %320 = vector.broadcast %319 : vector<1x32xf32> to vector<8x32xf32>
    %321 = arith.mulf %318, %320 : vector<8x32xf32>
    %322 = arith.addf %312, %321 : vector<8x32xf32>
    %c-1_i32 = arith.constant -1 : i32
    %323 = vector.broadcast %c-1_i32 : i32 to vector<8x8xi32>
    %324 = arith.addi %299, %323 : vector<8x8xi32>
    %325 = arith.cmpi eq, %300, %324 : vector<8x8xi32>
    %326 = arith.extui %325 : vector<8x8xi1> to vector<8x8xi32>
    %327 = arith.sitofp %326 : vector<8x8xi32> to vector<8x8xf32>
    %cst_104 = arith.constant dense<0.000000e+00> : vector<8x32xf32>
    %328 = tpu.matmul %327, %298, %cst_104 {dimension_numbers = #tpu.dot_dimension_numbers<[1], [0], [0], [1], [0, 0, 1, 1], [], []>} : vector<8x8xf32>, vector<8x32xf32>, vector<8x32xf32> -> vector<8x32xf32>
    %329 = vector.extract_strided_slice %301 {offsets = [2, 0], sizes = [1, 32], strides = [1, 1]} : vector<7x32xf32> to vector<1x32xf32>
    %330 = vector.broadcast %329 : vector<1x32xf32> to vector<8x32xf32>
    %331 = arith.mulf %328, %330 : vector<8x32xf32>
    %332 = arith.addf %322, %331 : vector<8x32xf32>
    %c0_i32 = arith.constant 0 : i32
    %333 = vector.broadcast %c0_i32 : i32 to vector<8x8xi32>
    %334 = arith.addi %299, %333 : vector<8x8xi32>
    %335 = arith.cmpi eq, %300, %334 : vector<8x8xi32>
    %336 = arith.extui %335 : vector<8x8xi1> to vector<8x8xi32>
    %337 = arith.sitofp %336 : vector<8x8xi32> to vector<8x8xf32>
    %cst_105 = arith.constant dense<0.000000e+00> : vector<8x32xf32>
    %338 = tpu.matmul %337, %298, %cst_105 {dimension_numbers = #tpu.dot_dimension_numbers<[1], [0], [0], [1], [0, 0, 1, 1], [], []>} : vector<8x8xf32>, vector<8x32xf32>, vector<8x32xf32> -> vector<8x32xf32>
    %339 = vector.extract_strided_slice %301 {offsets = [3, 0], sizes = [1, 32], strides = [1, 1]} : vector<7x32xf32> to vector<1x32xf32>
    %340 = vector.broadcast %339 : vector<1x32xf32> to vector<8x32xf32>
    %341 = arith.mulf %338, %340 : vector<8x32xf32>
    %342 = arith.addf %332, %341 : vector<8x32xf32>
    %c1_i32 = arith.constant 1 : i32
    %343 = vector.broadcast %c1_i32 : i32 to vector<8x8xi32>
    %344 = arith.addi %299, %343 : vector<8x8xi32>
    %345 = arith.cmpi eq, %300, %344 : vector<8x8xi32>
    %346 = arith.extui %345 : vector<8x8xi1> to vector<8x8xi32>
    %347 = arith.sitofp %346 : vector<8x8xi32> to vector<8x8xf32>
    %cst_106 = arith.constant dense<0.000000e+00> : vector<8x32xf32>
    %348 = tpu.matmul %347, %298, %cst_106 {dimension_numbers = #tpu.dot_dimension_numbers<[1], [0], [0], [1], [0, 0, 1, 1], [], []>} : vector<8x8xf32>, vector<8x32xf32>, vector<8x32xf32> -> vector<8x32xf32>
    %349 = vector.extract_strided_slice %301 {offsets = [4, 0], sizes = [1, 32], strides = [1, 1]} : vector<7x32xf32> to vector<1x32xf32>
    %350 = vector.broadcast %349 : vector<1x32xf32> to vector<8x32xf32>
    %351 = arith.mulf %348, %350 : vector<8x32xf32>
    %352 = arith.addf %342, %351 : vector<8x32xf32>
    %c2_i32 = arith.constant 2 : i32
    %353 = vector.broadcast %c2_i32 : i32 to vector<8x8xi32>
    %354 = arith.addi %299, %353 : vector<8x8xi32>
    %355 = arith.cmpi eq, %300, %354 : vector<8x8xi32>
    %356 = arith.extui %355 : vector<8x8xi1> to vector<8x8xi32>
    %357 = arith.sitofp %356 : vector<8x8xi32> to vector<8x8xf32>
    %cst_107 = arith.constant dense<0.000000e+00> : vector<8x32xf32>
    %358 = tpu.matmul %357, %298, %cst_107 {dimension_numbers = #tpu.dot_dimension_numbers<[1], [0], [0], [1], [0, 0, 1, 1], [], []>} : vector<8x8xf32>, vector<8x32xf32>, vector<8x32xf32> -> vector<8x32xf32>
    %359 = vector.extract_strided_slice %301 {offsets = [5, 0], sizes = [1, 32], strides = [1, 1]} : vector<7x32xf32> to vector<1x32xf32>
    %360 = vector.broadcast %359 : vector<1x32xf32> to vector<8x32xf32>
    %361 = arith.mulf %358, %360 : vector<8x32xf32>
    %362 = arith.addf %352, %361 : vector<8x32xf32>
    %c3_i32 = arith.constant 3 : i32
    %363 = vector.broadcast %c3_i32 : i32 to vector<8x8xi32>
    %364 = arith.addi %299, %363 : vector<8x8xi32>
    %365 = arith.cmpi eq, %300, %364 : vector<8x8xi32>
    %366 = arith.extui %365 : vector<8x8xi1> to vector<8x8xi32>
    %367 = arith.sitofp %366 : vector<8x8xi32> to vector<8x8xf32>
    %cst_108 = arith.constant dense<0.000000e+00> : vector<8x32xf32>
    %368 = tpu.matmul %367, %298, %cst_108 {dimension_numbers = #tpu.dot_dimension_numbers<[1], [0], [0], [1], [0, 0, 1, 1], [], []>} : vector<8x8xf32>, vector<8x32xf32>, vector<8x32xf32> -> vector<8x32xf32>
    %369 = vector.extract_strided_slice %301 {offsets = [6, 0], sizes = [1, 32], strides = [1, 1]} : vector<7x32xf32> to vector<1x32xf32>
    %370 = vector.broadcast %369 : vector<1x32xf32> to vector<8x32xf32>
    %371 = arith.mulf %368, %370 : vector<8x32xf32>
    %372 = arith.addf %362, %371 : vector<8x32xf32>
    %c0_109 = arith.constant 0 : index
    %c0_110 = arith.constant 0 : index
    %373 = vector.load %arg23[%c0_109, %c0_110] : memref<1x32xf32, #tpu.memory_space<vmem>>, vector<1x32xf32>
    %374 = vector.broadcast %373 : vector<1x32xf32> to vector<8x32xf32>
    %375 = arith.addf %372, %374 : vector<8x32xf32>
    %c0_111 = arith.constant 0 : index
    %c0_112 = arith.constant 0 : index
    %376 = vector.load %arg24[%c0_111, %c0_112] : memref<1x32xf32, #tpu.memory_space<vmem>>, vector<1x32xf32>
    %377 = vector.broadcast %376 : vector<1x32xf32> to vector<8x32xf32>
    %378 = arith.mulf %375, %377 : vector<8x32xf32>
    %c0_113 = arith.constant 0 : index
    %c0_114 = arith.constant 0 : index
    %379 = vector.load %arg25[%c0_113, %c0_114] : memref<1x32xf32, #tpu.memory_space<vmem>>, vector<1x32xf32>
    %380 = vector.broadcast %379 : vector<1x32xf32> to vector<8x32xf32>
    %381 = arith.addf %378, %380 : vector<8x32xf32>
    %382 = arith.negf %381 : vector<8x32xf32>
    %383 = math.exp %382 : vector<8x32xf32>
    %cst_115 = arith.constant 1.000000e+00 : f32
    %384 = vector.broadcast %cst_115 : f32 to vector<8x32xf32>
    %385 = arith.addf %384, %383 : vector<8x32xf32>
    %386 = arith.divf %384, %385 : vector<8x32xf32>
    %387 = arith.mulf %381, %386 : vector<8x32xf32>
    %388 = arith.truncf %387 : vector<8x32xf32> to vector<8x32xbf16>
    %c0_116 = arith.constant 0 : index
    %c0_117 = arith.constant 0 : index
    %389 = vector.load %arg26[%c0_116, %c0_117] : memref<32x32xbf16, #tpu.memory_space<vmem>>, vector<32x32xbf16>
    %cst_118 = arith.constant dense<0.000000e+00> : vector<8x32xf32>
    %390 = tpu.matmul %388, %389, %cst_118 {dimension_numbers = #tpu.dot_dimension_numbers<[1], [0], [0], [1], [0, 0, 1, 1], [], []>} : vector<8x32xbf16>, vector<32x32xbf16>, vector<8x32xf32> -> vector<8x32xf32>
    %c0_119 = arith.constant 0 : index
    %c0_120 = arith.constant 0 : index
    %391 = vector.load %arg27[%c0_119, %c0_120] : memref<1x32xf32, #tpu.memory_space<vmem>>, vector<1x32xf32>
    %392 = vector.broadcast %391 : vector<1x32xf32> to vector<8x32xf32>
    %393 = arith.addf %390, %392 : vector<8x32xf32>
    %c0_121 = arith.constant 0 : index
    %c0_122 = arith.constant 0 : index
    %c0_123 = arith.constant 0 : index
    %394 = vector.load %arg3[%c0_121, %c0_122, %c0_123] : memref<1x8x1xf32, #tpu.memory_space<vmem>>, vector<1x8x1xf32>
    %395 = vector.shape_cast %394 : vector<1x8x1xf32> to vector<8x1xf32>
    %396 = vector.broadcast %395 : vector<8x1xf32> to vector<8x32xf32>
    %397 = arith.mulf %393, %396 : vector<8x32xf32>
    %398 = arith.addf %256, %397 : vector<8x32xf32>
    %cst_124 = arith.constant dense<0.000000e+00> : vector<8xf32>
    %399 = vector.multi_reduction <add>, %398, %cst_124 [1] : vector<8x32xf32> to vector<8xf32>
    %400 = vector.shape_cast %399 : vector<8xf32> to vector<8x1xf32>
    %cst_125 = arith.constant 3.200000e+01 : f32
    %401 = vector.broadcast %cst_125 : f32 to vector<8x1xf32>
    %402 = arith.divf %400, %401 : vector<8x1xf32>
    %403 = vector.broadcast %402 : vector<8x1xf32> to vector<8x32xf32>
    %404 = arith.subf %398, %403 : vector<8x32xf32>
    %405 = arith.mulf %404, %404 : vector<8x32xf32>
    %cst_126 = arith.constant dense<0.000000e+00> : vector<8xf32>
    %406 = vector.multi_reduction <add>, %405, %cst_126 [1] : vector<8x32xf32> to vector<8xf32>
    %407 = vector.shape_cast %406 : vector<8xf32> to vector<8x1xf32>
    %cst_127 = arith.constant 3.200000e+01 : f32
    %408 = vector.broadcast %cst_127 : f32 to vector<8x1xf32>
    %409 = arith.divf %407, %408 : vector<8x1xf32>
    %410 = vector.broadcast %402 : vector<8x1xf32> to vector<8x32xf32>
    %411 = arith.subf %398, %410 : vector<8x32xf32>
    %cst_128 = arith.constant 9.99999974E-6 : f32
    %412 = vector.broadcast %cst_128 : f32 to vector<8x1xf32>
    %413 = arith.addf %409, %412 : vector<8x1xf32>
    %414 = math.rsqrt %413 : vector<8x1xf32>
    %415 = vector.broadcast %414 : vector<8x1xf32> to vector<8x32xf32>
    %416 = arith.mulf %411, %415 : vector<8x32xf32>
    %417 = vector.extract_strided_slice %2 {offsets = [3, 0], sizes = [1, 32], strides = [1, 1]} : vector<5x32xf32> to vector<1x32xf32>
    %418 = vector.broadcast %417 : vector<1x32xf32> to vector<8x32xf32>
    %419 = arith.mulf %416, %418 : vector<8x32xf32>
    %420 = vector.extract_strided_slice %3 {offsets = [3, 0], sizes = [1, 32], strides = [1, 1]} : vector<5x32xf32> to vector<1x32xf32>
    %421 = vector.broadcast %420 : vector<1x32xf32> to vector<8x32xf32>
    %422 = arith.addf %419, %421 : vector<8x32xf32>
    %423 = arith.truncf %422 : vector<8x32xf32> to vector<8x32xbf16>
    %c0_129 = arith.constant 0 : index
    %c0_130 = arith.constant 0 : index
    %424 = vector.load %arg7[%c0_129, %c0_130] : memref<32x64xbf16, #tpu.memory_space<vmem>>, vector<32x64xbf16>
    %cst_131 = arith.constant dense<0.000000e+00> : vector<8x64xf32>
    %425 = tpu.matmul %423, %424, %cst_131 {dimension_numbers = #tpu.dot_dimension_numbers<[1], [0], [0], [1], [0, 0, 1, 1], [], []>} : vector<8x32xbf16>, vector<32x64xbf16>, vector<8x64xf32> -> vector<8x64xf32>
    %c0_132 = arith.constant 0 : index
    %c0_133 = arith.constant 0 : index
    %426 = vector.load %arg8[%c0_132, %c0_133] : memref<1x64xf32, #tpu.memory_space<vmem>>, vector<1x64xf32>
    %427 = vector.broadcast %426 : vector<1x64xf32> to vector<8x64xf32>
    %428 = arith.addf %425, %427 : vector<8x64xf32>
    %429 = arith.negf %428 : vector<8x64xf32>
    %430 = math.exp %429 : vector<8x64xf32>
    %cst_134 = arith.constant 1.000000e+00 : f32
    %431 = vector.broadcast %cst_134 : f32 to vector<8x64xf32>
    %432 = arith.addf %431, %430 : vector<8x64xf32>
    %433 = arith.divf %431, %432 : vector<8x64xf32>
    %434 = arith.mulf %428, %433 : vector<8x64xf32>
    %435 = arith.truncf %434 : vector<8x64xf32> to vector<8x64xbf16>
    %c0_135 = arith.constant 0 : index
    %c0_136 = arith.constant 0 : index
    %436 = vector.load %arg9[%c0_135, %c0_136] : memref<64x32xbf16, #tpu.memory_space<vmem>>, vector<64x32xbf16>
    %cst_137 = arith.constant dense<0.000000e+00> : vector<8x32xf32>
    %437 = tpu.matmul %435, %436, %cst_137 {dimension_numbers = #tpu.dot_dimension_numbers<[1], [0], [0], [1], [0, 0, 1, 1], [], []>} : vector<8x64xbf16>, vector<64x32xbf16>, vector<8x32xf32> -> vector<8x32xf32>
    %c0_138 = arith.constant 0 : index
    %c0_139 = arith.constant 0 : index
    %438 = vector.load %arg10[%c0_138, %c0_139] : memref<1x32xf32, #tpu.memory_space<vmem>>, vector<1x32xf32>
    %439 = vector.broadcast %438 : vector<1x32xf32> to vector<8x32xf32>
    %440 = arith.addf %437, %439 : vector<8x32xf32>
    %cst_140 = arith.constant 5.000000e-01 : f32
    %441 = vector.broadcast %cst_140 : f32 to vector<8x32xf32>
    %442 = arith.mulf %441, %440 : vector<8x32xf32>
    %443 = arith.addf %398, %442 : vector<8x32xf32>
    %cst_141 = arith.constant dense<0.000000e+00> : vector<8xf32>
    %444 = vector.multi_reduction <add>, %443, %cst_141 [1] : vector<8x32xf32> to vector<8xf32>
    %445 = vector.shape_cast %444 : vector<8xf32> to vector<8x1xf32>
    %cst_142 = arith.constant 3.200000e+01 : f32
    %446 = vector.broadcast %cst_142 : f32 to vector<8x1xf32>
    %447 = arith.divf %445, %446 : vector<8x1xf32>
    %448 = vector.broadcast %447 : vector<8x1xf32> to vector<8x32xf32>
    %449 = arith.subf %443, %448 : vector<8x32xf32>
    %450 = arith.mulf %449, %449 : vector<8x32xf32>
    %cst_143 = arith.constant dense<0.000000e+00> : vector<8xf32>
    %451 = vector.multi_reduction <add>, %450, %cst_143 [1] : vector<8x32xf32> to vector<8xf32>
    %452 = vector.shape_cast %451 : vector<8xf32> to vector<8x1xf32>
    %cst_144 = arith.constant 3.200000e+01 : f32
    %453 = vector.broadcast %cst_144 : f32 to vector<8x1xf32>
    %454 = arith.divf %452, %453 : vector<8x1xf32>
    %455 = vector.broadcast %447 : vector<8x1xf32> to vector<8x32xf32>
    %456 = arith.subf %443, %455 : vector<8x32xf32>
    %cst_145 = arith.constant 9.99999974E-6 : f32
    %457 = vector.broadcast %cst_145 : f32 to vector<8x1xf32>
    %458 = arith.addf %454, %457 : vector<8x1xf32>
    %459 = math.rsqrt %458 : vector<8x1xf32>
    %460 = vector.broadcast %459 : vector<8x1xf32> to vector<8x32xf32>
    %461 = arith.mulf %456, %460 : vector<8x32xf32>
    %462 = vector.extract_strided_slice %2 {offsets = [4, 0], sizes = [1, 32], strides = [1, 1]} : vector<5x32xf32> to vector<1x32xf32>
    %463 = vector.broadcast %462 : vector<1x32xf32> to vector<8x32xf32>
    %464 = arith.mulf %461, %463 : vector<8x32xf32>
    %465 = vector.extract_strided_slice %3 {offsets = [4, 0], sizes = [1, 32], strides = [1, 1]} : vector<5x32xf32> to vector<1x32xf32>
    %466 = vector.broadcast %465 : vector<1x32xf32> to vector<8x32xf32>
    %467 = arith.addf %464, %466 : vector<8x32xf32>
    %c0_146 = arith.constant 0 : index
    %c0_147 = arith.constant 0 : index
    %c0_148 = arith.constant 0 : index
    %468 = vector.load %arg28[%c0_146, %c0_147, %c0_148] : memref<1x8x32xf32, #tpu.memory_space<vmem>>, vector<1x8x32xf32>
    %469 = vector.shape_cast %468 : vector<1x8x32xf32> to vector<8x32xf32>
    %470 = vector.shape_cast %467 : vector<8x32xf32> to vector<1x8x32xf32>
    tpu.vector_store %arg28[%c0_146, %c0_147, %c0_148], %470 {strides = array<i32>} : memref<1x8x32xf32, #tpu.memory_space<vmem>>, vector<1x8x32xf32>,
    return
  }
  func.func @transform_0(%arg0: i32) -> (i32, i32, i32) {
    %c0_i32 = arith.constant 0 : i32
    %c0_i32_0 = arith.constant 0 : i32
    %c0_i32_1 = arith.constant 0 : i32
    return %arg0, %c0_i32, %c0_i32_0 : i32, i32, i32
  }
  func.func @transform_1(%arg0: i32) -> (i32, i32, i32) {
    %c0_i32 = arith.constant 0 : i32
    %c0_i32_0 = arith.constant 0 : i32
    %c0_i32_1 = arith.constant 0 : i32
    return %arg0, %c0_i32, %c0_i32_0 : i32, i32, i32
  }
  func.func @transform_2(%arg0: i32) -> (i32, i32, i32) {
    %c0_i32 = arith.constant 0 : i32
    %c0_i32_0 = arith.constant 0 : i32
    %c0_i32_1 = arith.constant 0 : i32
    return %arg0, %c0_i32, %c0_i32_0 : i32, i32, i32
  }
  func.func @transform_3(%arg0: i32) -> (i32, i32, i32) {
    %c0_i32 = arith.constant 0 : i32
    %c0_i32_0 = arith.constant 0 : i32
    %c0_i32_1 = arith.constant 0 : i32
    %c0_i32_2 = arith.constant 0 : i32
    return %c0_i32, %c0_i32_0, %c0_i32_1 : i32, i32, i32
  }
  func.func @transform_4(%arg0: i32) -> (i32, i32) {
    %c0_i32 = arith.constant 0 : i32
    %c0_i32_0 = arith.constant 0 : i32
    %c0_i32_1 = arith.constant 0 : i32
    return %c0_i32, %c0_i32_0 : i32, i32
  }
  func.func @transform_5(%arg0: i32) -> (i32, i32) {
    %c0_i32 = arith.constant 0 : i32
    %c0_i32_0 = arith.constant 0 : i32
    %c0_i32_1 = arith.constant 0 : i32
    return %c0_i32, %c0_i32_0 : i32, i32
  }
  func.func @transform_6(%arg0: i32) -> (i32, i32) {
    %c0_i32 = arith.constant 0 : i32
    %c0_i32_0 = arith.constant 0 : i32
    %c0_i32_1 = arith.constant 0 : i32
    return %c0_i32, %c0_i32_0 : i32, i32
  }
  func.func @transform_7(%arg0: i32) -> (i32, i32) {
    %c0_i32 = arith.constant 0 : i32
    %c0_i32_0 = arith.constant 0 : i32
    %c0_i32_1 = arith.constant 0 : i32
    return %c0_i32, %c0_i32_0 : i32, i32
  }
  func.func @transform_8(%arg0: i32) -> (i32, i32) {
    %c0_i32 = arith.constant 0 : i32
    %c0_i32_0 = arith.constant 0 : i32
    %c0_i32_1 = arith.constant 0 : i32
    return %c0_i32, %c0_i32_0 : i32, i32
  }
  func.func @transform_9(%arg0: i32) -> (i32, i32) {
    %c0_i32 = arith.constant 0 : i32
    %c0_i32_0 = arith.constant 0 : i32
    %c0_i32_1 = arith.constant 0 : i32
    return %c0_i32, %c0_i32_0 : i32, i32
  }
  func.func @transform_10(%arg0: i32) -> (i32, i32) {
    %c0_i32 = arith.constant 0 : i32
    %c0_i32_0 = arith.constant 0 : i32
    %c0_i32_1 = arith.constant 0 : i32
    return %c0_i32, %c0_i32_0 : i32, i32
  }
  func.func @transform_11(%arg0: i32) -> (i32, i32) {
    %c0_i32 = arith.constant 0 : i32
    %c0_i32_0 = arith.constant 0 : i32
    %c0_i32_1 = arith.constant 0 : i32
    return %c0_i32, %c0_i32_0 : i32, i32
  }
  func.func @transform_12(%arg0: i32) -> (i32, i32) {
    %c0_i32 = arith.constant 0 : i32
    %c0_i32_0 = arith.constant 0 : i32
    %c0_i32_1 = arith.constant 0 : i32
    return %c0_i32, %c0_i32_0 : i32, i32
  }
  func.func @transform_13(%arg0: i32) -> (i32, i32) {
    %c0_i32 = arith.constant 0 : i32
    %c0_i32_0 = arith.constant 0 : i32
    %c0_i32_1 = arith.constant 0 : i32
    return %c0_i32, %c0_i32_0 : i32, i32
  }
  func.func @transform_14(%arg0: i32) -> (i32, i32) {
    %c0_i32 = arith.constant 0 : i32
    %c0_i32_0 = arith.constant 0 : i32
    %c0_i32_1 = arith.constant 0 : i32
    return %c0_i32, %c0_i32_0 : i32, i32
  }
  func.func @transform_15(%arg0: i32) -> (i32, i32) {
    %c0_i32 = arith.constant 0 : i32
    %c0_i32_0 = arith.constant 0 : i32
    %c0_i32_1 = arith.constant 0 : i32
    return %c0_i32, %c0_i32_0 : i32, i32
  }
  func.func @transform_16(%arg0: i32) -> (i32, i32) {
    %c0_i32 = arith.constant 0 : i32
    %c0_i32_0 = arith.constant 0 : i32
    %c0_i32_1 = arith.constant 0 : i32
    return %c0_i32, %c0_i32_0 : i32, i32
  }
  func.func @transform_17(%arg0: i32) -> (i32, i32) {
    %c0_i32 = arith.constant 0 : i32
    %c0_i32_0 = arith.constant 0 : i32
    %c0_i32_1 = arith.constant 0 : i32
    return %c0_i32, %c0_i32_0 : i32, i32
  }
  func.func @transform_18(%arg0: i32) -> (i32, i32) {
    %c0_i32 = arith.constant 0 : i32
    %c0_i32_0 = arith.constant 0 : i32
    %c0_i32_1 = arith.constant 0 : i32
    return %c0_i32, %c0_i32_0 : i32, i32
  }
  func.func @transform_19(%arg0: i32) -> (i32, i32) {
    %c0_i32 = arith.constant 0 : i32
    %c0_i32_0 = arith.constant 0 : i32
    %c0_i32_1 = arith.constant 0 : i32
    return %c0_i32, %c0_i32_0 : i32, i32
  }
  func.func @transform_20(%arg0: i32) -> (i32, i32) {
    %c0_i32 = arith.constant 0 : i32
    %c0_i32_0 = arith.constant 0 : i32
    %c0_i32_1 = arith.constant 0 : i32
    return %c0_i32, %c0_i32_0 : i32, i32
  }
  func.func @transform_21(%arg0: i32) -> (i32, i32) {
    %c0_i32 = arith.constant 0 : i32
    %c0_i32_0 = arith.constant 0 : i32
    %c0_i32_1 = arith.constant 0 : i32
    return %c0_i32, %c0_i32_0 : i32, i32
  }
  func.func @transform_22(%arg0: i32) -> (i32, i32) {
    %c0_i32 = arith.constant 0 : i32
    %c0_i32_0 = arith.constant 0 : i32
    %c0_i32_1 = arith.constant 0 : i32
    return %c0_i32, %c0_i32_0 : i32, i32
  }
  func.func @transform_23(%arg0: i32) -> (i32, i32) {
    %c0_i32 = arith.constant 0 : i32
    %c0_i32_0 = arith.constant 0 : i32
    %c0_i32_1 = arith.constant 0 : i32
    return %c0_i32, %c0_i32_0 : i32, i32
  }
  func.func @transform_24(%arg0: i32) -> (i32, i32) {
    %c0_i32 = arith.constant 0 : i32
    %c0_i32_0 = arith.constant 0 : i32
    %c0_i32_1 = arith.constant 0 : i32
    return %c0_i32, %c0_i32_0 : i32, i32
  }
  func.func @transform_25(%arg0: i32) -> (i32, i32) {
    %c0_i32 = arith.constant 0 : i32
    %c0_i32_0 = arith.constant 0 : i32
    %c0_i32_1 = arith.constant 0 : i32
    return %c0_i32, %c0_i32_0 : i32, i32
  }
  func.func @transform_26(%arg0: i32) -> (i32, i32) {
    %c0_i32 = arith.constant 0 : i32
    %c0_i32_0 = arith.constant 0 : i32
    %c0_i32_1 = arith.constant 0 : i32
    return %c0_i32, %c0_i32_0 : i32, i32
  }
  func.func @transform_27(%arg0: i32) -> (i32, i32, i32) {
    %c0_i32 = arith.constant 0 : i32
    %c0_i32_0 = arith.constant 0 : i32
    %c0_i32_1 = arith.constant 0 : i32
    return %arg0, %c0_i32, %c0_i32_0 : i32, i32, i32
  }
}

</mosaic_0001>

<llo_original>
// kernel: _lambda_.6
$region0: #{_lambda_.6}
  #allocation0 [shape = 'u32[]', space=smem, size = 0x4, offset = 0x4, fixed_abs, tag = 'smem constant byte address 0x4 - core index']
  #allocation1 [shape = 'u32[144,128]{1,0:T(1,128)}', space=vmem, size = 0x12000, scoped, tag = 'internal scratch']
  %s0 = inlined_call_operand.vmem [shape: f32[340,9], index: 0, kind: input, shape index: {}]
  %s1 = inlined_call_operand.vmem [shape: f32[9,32], index: 1, kind: input, shape index: {}]
  %s2 = inlined_call_operand.vmem [shape: f32[1,32], index: 2, kind: input, shape index: {}]
  %s3 = inlined_call_operand.vmem [shape: f32[340,32], index: 3, kind: output, shape index: {}]
  %s4 = sld [smem:[#allocation0]]
  $region22: #{_lambda_.6} parent=0
    _
  %s6 = ssub.s32 1, %s4
  %s7 = scalar_select 0, %s6, %s4
  // Predicated region
  $region2: #{_lambda_.6} parent=0 // pred_check
    _
  $region3: #{_lambda_.6} parent=0 // pred_check_branch
    %9 = sbr.rel (0) target = $region5
  $region4: #{_lambda_.6} parent=0 // pred_region
    _
  $region5: #{_lambda_.6} parent=0 // pred_fallthru
    _
  // Predicated region
  $region6: #{_lambda_.6} parent=0 // pred_check
    _
  $region7: #{_lambda_.6} parent=0 // pred_check_branch
    %11 = sbr.rel (0) target = $region9
  $region8: #{_lambda_.6} parent=0 // pred_region
    _
  $region9: #{_lambda_.6} parent=0 // pred_fallthru
    _
  // Predicated region
  $region10: #{_lambda_.6} parent=0 // pred_check
    _
  $region11: #{_lambda_.6} parent=0 // pred_check_branch
    %13 = sbr.rel (0) target = $region13
  $region12: #{_lambda_.6} parent=0 // pred_region
    _
  $region13: #{_lambda_.6} parent=0 // pred_fallthru
    _
  %v14 = vld [vmem:[%s0] sm:$0xff]
  %v15 = vld [vmem:[%s0 + $0x8] sm:$0xff]
  %v16 = vld [vmem:[%s0 + $0x10] sm:$0xff]
  %v17 = vld [vmem:[%s0 + $0x18] sm:$0xff]
  %v18 = vld [vmem:[%s0 + $0x20] sm:$0xff]
  %v19 = vld [vmem:[%s0 + $0x28] sm:$0xff]
  %v20 = vld [vmem:[%s0 + $0x30] sm:$0xff]
  %v21 = vld [vmem:[%s0 + $0x38] sm:$0xff]
  %v22 = vld [vmem:[%s0 + $0x40] sm:$0xff]
  %v23 = vld [vmem:[%s0 + $0x48] sm:$0xff]
  %v24 = vld [vmem:[%s0 + $0x50] sm:$0xff]
  %v25 = vld [vmem:[%s0 + $0x58] sm:$0xff]
  %v26 = vld [vmem:[%s0 + $0x60] sm:$0xff]
  %v27 = vld [vmem:[%s0 + $0x68] sm:$0xff]
  %v28 = vld [vmem:[%s0 + $0x70] sm:$0xff]
  %v29 = vld [vmem:[%s0 + $0x78] sm:$0xff]
  %v30 = vld [vmem:[%s0 + $0x80] sm:$0xff]
  %v31 = vld [vmem:[%s0 + $0x88] sm:$0xff]
  %v32 = vld [vmem:[%s0 + $0x90] sm:$0xff]
  %v33 = vld [vmem:[%s0 + $0x98] sm:$0xff]
  %v34 = vld [vmem:[%s0 + $0xa0] sm:$0xff]
  %v35 = vld [vmem:[%s0 + $0xa8] sm:$0xff]
  %v36 = vld [vmem:[%s0 + $0xb0] sm:$0xff]
  %v37 = vld [vmem:[%s0 + $0xb8] sm:$0xff]
  %v38 = vld [vmem:[%s0 + $0xc0] sm:$0xff]
  %v39 = vld [vmem:[%s0 + $0xc8] sm:$0xff]
  %v40 = vld [vmem:[%s0 + $0xd0] sm:$0xff]
  %v41 = vld [vmem:[%s0 + $0xd8] sm:$0xff]
  %v42 = vld [vmem:[%s0 + $0xe0] sm:$0xff]
  %v43 = vld [vmem:[%s0 + $0xe8] sm:$0xff]
  %v44 = vld [vmem:[%s0 + $0xf0] sm:$0xff]
  %v45 = vld [vmem:[%s0 + $0xf8] sm:$0xff]
  %v46 = vld [vmem:[%s0 + $0x100] sm:$0xff]
  %v47 = vld [vmem:[%s0 + $0x108] sm:$0xff]
  %v48 = vld [vmem:[%s0 + $0x110] sm:$0xff]
  %v49 = vld [vmem:[%s0 + $0x118] sm:$0xff]
  %v50 = vld [vmem:[%s0 + $0x120] sm:$0xff]
  %v51 = vld [vmem:[%s0 + $0x128] sm:$0xff]
  %v52 = vld [vmem:[%s0 + $0x130] sm:$0xff]
  %v53 = vld [vmem:[%s0 + $0x138] sm:$0xff]
  %v54 = vld [vmem:[%s0 + $0x140] sm:$0xff]
  %v55 = vld [vmem:[%s0 + $0x148] sm:$0xff]
  %v56 = vld [vmem:[%s0 + $0x150] sm:$0xf]
  %v57 = vld [vmem:[%s1] sm:$0xff]
  %v58 = vld [vmem:[%s1 + $0x8] sm:$0x1]
  %v59 = vld [vmem:[%s2] sm:$0x1]
  %v61 = vlaneseq
  %v62 = vshrl.u32 %v61, 7
  %v63 = vsub.s32 0, %v62
  %v64 = vrot.slane %v59, %v63
  %vm66 = vcmask 72704
  %v68 = vsel %vm66, %v14, 0
  %v71 = vsel %vm66, %v15, 0
  %v74 = vsel %vm66, %v16, 0
  %v77 = vsel %vm66, %v17, 0
  %v80 = vsel %vm66, %v18, 0
  %v83 = vsel %vm66, %v19, 0
  %v86 = vsel %vm66, %v20, 0
  %v89 = vsel %vm66, %v21, 0
  %v92 = vsel %vm66, %v22, 0
  %v95 = vsel %vm66, %v23, 0
  %v98 = vsel %vm66, %v24, 0
  %v101 = vsel %vm66, %v25, 0
  %v104 = vsel %vm66, %v26, 0
  %v107 = vsel %vm66, %v27, 0
  %v110 = vsel %vm66, %v28, 0
  %v113 = vsel %vm66, %v29, 0
  %v116 = vsel %vm66, %v30, 0
  %v119 = vsel %vm66, %v31, 0
  %v122 = vsel %vm66, %v32, 0
  %v125 = vsel %vm66, %v33, 0
  %v128 = vsel %vm66, %v34, 0
  %v131 = vsel %vm66, %v35, 0
  %v134 = vsel %vm66, %v36, 0
  %v137 = vsel %vm66, %v37, 0
  %v140 = vsel %vm66, %v38, 0
  %v143 = vsel %vm66, %v39, 0
  %v146 = vsel %vm66, %v40, 0
  %v149 = vsel %vm66, %v41, 0
  %v152 = vsel %vm66, %v42, 0
  %v155 = vsel %vm66, %v43, 0
  %v158 = vsel %vm66, %v44, 0
  %v161 = vsel %vm66, %v45, 0
  %v164 = vsel %vm66, %v46, 0
  %v167 = vsel %vm66, %v47, 0
  %v170 = vsel %vm66, %v48, 0
  %v173 = vsel %vm66, %v49, 0
  %v176 = vsel %vm66, %v50, 0
  %v179 = vsel %vm66, %v51, 0
  %v182 = vsel %vm66, %v52, 0
  %v185 = vsel %vm66, %v53, 0
  %v188 = vsel %vm66, %v54, 0
  %v191 = vsel %vm66, %v55, 0
  %v194 = vsel %vm66, %v56, 0
  %vm196 = vcmask 1040384
  %v198 = vsel %vm196, %v58, 0
  %200 = vmatprep.subr.mxu0 0.0
  %201 = vmatpush1.msra.mxu0 %v57
  %202 = vmatprep.subr.mxu0 0.0
  %203 = vmatpush1.msra.mxu0 %v198
  %204 = vmatprep.subr.mxu0 0.0
  %205 = vmatpush1.msra.mxu0 0.0
  %206 = vmatprep.subr.mxu0 0.0
  %207 = vmatpush1.msra.mxu0 0.0
  %208 = vmatprep.subr.mxu0 0.0
  %209 = vmatpush1.msra.mxu0 0.0
  %210 = vmatprep.subr.mxu0 0.0
  %211 = vmatpush1.msra.mxu0 0.0
  %212 = vmatprep.subr.mxu0 0.0
  %213 = vmatpush1.msra.mxu0 0.0
  %214 = vmatprep.subr.mxu0 0.0
  %215 = vmatpush1.msra.mxu0 0.0
  %216 = vmatprep.subr.mxu0 0.0
  %217 = vmatpush1.msra.mxu0 0.0
  %218 = vmatprep.subr.mxu0 0.0
  %219 = vmatpush1.msra.mxu0 0.0
  %220 = vmatprep.subr.mxu0 0.0
  %221 = vmatpush1.msra.mxu0 0.0
  %222 = vmatprep.subr.mxu0 0.0
  %223 = vmatpush1.msra.mxu0 0.0
  %224 = vmatprep.subr.mxu0 0.0
  %225 = vmatpush1.msra.mxu0 0.0
  %226 = vmatprep.subr.mxu0 0.0
  %227 = vmatpush1.msra.mxu0 0.0
  %228 = vmatprep.subr.mxu0 0.0
  %229 = vmatpush1.msra.mxu0 0.0
  %230 = vmatprep.subr.mxu0 0.0
  %231 = vmatpush1.msra.mxu0 0.0
  %232 = vmatprep.subr.mxu0 0.0
  %233 = vmatpush1.msra.mxu0 0.0
  %234 = vmatprep.subr.mxu0 0.0
  %235 = vmatpush1.msra.mxu0 0.0
  %236 = vmatprep.subr.mxu0 0.0
  %237 = vmatpush1.msra.mxu0 0.0
  %238 = vmatprep.subr.mxu0 0.0
  %239 = vmatpush1.msra.mxu0 0.0
  %240 = vmatprep.subr.mxu0 0.0
  %241 = vmatpush1.msra.mxu0 0.0
  %242 = vmatprep.subr.mxu0 0.0
  %243 = vmatpush1.msra.mxu0 0.0
  %244 = vmatprep.subr.mxu0 0.0
  %245 = vmatpush1.msra.mxu0 0.0
  %246 = vmatprep.subr.mxu0 0.0
  %247 = vmatpush1.msra.mxu0 0.0
  %248 = vmatprep.subr.mxu0 0.0
  %249 = vmatpush1.msra.mxu0 0.0
  %250 = vmatprep.subr.mxu0 0.0
  %251 = vmatpush1.msra.mxu0 0.0
  %252 = vmatprep.subr.mxu0 0.0
  %253 = vmatpush1.msra.mxu0 0.0
  %254 = vmatprep.subr.mxu0 0.0
  %255 = vmatpush1.msra.mxu0 0.0
  %256 = vmatprep.subr.mxu0 0.0
  %257 = vmatpush1.msra.mxu0 0.0
  %258 = vmatprep.subr.mxu0 0.0
  %259 = vmatpush1.msra.mxu0 0.0
  %260 = vmatprep.subr.mxu0 0.0
  %261 = vmatpush1.msra.mxu0 0.0
  %262 = vmatprep.subr.mxu0 0.0
  %263 = vmatpush1.msra.mxu0 0.0
  %264 = vmatprep.mubr.f32.mxu0 0.0
  %265 = vmatmul.mubr.f32.gmra.mrb[0].mxu0 %v68
  %v266 = vpop.f32.mrb[0].mxu0
  %v267 = vadd.f32 %v64, %v266
  %v268 = vpop.f32.mrb[0].mxu0
  %269 = vmatprep.mubr.f32.mxu0 0.0
  %270 = vmatmul.mubr.f32.gmra.mrb[0].mxu0 %v71
  %v271 = vpop.f32.mrb[0].mxu0
  %v272 = vadd.f32 %v64, %v271
  %v273 = vpop.f32.mrb[0].mxu0
  %274 = vmatprep.mubr.f32.mxu0 0.0
  %275 = vmatmul.mubr.f32.gmra.mrb[0].mxu0 %v74
  %v276 = vpop.f32.mrb[0].mxu0
  %v277 = vadd.f32 %v64, %v276
  %v278 = vpop.f32.mrb[0].mxu0
  %279 = vmatprep.mubr.f32.mxu0 0.0
  %280 = vmatmul.mubr.f32.gmra.mrb[0].mxu0 %v77
  %v281 = vpop.f32.mrb[0].mxu0
  %v282 = vadd.f32 %v64, %v281
  %v283 = vpop.f32.mrb[0].mxu0
  %284 = vmatprep.mubr.f32.mxu0 0.0
  %285 = vmatmul.mubr.f32.gmra.mrb[0].mxu0 %v80
  %v286 = vpop.f32.mrb[0].mxu0
  %v287 = vadd.f32 %v64, %v286
  %v288 = vpop.f32.mrb[0].mxu0
  %289 = vmatprep.mubr.f32.mxu0 0.0
  %290 = vmatmul.mubr.f32.gmra.mrb[0].mxu0 %v83
  %v291 = vpop.f32.mrb[0].mxu0
  %v292 = vadd.f32 %v64, %v291
  %v293 = vpop.f32.mrb[0].mxu0
  %294 = vmatprep.mubr.f32.mxu0 0.0
  %295 = vmatmul.mubr.f32.gmra.mrb[0].mxu0 %v86
  %v296 = vpop.f32.mrb[0].mxu0
  %v297 = vadd.f32 %v64, %v296
  %v298 = vpop.f32.mrb[0].mxu0
  %299 = vmatprep.mubr.f32.mxu0 0.0
  %300 = vmatmul.mubr.f32.gmra.mrb[0].mxu0 %v89
  %v301 = vpop.f32.mrb[0].mxu0
  %v302 = vadd.f32 %v64, %v301
  %v303 = vpop.f32.mrb[0].mxu0
  %304 = vmatprep.mubr.f32.mxu0 0.0
  %305 = vmatmul.mubr.f32.gmra.mrb[0].mxu0 %v92
  %v306 = vpop.f32.mrb[0].mxu0
  %v307 = vadd.f32 %v64, %v306
  %v308 = vpop.f32.mrb[0].mxu0
  %309 = vmatprep.mubr.f32.mxu0 0.0
  %310 = vmatmul.mubr.f32.gmra.mrb[0].mxu0 %v95
  %v311 = vpop.f32.mrb[0].mxu0
  %v312 = vadd.f32 %v64, %v311
  %v313 = vpop.f32.mrb[0].mxu0
  %314 = vmatprep.mubr.f32.mxu0 0.0
  %315 = vmatmul.mubr.f32.gmra.mrb[0].mxu0 %v98
  %v316 = vpop.f32.mrb[0].mxu0
  %v317 = vadd.f32 %v64, %v316
  %v318 = vpop.f32.mrb[0].mxu0
  %319 = vmatprep.mubr.f32.mxu0 0.0
  %320 = vmatmul.mubr.f32.gmra.mrb[0].mxu0 %v101
  %v321 = vpop.f32.mrb[0].mxu0
  %v322 = vadd.f32 %v64, %v321
  %v323 = vpop.f32.mrb[0].mxu0
  %324 = vmatprep.mubr.f32.mxu0 0.0
  %325 = vmatmul.mubr.f32.gmra.mrb[0].mxu0 %v104
  %v326 = vpop.f32.mrb[0].mxu0
  %v327 = vadd.f32 %v64, %v326
  %v328 = vpop.f32.mrb[0].mxu0
  %329 = vmatprep.mubr.f32.mxu0 0.0
  %330 = vmatmul.mubr.f32.gmra.mrb[0].mxu0 %v107
  %v331 = vpop.f32.mrb[0].mxu0
  %v332 = vadd.f32 %v64, %v331
  %v333 = vpop.f32.mrb[0].mxu0
  %334 = vmatprep.mubr.f32.mxu0 0.0
  %335 = vmatmul.mubr.f32.gmra.mrb[0].mxu0 %v110
  %v336 = vpop.f32.mrb[0].mxu0
  %v337 = vadd.f32 %v64, %v336
  %v338 = vpop.f32.mrb[0].mxu0
  %339 = vmatprep.mubr.f32.mxu0 0.0
  %340 = vmatmul.mubr.f32.gmra.mrb[0].mxu0 %v113
  %v341 = vpop.f32.mrb[0].mxu0
  %v342 = vadd.f32 %v64, %v341
  %v343 = vpop.f32.mrb[0].mxu0
  %344 = vmatprep.mubr.f32.mxu0 0.0
  %345 = vmatmul.mubr.f32.gmra.mrb[0].mxu0 %v116
  %v346 = vpop.f32.mrb[0].mxu0
  %v347 = vadd.f32 %v64, %v346
  %v348 = vpop.f32.mrb[0].mxu0
  %349 = vmatprep.mubr.f32.mxu0 0.0
  %350 = vmatmul.mubr.f32.gmra.mrb[0].mxu0 %v119
  %v351 = vpop.f32.mrb[0].mxu0
  %v352 = vadd.f32 %v64, %v351
  %v353 = vpop.f32.mrb[0].mxu0
  %354 = vmatprep.mubr.f32.mxu0 0.0
  %355 = vmatmul.mubr.f32.gmra.mrb[0].mxu0 %v122
  %v356 = vpop.f32.mrb[0].mxu0
  %v357 = vadd.f32 %v64, %v356
  %v358 = vpop.f32.mrb[0].mxu0
  %359 = vmatprep.mubr.f32.mxu0 0.0
  %360 = vmatmul.mubr.f32.gmra.mrb[0].mxu0 %v125
  %v361 = vpop.f32.mrb[0].mxu0
  %v362 = vadd.f32 %v64, %v361
  %v363 = vpop.f32.mrb[0].mxu0
  %364 = vmatprep.mubr.f32.mxu0 0.0
  %365 = vmatmul.mubr.f32.gmra.mrb[0].mxu0 %v128
  %v366 = vpop.f32.mrb[0].mxu0
  %v367 = vadd.f32 %v64, %v366
  %v368 = vpop.f32.mrb[0].mxu0
  %369 = vmatprep.mubr.f32.mxu0 0.0
  %370 = vmatmul.mubr.f32.gmra.mrb[0].mxu0 %v131
  %v371 = vpop.f32.mrb[0].mxu0
  %v372 = vadd.f32 %v64, %v371
  %v373 = vpop.f32.mrb[0].mxu0
  %374 = vmatprep.mubr.f32.mxu0 0.0
  %375 = vmatmul.mubr.f32.gmra.mrb[0].mxu0 %v134
  %v376 = vpop.f32.mrb[0].mxu0
  %v377 = vadd.f32 %v64, %v376
  %v378 = vpop.f32.mrb[0].mxu0
  %379 = vmatprep.mubr.f32.mxu0 0.0
  %380 = vmatmul.mubr.f32.gmra.mrb[0].mxu0 %v137
  %v381 = vpop.f32.mrb[0].mxu0
  %v382 = vadd.f32 %v64, %v381
  %v383 = vpop.f32.mrb[0].mxu0
  %384 = vmatprep.mubr.f32.mxu0 0.0
  %385 = vmatmul.mubr.f32.gmra.mrb[0].mxu0 %v140
  %v386 = vpop.f32.mrb[0].mxu0
  %v387 = vadd.f32 %v64, %v386
  %v388 = vpop.f32.mrb[0].mxu0
  %389 = vmatprep.mubr.f32.mxu0 0.0
  %390 = vmatmul.mubr.f32.gmra.mrb[0].mxu0 %v143
  %v391 = vpop.f32.mrb[0].mxu0
  %v392 = vadd.f32 %v64, %v391
  %v393 = vpop.f32.mrb[0].mxu0
  %394 = vmatprep.mubr.f32.mxu0 0.0
  %395 = vmatmul.mubr.f32.gmra.mrb[0].mxu0 %v146
  %v396 = vpop.f32.mrb[0].mxu0
  %v397 = vadd.f32 %v64, %v396
  %v398 = vpop.f32.mrb[0].mxu0
  %399 = vmatprep.mubr.f32.mxu0 0.0
  %400 = vmatmul.mubr.f32.gmra.mrb[0].mxu0 %v149
  %v401 = vpop.f32.mrb[0].mxu0
  %v402 = vadd.f32 %v64, %v401
  %v403 = vpop.f32.mrb[0].mxu0
  %404 = vmatprep.mubr.f32.mxu0 0.0
  %405 = vmatmul.mubr.f32.gmra.mrb[0].mxu0 %v152
  %v406 = vpop.f32.mrb[0].mxu0
  %v407 = vadd.f32 %v64, %v406
  %v408 = vpop.f32.mrb[0].mxu0
  %409 = vmatprep.mubr.f32.mxu0 0.0
  %410 = vmatmul.mubr.f32.gmra.mrb[0].mxu0 %v155
  %v411 = vpop.f32.mrb[0].mxu0
  %v412 = vadd.f32 %v64, %v411
  %v413 = vpop.f32.mrb[0].mxu0
  %414 = vmatprep.mubr.f32.mxu0 0.0
  %415 = vmatmul.mubr.f32.gmra.mrb[0].mxu0 %v158
  %v416 = vpop.f32.mrb[0].mxu0
  %v417 = vadd.f32 %v64, %v416
  %v418 = vpop.f32.mrb[0].mxu0
  %419 = vmatprep.mubr.f32.mxu0 0.0
  %420 = vmatmul.mubr.f32.gmra.mrb[0].mxu0 %v161
  %v421 = vpop.f32.mrb[0].mxu0
  %v422 = vadd.f32 %v64, %v421
  %v423 = vpop.f32.mrb[0].mxu0
  %424 = vmatprep.mubr.f32.mxu0 0.0
  %425 = vmatmul.mubr.f32.gmra.mrb[0].mxu0 %v164
  %v426 = vpop.f32.mrb[0].mxu0
  %v427 = vadd.f32 %v64, %v426
  %v428 = vpop.f32.mrb[0].mxu0
  %429 = vmatprep.mubr.f32.mxu0 0.0
  %430 = vmatmul.mubr.f32.gmra.mrb[0].mxu0 %v167
  %v431 = vpop.f32.mrb[0].mxu0
  %v432 = vadd.f32 %v64, %v431
  %v433 = vpop.f32.mrb[0].mxu0
  %434 = vmatprep.mubr.f32.mxu0 0.0
  %435 = vmatmul.mubr.f32.gmra.mrb[0].mxu0 %v170
  %v436 = vpop.f32.mrb[0].mxu0
  %v437 = vadd.f32 %v64, %v436
  %v438 = vpop.f32.mrb[0].mxu0
  %439 = vmatprep.mubr.f32.mxu0 0.0
  %440 = vmatmul.mubr.f32.gmra.mrb[0].mxu0 %v173
  %v441 = vpop.f32.mrb[0].mxu0
  %v442 = vadd.f32 %v64, %v441
  %v443 = vpop.f32.mrb[0].mxu0
  %444 = vmatprep.mubr.f32.mxu0 0.0
  %445 = vmatmul.mubr.f32.gmra.mrb[0].mxu0 %v176
  %v446 = vpop.f32.mrb[0].mxu0
  %v447 = vadd.f32 %v64, %v446
  %v448 = vpop.f32.mrb[0].mxu0
  %449 = vmatprep.mubr.f32.mxu0 0.0
  %450 = vmatmul.mubr.f32.gmra.mrb[0].mxu0 %v179
  %v451 = vpop.f32.mrb[0].mxu0
  %v452 = vadd.f32 %v64, %v451
  %v453 = vpop.f32.mrb[0].mxu0
  %454 = vmatprep.mubr.f32.mxu0 0.0
  %455 = vmatmul.mubr.f32.gmra.mrb[0].mxu0 %v182
  %v456 = vpop.f32.mrb[0].mxu0
  %v457 = vadd.f32 %v64, %v456
  %v458 = vpop.f32.mrb[0].mxu0
  %459 = vmatprep.mubr.f32.mxu0 0.0
  %460 = vmatmul.mubr.f32.gmra.mrb[0].mxu0 %v185
  %v461 = vpop.f32.mrb[0].mxu0
  %v462 = vadd.f32 %v64, %v461
  %v463 = vpop.f32.mrb[0].mxu0
  %464 = vmatprep.mubr.f32.mxu0 0.0
  %465 = vmatmul.mubr.f32.gmra.mrb[0].mxu0 %v188
  %v466 = vpop.f32.mrb[0].mxu0
  %v467 = vadd.f32 %v64, %v466
  %v468 = vpop.f32.mrb[0].mxu0
  %469 = vmatprep.mubr.f32.mxu0 0.0
  %470 = vmatmul.mubr.f32.gmra.mrb[0].mxu0 %v191
  %v471 = vpop.f32.mrb[0].mxu0
  %v472 = vadd.f32 %v64, %v471
  %v473 = vpop.f32.mrb[0].mxu0
  %474 = vmatprep.mubr.f32.mxu0 0.0
  %475 = vmatmul.mubr.f32.gmra.mrb[0].mxu0 %v194
  %v476 = vpop.f32.mrb[0].mxu0
  %v477 = vadd.f32 %v64, %v476
  %v478 = vpop.f32.mrb[0].mxu0
  %479 = vdwg.mxu0
  %v480 = vmax.f32 %v267, 0.0
  %v481 = vmax.f32 %v272, 0.0
  %v482 = vmax.f32 %v277, 0.0
  %v483 = vmax.f32 %v282, 0.0
  %v484 = vmax.f32 %v287, 0.0
  %v485 = vmax.f32 %v292, 0.0
  %v486 = vmax.f32 %v297, 0.0
  %v487 = vmax.f32 %v302, 0.0
  %v488 = vmax.f32 %v307, 0.0
  %v489 = vmax.f32 %v312, 0.0
  %v490 = vmax.f32 %v317, 0.0
  %v491 = vmax.f32 %v322, 0.0
  %v492 = vmax.f32 %v327, 0.0
  %v493 = vmax.f32 %v332, 0.0
  %v494 = vmax.f32 %v337, 0.0
  %v495 = vmax.f32 %v342, 0.0
  %v496 = vmax.f32 %v347, 0.0
  %v497 = vmax.f32 %v352, 0.0
  %v498 = vmax.f32 %v357, 0.0
  %v499 = vmax.f32 %v362, 0.0
  %v500 = vmax.f32 %v367, 0.0
  %v501 = vmax.f32 %v372, 0.0
  %v502 = vmax.f32 %v377, 0.0
  %v503 = vmax.f32 %v382, 0.0
  %v504 = vmax.f32 %v387, 0.0
  %v505 = vmax.f32 %v392, 0.0
  %v506 = vmax.f32 %v397, 0.0
  %v507 = vmax.f32 %v402, 0.0
  %v508 = vmax.f32 %v407, 0.0
  %v509 = vmax.f32 %v412, 0.0
  %v510 = vmax.f32 %v417, 0.0
  %v511 = vmax.f32 %v422, 0.0
  %v512 = vmax.f32 %v427, 0.0
  %v513 = vmax.f32 %v432, 0.0
  %v514 = vmax.f32 %v437, 0.0
  %v515 = vmax.f32 %v442, 0.0
  %v516 = vmax.f32 %v447, 0.0
  %v517 = vmax.f32 %v452, 0.0
  %v518 = vmax.f32 %v457, 0.0
  %v519 = vmax.f32 %v462, 0.0
  %v520 = vmax.f32 %v467, 0.0
  %v521 = vmax.f32 %v472, 0.0
  %v522 = vmax.f32 %v477, 0.0
  %vm523 = vcmask 261120
  %524 = vst.msk [vmem:[%s3] sm:$0xff] %vm523, %v480
  %525 = vst.msk [vmem:[%s3 + $0x8] sm:$0xff] %vm523, %v481
  %526 = vst.msk [vmem:[%s3 + $0x10] sm:$0xff] %vm523, %v482
  %527 = vst.msk [vmem:[%s3 + $0x18] sm:$0xff] %vm523, %v483
  %528 = vst.msk [vmem:[%s3 + $0x20] sm:$0xff] %vm523, %v484
  %529 = vst.msk [vmem:[%s3 + $0x28] sm:$0xff] %vm523, %v485
  %530 = vst.msk [vmem:[%s3 + $0x30] sm:$0xff] %vm523, %v486
  %531 = vst.msk [vmem:[%s3 + $0x38] sm:$0xff] %vm523, %v487
  %532 = vst.msk [vmem:[%s3 + $0x40] sm:$0xff] %vm523, %v488
  %533 = vst.msk [vmem:[%s3 + $0x48] sm:$0xff] %vm523, %v489
  %534 = vst.msk [vmem:[%s3 + $0x50] sm:$0xff] %vm523, %v490
  %535 = vst.msk [vmem:[%s3 + $0x58] sm:$0xff] %vm523, %v491
  %536 = vst.msk [vmem:[%s3 + $0x60] sm:$0xff] %vm523, %v492
  %537 = vst.msk [vmem:[%s3 + $0x68] sm:$0xff] %vm523, %v493
  %538 = vst.msk [vmem:[%s3 + $0x70] sm:$0xff] %vm523, %v494
  %539 = vst.msk [vmem:[%s3 + $0x78] sm:$0xff] %vm523, %v495
  %540 = vst.msk [vmem:[%s3 + $0x80] sm:$0xff] %vm523, %v496
  %541 = vst.msk [vmem:[%s3 + $0x88] sm:$0xff] %vm523, %v497
  %542 = vst.msk [vmem:[%s3 + $0x90] sm:$0xff] %vm523, %v498
  %543 = vst.msk [vmem:[%s3 + $0x98] sm:$0xff] %vm523, %v499
  %544 = vst.msk [vmem:[%s3 + $0xa0] sm:$0xff] %vm523, %v500
  %545 = vst.msk [vmem:[%s3 + $0xa8] sm:$0xff] %vm523, %v501
  %546 = vst.msk [vmem:[%s3 + $0xb0] sm:$0xff] %vm523, %v502
  %547 = vst.msk [vmem:[%s3 + $0xb8] sm:$0xff] %vm523, %v503
  %548 = vst.msk [vmem:[%s3 + $0xc0] sm:$0xff] %vm523, %v504
  %549 = vst.msk [vmem:[%s3 + $0xc8] sm:$0xff] %vm523, %v505
  %550 = vst.msk [vmem:[%s3 + $0xd0] sm:$0xff] %vm523, %v506
  %551 = vst.msk [vmem:[%s3 + $0xd8] sm:$0xff] %vm523, %v507
  %552 = vst.msk [vmem:[%s3 + $0xe0] sm:$0xff] %vm523, %v508
  %553 = vst.msk [vmem:[%s3 + $0xe8] sm:$0xff] %vm523, %v509
  %554 = vst.msk [vmem:[%s3 + $0xf0] sm:$0xff] %vm523, %v510
  %555 = vst.msk [vmem:[%s3 + $0xf8] sm:$0xff] %vm523, %v511
  %556 = vst.msk [vmem:[%s3 + $0x100] sm:$0xff] %vm523, %v512
  %557 = vst.msk [vmem:[%s3 + $0x108] sm:$0xff] %vm523, %v513
  %558 = vst.msk [vmem:[%s3 + $0x110] sm:$0xff] %vm523, %v514
  %559 = vst.msk [vmem:[%s3 + $0x118] sm:$0xff] %vm523, %v515
  %560 = vst.msk [vmem:[%s3 + $0x120] sm:$0xff] %vm523, %v516
  %561 = vst.msk [vmem:[%s3 + $0x128] sm:$0xff] %vm523, %v517
  %562 = vst.msk [vmem:[%s3 + $0x130] sm:$0xff] %vm523, %v518
  %563 = vst.msk [vmem:[%s3 + $0x138] sm:$0xff] %vm523, %v519
  %564 = vst.msk [vmem:[%s3 + $0x140] sm:$0xff] %vm523, %v520
  %565 = vst.msk [vmem:[%s3 + $0x148] sm:$0xff] %vm523, %v521
  %vm566 = vcmask 257024
  %567 = vst.msk [vmem:[%s3 + $0x150] sm:$0xf] %vm566, %v522
  // Predicated region
  $region14: #{_lambda_.6} parent=0 // pred_check
    _
  $region15: #{_lambda_.6} parent=0 // pred_check_branch
    %569 = sbr.rel (0) target = $region17
  $region16: #{_lambda_.6} parent=0 // pred_region
    _
  $region17: #{_lambda_.6} parent=0 // pred_fallthru
    _
  // Predicated region
  $region18: #{_lambda_.6} parent=0 // pred_check
    _
  $region19: #{_lambda_.6} parent=0 // pred_check_branch
    %571 = sbr.rel (0) target = $region21
  $region20: #{_lambda_.6} parent=0 // pred_region
    _
  $region21: #{_lambda_.6} parent=0 // pred_fallthru
    _

// kernel: _lambda_.7
$region0: #{_lambda_.7}
  #allocation0 [shape = 'u32[]', space=smem, size = 0x4, offset = 0x4, fixed_abs, tag = 'smem constant byte address 0x4 - core index']
  #allocation1 [shape = 'u32[144,128]{1,0:T(1,128)}', space=vmem, size = 0x12000, scoped, tag = 'internal scratch']
  %s0 = inlined_call_operand.vmem [shape: f32[64,288], index: 0, kind: input, shape index: {}]
  %s1 = inlined_call_operand.vmem [shape: f32[288,32], index: 1, kind: input, shape index: {}]
  %s2 = inlined_call_operand.vmem [shape: f32[1,32], index: 2, kind: input, shape index: {}]
  %s3 = inlined_call_operand.vmem [shape: f32[64,32], index: 3, kind: output, shape index: {}]
  %s4 = sld [smem:[#allocation0]]
  $region22: #{_lambda_.7} parent=0
    _
  %s6 = ssub.s32 1, %s4
  %s7 = scalar_select 0, %s6, %s4
  // Predicated region
  $region2: #{_lambda_.7} parent=0 // pred_check
    _
  $region3: #{_lambda_.7} parent=0 // pred_check_branch
    %9 = sbr.rel (0) target = $region5
  $region4: #{_lambda_.7} parent=0 // pred_region
    _
  $region5: #{_lambda_.7} parent=0 // pred_fallthru
    _
  // Predicated region
  $region6: #{_lambda_.7} parent=0 // pred_check
    _
  $region7: #{_lambda_.7} parent=0 // pred_check_branch
    %11 = sbr.rel (0) target = $region9
  $region8: #{_lambda_.7} parent=0 // pred_region
    _
  $region9: #{_lambda_.7} parent=0 // pred_fallthru
    _
  // Predicated region
  $region10: #{_lambda_.7} parent=0 // pred_check
    _
  $region11: #{_lambda_.7} parent=0 // pred_check_branch
    %13 = sbr.rel (0) target = $region13
  $region12: #{_lambda_.7} parent=0 // pred_region
    _
  $region13: #{_lambda_.7} parent=0 // pred_fallthru
    _
  %v14 = vld [vmem:[%s0] sm:$0xff]
  %v15 = vld [vmem:[%s0 + $0x8] sm:$0xff]
  %v16 = vld [vmem:[%s0 + $0x10] sm:$0xff]
  %v17 = vld [vmem:[%s0 + $0x18] sm:$0xff]
  %v18 = vld [vmem:[%s0 + $0x20] sm:$0xff]
  %v19 = vld [vmem:[%s0 + $0x28] sm:$0xff]
  %v20 = vld [vmem:[%s0 + $0x30] sm:$0xff]
  %v21 = vld [vmem:[%s0 + $0x38] sm:$0xff]
  %v22 = vld [vmem:[%s0 + $0x40] sm:$0xff]
  %v23 = vld [vmem:[%s0 + $0x48] sm:$0xff]
  %v24 = vld [vmem:[%s0 + $0x50] sm:$0xff]
  %v25 = vld [vmem:[%s0 + $0x58] sm:$0xff]
  %v26 = vld [vmem:[%s0 + $0x60] sm:$0xff]
  %v27 = vld [vmem:[%s0 + $0x68] sm:$0xff]
  %v28 = vld [vmem:[%s0 + $0x70] sm:$0xff]
  %v29 = vld [vmem:[%s0 + $0x78] sm:$0xff]
  %v30 = vld [vmem:[%s0 + $0x80] sm:$0xff]
  %v31 = vld [vmem:[%s0 + $0x88] sm:$0xff]
  %v32 = vld [vmem:[%s0 + $0x90] sm:$0xff]
  %v33 = vld [vmem:[%s0 + $0x98] sm:$0xff]
  %v34 = vld [vmem:[%s0 + $0xa0] sm:$0xff]
  %v35 = vld [vmem:[%s0 + $0xa8] sm:$0xff]
  %v36 = vld [vmem:[%s0 + $0xb0] sm:$0xff]
  %v37 = vld [vmem:[%s0 + $0xb8] sm:$0xff]
  %v38 = vld [vmem:[%s1] sm:$0xff]
  %v39 = vld [vmem:[%s1 + $0x8] sm:$0xff]
  %v40 = vld [vmem:[%s1 + $0x10] sm:$0xff]
  %v41 = vld [vmem:[%s1 + $0x18] sm:$0xff]
  %v42 = vld [vmem:[%s1 + $0x20] sm:$0xff]
  %v43 = vld [vmem:[%s1 + $0x28] sm:$0xff]
  %v44 = vld [vmem:[%s1 + $0x30] sm:$0xff]
  %v45 = vld [vmem:[%s1 + $0x38] sm:$0xff]
  %v46 = vld [vmem:[%s1 + $0x40] sm:$0xff]
  %v47 = vld [vmem:[%s1 + $0x48] sm:$0xff]
  %v48 = vld [vmem:[%s1 + $0x50] sm:$0xff]
  %v49 = vld [vmem:[%s1 + $0x58] sm:$0xff]
  %v50 = vld [vmem:[%s1 + $0x60] sm:$0xff]
  %v51 = vld [vmem:[%s1 + $0x68] sm:$0xff]
  %v52 = vld [vmem:[%s1 + $0x70] sm:$0xff]
  %v53 = vld [vmem:[%s1 + $0x78] sm:$0xff]
  %v54 = vld [vmem:[%s1 + $0x80] sm:$0xff]
  %v55 = vld [vmem:[%s1 + $0x88] sm:$0xff]
  %v56 = vld [vmem:[%s1 + $0x90] sm:$0xff]
  %v57 = vld [vmem:[%s1 + $0x98] sm:$0xff]
  %v58 = vld [vmem:[%s1 + $0xa0] sm:$0xff]
  %v59 = vld [vmem:[%s1 + $0xa8] sm:$0xff]
  %v60 = vld [vmem:[%s1 + $0xb0] sm:$0xff]
  %v61 = vld [vmem:[%s1 + $0xb8] sm:$0xff]
  %v62 = vld [vmem:[%s1 + $0xc0] sm:$0xff]
  %v63 = vld [vmem:[%s1 + $0xc8] sm:$0xff]
  %v64 = vld [vmem:[%s1 + $0xd0] sm:$0xff]
  %v65 = vld [vmem:[%s1 + $0xd8] sm:$0xff]
  %v66 = vld [vmem:[%s1 + $0xe0] sm:$0xff]
  %v67 = vld [vmem:[%s1 + $0xe8] sm:$0xff]
  %v68 = vld [vmem:[%s1 + $0xf0] sm:$0xff]
  %v69 = vld [vmem:[%s1 + $0xf8] sm:$0xff]
  %v70 = vld [vmem:[%s1 + $0x100] sm:$0xff]
  %v71 = vld [vmem:[%s1 + $0x108] sm:$0xff]
  %v72 = vld [vmem:[%s1 + $0x110] sm:$0xff]
  %v73 = vld [vmem:[%s1 + $0x118] sm:$0xff]
  %v74 = vld [vmem:[%s2] sm:$0x1]
  %v76 = vlaneseq
  %v77 = vshrl.u32 %v76, 7
  %v78 = vsub.s32 0, %v77
  %v79 = vrot.slane %v74, %v78
  %vm81 = vcmask 261120
  %v83 = vsel %vm81, %v16, 0
  %v86 = vsel %vm81, %v19, 0
  %v89 = vsel %vm81, %v22, 0
  %v92 = vsel %vm81, %v25, 0
  %v95 = vsel %vm81, %v28, 0
  %v98 = vsel %vm81, %v31, 0
  %v101 = vsel %vm81, %v34, 0
  %v104 = vsel %vm81, %v37, 0
  %106 = vmatprep.subr.mxu0 0.0
  %107 = vmatpush1.msra.mxu0 %v38
  %108 = vmatprep.subr.mxu0 0.0
  %109 = vmatpush1.msra.mxu0 %v39
  %110 = vmatprep.subr.mxu0 0.0
  %111 = vmatpush1.msra.mxu0 %v40
  %112 = vmatprep.subr.mxu0 0.0
  %113 = vmatpush1.msra.mxu0 %v41
  %114 = vmatprep.subr.mxu0 0.0
  %115 = vmatpush1.msra.mxu0 %v42
  %116 = vmatprep.subr.mxu0 0.0
  %117 = vmatpush1.msra.mxu0 %v43
  %118 = vmatprep.subr.mxu0 0.0
  %119 = vmatpush1.msra.mxu0 %v44
  %120 = vmatprep.subr.mxu0 0.0
  %121 = vmatpush1.msra.mxu0 %v45
  %122 = vmatprep.subr.mxu0 0.0
  %123 = vmatpush1.msra.mxu0 %v46
  %124 = vmatprep.subr.mxu0 0.0
  %125 = vmatpush1.msra.mxu0 %v47
  %126 = vmatprep.subr.mxu0 0.0
  %127 = vmatpush1.msra.mxu0 %v48
  %128 = vmatprep.subr.mxu0 0.0
  %129 = vmatpush1.msra.mxu0 %v49
  %130 = vmatprep.subr.mxu0 0.0
  %131 = vmatpush1.msra.mxu0 %v50
  %132 = vmatprep.subr.mxu0 0.0
  %133 = vmatpush1.msra.mxu0 %v51
  %134 = vmatprep.subr.mxu0 0.0
  %135 = vmatpush1.msra.mxu0 %v52
  %136 = vmatprep.subr.mxu0 0.0
  %137 = vmatpush1.msra.mxu0 %v53
  %138 = vmatprep.subr.mxu0 0.0
  %139 = vmatpush1.msra.mxu0 %v54
  %140 = vmatprep.subr.mxu0 0.0
  %141 = vmatpush1.msra.mxu0 %v55
  %142 = vmatprep.subr.mxu0 0.0
  %143 = vmatpush1.msra.mxu0 %v56
  %144 = vmatprep.subr.mxu0 0.0
  %145 = vmatpush1.msra.mxu0 %v57
  %146 = vmatprep.subr.mxu0 0.0
  %147 = vmatpush1.msra.mxu0 %v58
  %148 = vmatprep.subr.mxu0 0.0
  %149 = vmatpush1.msra.mxu0 %v59
  %150 = vmatprep.subr.mxu0 0.0
  %151 = vmatpush1.msra.mxu0 %v60
  %152 = vmatprep.subr.mxu0 0.0
  %153 = vmatpush1.msra.mxu0 %v61
  %154 = vmatprep.subr.mxu0 0.0
  %155 = vmatpush1.msra.mxu0 %v62
  %156 = vmatprep.subr.mxu0 0.0
  %157 = vmatpush1.msra.mxu0 %v63
  %158 = vmatprep.subr.mxu0 0.0
  %159 = vmatpush1.msra.mxu0 %v64
  %160 = vmatprep.subr.mxu0 0.0
  %161 = vmatpush1.msra.mxu0 %v65
  %162 = vmatprep.subr.mxu0 0.0
  %163 = vmatpush1.msra.mxu0 %v66
  %164 = vmatprep.subr.mxu0 0.0
  %165 = vmatpush1.msra.mxu0 %v67
  %166 = vmatprep.subr.mxu0 0.0
  %167 = vmatpush1.msra.mxu0 %v68
  %168 = vmatprep.subr.mxu0 0.0
  %169 = vmatpush1.msra.mxu0 %v69
  %170 = vmatprep.mubr.f32.mxu0 %v15
  %171 = vmatmul.mubr.f32.gmra.mrb[0].mxu0 %v14
  %v172 = vpop.f32.mrb[0].mxu0
  %v173 = vadd.f32 %v79, %v172
  %v174 = vpop.f32.mrb[0].mxu0
  %175 = vmatprep.mubr.f32.mxu0 %v18
  %176 = vmatmul.mubr.f32.gmra.mrb[0].mxu0 %v17
  %v177 = vpop.f32.mrb[0].mxu0
  %v178 = vadd.f32 %v79, %v177
  %v179 = vpop.f32.mrb[0].mxu0
  %180 = vmatprep.mubr.f32.mxu0 %v21
  %181 = vmatmul.mubr.f32.gmra.mrb[0].mxu0 %v20
  %v182 = vpop.f32.mrb[0].mxu0
  %v183 = vadd.f32 %v79, %v182
  %v184 = vpop.f32.mrb[0].mxu0
  %185 = vmatprep.mubr.f32.mxu0 %v24
  %186 = vmatmul.mubr.f32.gmra.mrb[0].mxu0 %v23
  %v187 = vpop.f32.mrb[0].mxu0
  %v188 = vadd.f32 %v79, %v187
  %v189 = vpop.f32.mrb[0].mxu0
  %190 = vmatprep.mubr.f32.mxu0 %v27
  %191 = vmatmul.mubr.f32.gmra.mrb[0].mxu0 %v26
  %v192 = vpop.f32.mrb[0].mxu0
  %v193 = vadd.f32 %v79, %v192
  %v194 = vpop.f32.mrb[0].mxu0
  %195 = vmatprep.mubr.f32.mxu0 %v30
  %196 = vmatmul.mubr.f32.gmra.mrb[0].mxu0 %v29
  %v197 = vpop.f32.mrb[0].mxu0
  %v198 = vadd.f32 %v79, %v197
  %v199 = vpop.f32.mrb[0].mxu0
  %200 = vmatprep.mubr.f32.mxu0 %v33
  %201 = vmatmul.mubr.f32.gmra.mrb[0].mxu0 %v32
  %v202 = vpop.f32.mrb[0].mxu0
  %v203 = vadd.f32 %v79, %v202
  %v204 = vpop.f32.mrb[0].mxu0
  %205 = vmatprep.mubr.f32.mxu0 %v36
  %206 = vmatmul.mubr.f32.gmra.mrb[0].mxu0 %v35
  %v207 = vpop.f32.mrb[0].mxu0
  %v208 = vadd.f32 %v79, %v207
  %v209 = vpop.f32.mrb[0].mxu0
  %210 = vdwg.mxu0
  %211 = vmatprep.subr.mxu0 0.0
  %212 = vmatpush1.msra.mxu0 %v70
  %213 = vmatprep.subr.mxu0 0.0
  %214 = vmatpush1.msra.mxu0 %v71
  %215 = vmatprep.subr.mxu0 0.0
  %216 = vmatpush1.msra.mxu0 %v72
  %217 = vmatprep.subr.mxu0 0.0
  %218 = vmatpush1.msra.mxu0 %v73
  %219 = vmatprep.subr.mxu0 0.0
  %220 = vmatpush1.msra.mxu0 0.0
  %221 = vmatprep.subr.mxu0 0.0
  %222 = vmatpush1.msra.mxu0 0.0
  %223 = vmatprep.subr.mxu0 0.0
  %224 = vmatpush1.msra.mxu0 0.0
  %225 = vmatprep.subr.mxu0 0.0
  %226 = vmatpush1.msra.mxu0 0.0
  %227 = vmatprep.subr.mxu0 0.0
  %228 = vmatpush1.msra.mxu0 0.0
  %229 = vmatprep.subr.mxu0 0.0
  %230 = vmatpush1.msra.mxu0 0.0
  %231 = vmatprep.subr.mxu0 0.0
  %232 = vmatpush1.msra.mxu0 0.0
  %233 = vmatprep.subr.mxu0 0.0
  %234 = vmatpush1.msra.mxu0 0.0
  %235 = vmatprep.subr.mxu0 0.0
  %236 = vmatpush1.msra.mxu0 0.0
  %237 = vmatprep.subr.mxu0 0.0
  %238 = vmatpush1.msra.mxu0 0.0
  %239 = vmatprep.subr.mxu0 0.0
  %240 = vmatpush1.msra.mxu0 0.0
  %241 = vmatprep.subr.mxu0 0.0
  %242 = vmatpush1.msra.mxu0 0.0
  %243 = vmatprep.subr.mxu0 0.0
  %244 = vmatpush1.msra.mxu0 0.0
  %245 = vmatprep.subr.mxu0 0.0
  %246 = vmatpush1.msra.mxu0 0.0
  %247 = vmatprep.subr.mxu0 0.0
  %248 = vmatpush1.msra.mxu0 0.0
  %249 = vmatprep.subr.mxu0 0.0
  %250 = vmatpush1.msra.mxu0 0.0
  %251 = vmatprep.subr.mxu0 0.0
  %252 = vmatpush1.msra.mxu0 0.0
  %253 = vmatprep.subr.mxu0 0.0
  %254 = vmatpush1.msra.mxu0 0.0
  %255 = vmatprep.subr.mxu0 0.0
  %256 = vmatpush1.msra.mxu0 0.0
  %257 = vmatprep.subr.mxu0 0.0
  %258 = vmatpush1.msra.mxu0 0.0
  %259 = vmatprep.subr.mxu0 0.0
  %260 = vmatpush1.msra.mxu0 0.0
  %261 = vmatprep.subr.mxu0 0.0
  %262 = vmatpush1.msra.mxu0 0.0
  %263 = vmatprep.subr.mxu0 0.0
  %264 = vmatpush1.msra.mxu0 0.0
  %265 = vmatprep.subr.mxu0 0.0
  %266 = vmatpush1.msra.mxu0 0.0
  %267 = vmatprep.subr.mxu0 0.0
  %268 = vmatpush1.msra.mxu0 0.0
  %269 = vmatprep.subr.mxu0 0.0
  %270 = vmatpush1.msra.mxu0 0.0
  %271 = vmatprep.subr.mxu0 0.0
  %272 = vmatpush1.msra.mxu0 0.0
  %273 = vmatprep.subr.mxu0 0.0
  %274 = vmatpush1.msra.mxu0 0.0
  %275 = vmatprep.mubr.f32.mxu0 0.0
  %276 = vmatmul.mubr.f32.gmra.mrb[0].mxu0 %v83
  %v277 = vpop.f32.mrb[0].mxu0
  %v278 = vadd.f32 %v173, %v277
  %v279 = vpop.f32.mrb[0].mxu0
  %280 = vmatprep.mubr.f32.mxu0 0.0
  %281 = vmatmul.mubr.f32.gmra.mrb[0].mxu0 %v86
  %v282 = vpop.f32.mrb[0].mxu0
  %v283 = vadd.f32 %v178, %v282
  %v284 = vpop.f32.mrb[0].mxu0
  %285 = vmatprep.mubr.f32.mxu0 0.0
  %286 = vmatmul.mubr.f32.gmra.mrb[0].mxu0 %v89
  %v287 = vpop.f32.mrb[0].mxu0
  %v288 = vadd.f32 %v183, %v287
  %v289 = vpop.f32.mrb[0].mxu0
  %290 = vmatprep.mubr.f32.mxu0 0.0
  %291 = vmatmul.mubr.f32.gmra.mrb[0].mxu0 %v92
  %v292 = vpop.f32.mrb[0].mxu0
  %v293 = vadd.f32 %v188, %v292
  %v294 = vpop.f32.mrb[0].mxu0
  %295 = vmatprep.mubr.f32.mxu0 0.0
  %296 = vmatmul.mubr.f32.gmra.mrb[0].mxu0 %v95
  %v297 = vpop.f32.mrb[0].mxu0
  %v298 = vadd.f32 %v193, %v297
  %v299 = vpop.f32.mrb[0].mxu0
  %300 = vmatprep.mubr.f32.mxu0 0.0
  %301 = vmatmul.mubr.f32.gmra.mrb[0].mxu0 %v98
  %v302 = vpop.f32.mrb[0].mxu0
  %v303 = vadd.f32 %v198, %v302
  %v304 = vpop.f32.mrb[0].mxu0
  %305 = vmatprep.mubr.f32.mxu0 0.0
  %306 = vmatmul.mubr.f32.gmra.mrb[0].mxu0 %v101
  %v307 = vpop.f32.mrb[0].mxu0
  %v308 = vadd.f32 %v203, %v307
  %v309 = vpop.f32.mrb[0].mxu0
  %310 = vmatprep.mubr.f32.mxu0 0.0
  %311 = vmatmul.mubr.f32.gmra.mrb[0].mxu0 %v104
  %v312 = vpop.f32.mrb[0].mxu0
  %v313 = vadd.f32 %v208, %v312
  %v314 = vpop.f32.mrb[0].mxu0
  %315 = vdwg.mxu0
  %v316 = vmax.f32 %v278, 0.0
  %v317 = vmax.f32 %v283, 0.0
  %v318 = vmax.f32 %v288, 0.0
  %v319 = vmax.f32 %v293, 0.0
  %v320 = vmax.f32 %v298, 0.0
  %v321 = vmax.f32 %v303, 0.0
  %v322 = vmax.f32 %v308, 0.0
  %v323 = vmax.f32 %v313, 0.0
  %324 = vst.msk [vmem:[%s3] sm:$0xff] %vm81, %v316
  %325 = vst.msk [vmem:[%s3 + $0x8] sm:$0xff] %vm81, %v317
  %326 = vst.msk [vmem:[%s3 + $0x10] sm:$0xff] %vm81, %v318
  %327 = vst.msk [vmem:[%s3 + $0x18] sm:$0xff] %vm81, %v319
  %328 = vst.msk [vmem:[%s3 + $0x20] sm:$0xff] %vm81, %v320
  %329 = vst.msk [vmem:[%s3 + $0x28] sm:$0xff] %vm81, %v321
  %330 = vst.msk [vmem:[%s3 + $0x30] sm:$0xff] %vm81, %v322
  %331 = vst.msk [vmem:[%s3 + $0x38] sm:$0xff] %vm81, %v323
  // Predicated region
  $region14: #{_lambda_.7} parent=0 // pred_check
    _
  $region15: #{_lambda_.7} parent=0 // pred_check_branch
    %333 = sbr.rel (0) target = $region17
  $region16: #{_lambda_.7} parent=0 // pred_region
    _
  $region17: #{_lambda_.7} parent=0 // pred_fallthru
    _
  // Predicated region
  $region18: #{_lambda_.7} parent=0 // pred_check
    _
  $region19: #{_lambda_.7} parent=0 // pred_check_branch
    %335 = sbr.rel (0) target = $region21
  $region20: #{_lambda_.7} parent=0 // pred_region
    _
  $region21: #{_lambda_.7} parent=0 // pred_fallthru
    _

// kernel: _lambda_.8
$region0: #{_lambda_.8}
  #allocation0 [shape = 'u32[]', space=smem, size = 0x4, offset = 0x4, fixed_abs, tag = 'smem constant byte address 0x4 - core index']
  #allocation1 [shape = 'u32[144,128]{1,0:T(1,128)}', space=vmem, size = 0x12000, scoped, tag = 'internal scratch']
  %s0 = inlined_call_operand.vmem [shape: f32[16,128], index: 0, kind: input, shape index: {}]
  %s1 = inlined_call_operand.vmem [shape: f32[128,32], index: 1, kind: input, shape index: {}]
  %s2 = inlined_call_operand.vmem [shape: f32[1,32], index: 2, kind: input, shape index: {}]
  %s3 = inlined_call_operand.vmem [shape: f32[16,32], index: 3, kind: output, shape index: {}]
  %s4 = sld [smem:[#allocation0]]
  $region22: #{_lambda_.8} parent=0
    _
  %s6 = ssub.s32 1, %s4
  %s7 = scalar_select 0, %s6, %s4
  // Predicated region
  $region2: #{_lambda_.8} parent=0 // pred_check
    _
  $region3: #{_lambda_.8} parent=0 // pred_check_branch
    %9 = sbr.rel (0) target = $region5
  $region4: #{_lambda_.8} parent=0 // pred_region
    _
  $region5: #{_lambda_.8} parent=0 // pred_fallthru
    _
  // Predicated region
  $region6: #{_lambda_.8} parent=0 // pred_check
    _
  $region7: #{_lambda_.8} parent=0 // pred_check_branch
    %11 = sbr.rel (0) target = $region9
  $region8: #{_lambda_.8} parent=0 // pred_region
    _
  $region9: #{_lambda_.8} parent=0 // pred_fallthru
    _
  // Predicated region
  $region10: #{_lambda_.8} parent=0 // pred_check
    _
  $region11: #{_lambda_.8} parent=0 // pred_check_branch
    %13 = sbr.rel (0) target = $region13
  $region12: #{_lambda_.8} parent=0 // pred_region
    _
  $region13: #{_lambda_.8} parent=0 // pred_fallthru
    _
  %v14 = vld [vmem:[%s0] sm:$0xff]
  %v15 = vld [vmem:[%s0 + $0x8] sm:$0xff]
  %v16 = vld [vmem:[%s1] sm:$0xff]
  %v17 = vld [vmem:[%s1 + $0x8] sm:$0xff]
  %v18 = vld [vmem:[%s1 + $0x10] sm:$0xff]
  %v19 = vld [vmem:[%s1 + $0x18] sm:$0xff]
  %v20 = vld [vmem:[%s1 + $0x20] sm:$0xff]
  %v21 = vld [vmem:[%s1 + $0x28] sm:$0xff]
  %v22 = vld [vmem:[%s1 + $0x30] sm:$0xff]
  %v23 = vld [vmem:[%s1 + $0x38] sm:$0xff]
  %v24 = vld [vmem:[%s1 + $0x40] sm:$0xff]
  %v25 = vld [vmem:[%s1 + $0x48] sm:$0xff]
  %v26 = vld [vmem:[%s1 + $0x50] sm:$0xff]
  %v27 = vld [vmem:[%s1 + $0x58] sm:$0xff]
  %v28 = vld [vmem:[%s1 + $0x60] sm:$0xff]
  %v29 = vld [vmem:[%s1 + $0x68] sm:$0xff]
  %v30 = vld [vmem:[%s1 + $0x70] sm:$0xff]
  %v31 = vld [vmem:[%s1 + $0x78] sm:$0xff]
  %v32 = vld [vmem:[%s2] sm:$0x1]
  %v34 = vlaneseq
  %v35 = vshrl.u32 %v34, 7
  %v36 = vsub.s32 0, %v35
  %v37 = vrot.slane %v32, %v36
  %39 = vmatprep.subr.mxu0 0.0
  %40 = vmatpush1.msra.mxu0 %v16
  %41 = vmatprep.subr.mxu0 0.0
  %42 = vmatpush1.msra.mxu0 %v17
  %43 = vmatprep.subr.mxu0 0.0
  %44 = vmatpush1.msra.mxu0 %v18
  %45 = vmatprep.subr.mxu0 0.0
  %46 = vmatpush1.msra.mxu0 %v19
  %47 = vmatprep.subr.mxu0 0.0
  %48 = vmatpush1.msra.mxu0 %v20
  %49 = vmatprep.subr.mxu0 0.0
  %50 = vmatpush1.msra.mxu0 %v21
  %51 = vmatprep.subr.mxu0 0.0
  %52 = vmatpush1.msra.mxu0 %v22
  %53 = vmatprep.subr.mxu0 0.0
  %54 = vmatpush1.msra.mxu0 %v23
  %55 = vmatprep.subr.mxu0 0.0
  %56 = vmatpush1.msra.mxu0 %v24
  %57 = vmatprep.subr.mxu0 0.0
  %58 = vmatpush1.msra.mxu0 %v25
  %59 = vmatprep.subr.mxu0 0.0
  %60 = vmatpush1.msra.mxu0 %v26
  %61 = vmatprep.subr.mxu0 0.0
  %62 = vmatpush1.msra.mxu0 %v27
  %63 = vmatprep.subr.mxu0 0.0
  %64 = vmatpush1.msra.mxu0 %v28
  %65 = vmatprep.subr.mxu0 0.0
  %66 = vmatpush1.msra.mxu0 %v29
  %67 = vmatprep.subr.mxu0 0.0
  %68 = vmatpush1.msra.mxu0 %v30
  %69 = vmatprep.subr.mxu0 0.0
  %70 = vmatpush1.msra.mxu0 %v31
  %71 = vmatprep.subr.mxu0 0.0
  %72 = vmatpush1.msra.mxu0 0.0
  %73 = vmatprep.subr.mxu0 0.0
  %74 = vmatpush1.msra.mxu0 0.0
  %75 = vmatprep.subr.mxu0 0.0
  %76 = vmatpush1.msra.mxu0 0.0
  %77 = vmatprep.subr.mxu0 0.0
  %78 = vmatpush1.msra.mxu0 0.0
  %79 = vmatprep.subr.mxu0 0.0
  %80 = vmatpush1.msra.mxu0 0.0
  %81 = vmatprep.subr.mxu0 0.0
  %82 = vmatpush1.msra.mxu0 0.0
  %83 = vmatprep.subr.mxu0 0.0
  %84 = vmatpush1.msra.mxu0 0.0
  %85 = vmatprep.subr.mxu0 0.0
  %86 = vmatpush1.msra.mxu0 0.0
  %87 = vmatprep.subr.mxu0 0.0
  %88 = vmatpush1.msra.mxu0 0.0
  %89 = vmatprep.subr.mxu0 0.0
  %90 = vmatpush1.msra.mxu0 0.0
  %91 = vmatprep.subr.mxu0 0.0
  %92 = vmatpush1.msra.mxu0 0.0
  %93 = vmatprep.subr.mxu0 0.0
  %94 = vmatpush1.msra.mxu0 0.0
  %95 = vmatprep.subr.mxu0 0.0
  %96 = vmatpush1.msra.mxu0 0.0
  %97 = vmatprep.subr.mxu0 0.0
  %98 = vmatpush1.msra.mxu0 0.0
  %99 = vmatprep.subr.mxu0 0.0
  %100 = vmatpush1.msra.mxu0 0.0
  %101 = vmatprep.subr.mxu0 0.0
  %102 = vmatpush1.msra.mxu0 0.0
  %103 = vmatprep.mubr.f32.mxu0 0.0
  %104 = vmatmul.mubr.f32.gmra.mrb[0].mxu0 %v14
  %v105 = vpop.f32.mrb[0].mxu0
  %v106 = vadd.f32 %v37, %v105
  %v107 = vpop.f32.mrb[0].mxu0
  %108 = vmatprep.mubr.f32.mxu0 0.0
  %109 = vmatmul.mubr.f32.gmra.mrb[0].mxu0 %v15
  %v110 = vpop.f32.mrb[0].mxu0
  %v111 = vadd.f32 %v37, %v110
  %v112 = vpop.f32.mrb[0].mxu0
  %113 = vdwg.mxu0
  %vm114 = vcmask 261120
  %115 = vst.msk [vmem:[%s3] sm:$0xff] %vm114, %v106
  %116 = vst.msk [vmem:[%s3 + $0x8] sm:$0xff] %vm114, %v111
  // Predicated region
  $region14: #{_lambda_.8} parent=0 // pred_check
    _
  $region15: #{_lambda_.8} parent=0 // pred_check_branch
    %118 = sbr.rel (0) target = $region17
  $region16: #{_lambda_.8} parent=0 // pred_region
    _
  $region17: #{_lambda_.8} parent=0 // pred_fallthru
    _
  // Predicated region
  $region18: #{_lambda_.8} parent=0 // pred_check
    _
  $region19: #{_lambda_.8} parent=0 // pred_check_branch
    %120 = sbr.rel (0) target = $region21
  $region20: #{_lambda_.8} parent=0 // pred_region
    _
  $region21: #{_lambda_.8} parent=0 // pred_fallthru
    _

// kernel: _lambda_.11
$region0: #{_lambda_.11}
  #allocation0 [shape = 'u32[]', space=smem, size = 0x4, offset = 0x4, fixed_abs, tag = 'smem constant byte address 0x4 - core index']
  #allocation1 [shape = 'u32[144,128]{1,0:T(1,128)}', space=vmem, size = 0x12000, scoped, tag = 'internal scratch']
  %s0 = inlined_call_operand.vmem [shape: f32[16,32], index: 0, kind: input, shape index: {}]
  %s1 = inlined_call_operand.vmem [shape: f32[1,32], index: 1, kind: input, shape index: {}]
  %s2 = inlined_call_operand.vmem [shape: f32[1,32], index: 2, kind: input, shape index: {}]
  %s3 = inlined_call_operand.hbm [shape: f32[16,32], index: 3, kind: output, shape index: {}]
  %s4 = sld [smem:[#allocation0]]
  $region22: #{_lambda_.11} parent=0
    _
  %s6 = ssub.s32 1, %s4
  %s7 = scalar_select 0, %s6, %s4
  $region1: #{_lambda_.11} parent=0
    #allocation2 [shape = 'u8[8192]{0}', space=vmem, size = 0x2000, scoped, tag = 'output window, operand 0, single buffered']
    #allocation3 [shape = 's32[1]{0}', space=sflag, size = 0x4, scoped, tag = 'scoped memory for _lambda_.11']
    %8 = vsyncpa [#allocation3], 0
    // Predicated region
    $region2: #{_lambda_.11} parent=1 // pred_check
      _
    $region3: #{_lambda_.11} parent=1 // pred_check_branch
      %10 = sbr.rel (0) target = $region5
    $region4: #{_lambda_.11} parent=1 // pred_region
      _
    $region5: #{_lambda_.11} parent=1 // pred_fallthru
      _
    // Predicated region
    $region6: #{_lambda_.11} parent=1 // pred_check
      _
    $region7: #{_lambda_.11} parent=1 // pred_check_branch
      %12 = sbr.rel (0) target = $region9
    $region8: #{_lambda_.11} parent=1 // pred_region
      _
    $region9: #{_lambda_.11} parent=1 // pred_fallthru
      _
    // Predicated region
    $region10: #{_lambda_.11} parent=1 // pred_check
      _
    $region11: #{_lambda_.11} parent=1 // pred_check_branch
      %14 = sbr.rel (0) target = $region13
    $region12: #{_lambda_.11} parent=1 // pred_region
      _
    $region13: #{_lambda_.11} parent=1 // pred_fallthru
      _
    %v15 = vld [vmem:[%s0] sm:$0xff]
    %v16 = vld [vmem:[%s0 + $0x8] sm:$0xff]
    %vm17 = vcmask 261120
    %v18 = vsel %vm17, %v15, 0.0
    %19 = vadd.xlane.f32.xlu0 %v18
    %v20 = vpop.xlane.xlu0 %19
    %v21 = vsel %vm17, %v16, 0.0
    %22 = vadd.xlane.f32.xlu0 %v21
    %v23 = vpop.xlane.xlu0 %22
    %v24 = vrcp.pop 32.0
    %v25 = vmul.f32 %v20, %v24
    %v26 = vmul.f32 %v23, %v24
    %v27 = vsub.f32 %v15, %v25
    %v28 = vsub.f32 %v16, %v26
    %v29 = vmul.f32 %v27, %v27
    %v30 = vmul.f32 %v28, %v28
    %v31 = vsel %vm17, %v29, 0.0
    %32 = vadd.xlane.f32.xlu0 %v31
    %v33 = vpop.xlane.xlu0 %32
    %v34 = vsel %vm17, %v30, 0.0
    %35 = vadd.xlane.f32.xlu0 %v34
    %v36 = vpop.xlane.xlu0 %35
    %v37 = vmul.f32 %v33, %v24
    %v38 = vmul.f32 %v36, %v24
    %v39 = vadd.f32 %v37, 1e-05
    %v40 = vadd.f32 %v38, 1e-05
    %v41 = vrsqrt.pop %v39
    %v42 = vrsqrt.pop %v40
    %v43 = vmul.f32 %v27, %v41
    %v44 = vmul.f32 %v28, %v42
    %v45 = vld [vmem:[%s1] sm:$0x1]
    %v47 = vlaneseq
    %v48 = vshrl.u32 %v47, 7
    %v49 = vsub.s32 0, %v48
    %v50 = vrot.slane %v45, %v49
    %v52 = vmul.f32 %v43, %v50
    %v53 = vmul.f32 %v44, %v50
    %v54 = vld [vmem:[%s2] sm:$0x1]
    %v56 = vlaneseq
    %v57 = vshrl.u32 %v56, 7
    %v58 = vsub.s32 0, %v57
    %v59 = vrot.slane %v54, %v58
    %v61 = vadd.f32 %v52, %v59
    %v62 = vadd.f32 %v53, %v59
    %63 = vst.msk [vmem:[#allocation2] sm:$0xff] %vm17, %v61
    %64 = vst.msk [vmem:[#allocation2 + $0x8] sm:$0xff] %vm17, %v62
    // Predicated region
    $region14: #{_lambda_.11} parent=1 // pred_check
      _
    $region15: #{_lambda_.11} parent=1 // pred_check_branch
      %66 = sbr.rel (0) target = $region17
    $region16: #{_lambda_.11} parent=1 // pred_region
      %s68 = ssub.s32 256, 256
      %69 = vsyncadd [#allocation3], %s68
      %s70 = sshll.u32 [#allocation2], 4
      %s71 = int_to_ptr.vmem [resolvable:$true] %s70
      %76 = dma.vmem_to_hbm [thread:$0]  %s71, 256, %s3, [#allocation3], 128, 128, 8
    $region17: #{_lambda_.11} parent=1 // pred_fallthru
      _
    // Predicated region
    $region18: #{_lambda_.11} parent=1 // pred_check
      _
    $region19: #{_lambda_.11} parent=1 // pred_check_branch
      %78 = sbr.rel (0) target = $region21
    $region20: #{_lambda_.11} parent=1 // pred_region
      %79 = dma.done [#allocation3], 256
    $region21: #{_lambda_.11} parent=1 // pred_fallthru
      _
    %80 = vsyncpa [#allocation3], 1

// kernel: _lambda_.9
$region0: #{_lambda_.9}
  #allocation0 [shape = 'u32[]', space=smem, size = 0x4, offset = 0x4, fixed_abs, tag = 'smem constant byte address 0x4 - core index']
  #allocation1 [shape = 'u32[144,128]{1,0:T(1,128)}', space=vmem, size = 0x12000, scoped, tag = 'internal scratch']
  %s0 = inlined_call_operand.vmem [shape: f32[2,8,32], index: 0, kind: input, shape index: {}]
  %s1 = inlined_call_operand.vmem [shape: f32[2,1,8], index: 1, kind: input, shape index: {}]
  %s2 = inlined_call_operand.vmem [shape: f32[2,8,1], index: 2, kind: input, shape index: {}]
  %s3 = inlined_call_operand.vmem [shape: f32[1,15,32], index: 3, kind: input, shape index: {}]
  %s4 = inlined_call_operand.vmem [shape: f32[5,32], index: 4, kind: input, shape index: {}]
  %s5 = inlined_call_operand.vmem [shape: f32[5,32], index: 5, kind: input, shape index: {}]
  %s6 = inlined_call_operand.vmem [shape: bf16[32,64], index: 6, kind: input, shape index: {}]
  %s7 = inlined_call_operand.vmem [shape: f32[1,64], index: 7, kind: input, shape index: {}]
  %s8 = inlined_call_operand.vmem [shape: bf16[64,32], index: 8, kind: input, shape index: {}]
  %s9 = inlined_call_operand.vmem [shape: f32[1,32], index: 9, kind: input, shape index: {}, may-alias: {9,16,18,20,22,24,26}]
  %s10 = inlined_call_operand.vmem [shape: bf16[32,96], index: 10, kind: input, shape index: {}]
  %s11 = inlined_call_operand.vmem [shape: f32[1,96], index: 11, kind: input, shape index: {}]
  %s12 = inlined_call_operand.vmem [shape: bf16[32,32], index: 12, kind: input, shape index: {}]
  %s13 = inlined_call_operand.vmem [shape: f32[1,32], index: 13, kind: input, shape index: {}]
  %s14 = inlined_call_operand.vmem [shape: f32[1,32], index: 14, kind: input, shape index: {}]
  %s15 = inlined_call_operand.vmem [shape: bf16[32,32], index: 15, kind: input, shape index: {}]
  %s16 = inlined_call_operand.vmem [shape: f32[1,32], index: 16, kind: input, shape index: {}, may-alias: {9,16,18,20,22,24,26}]
  %s17 = inlined_call_operand.vmem [shape: bf16[32,32], index: 17, kind: input, shape index: {}]
  %s18 = inlined_call_operand.vmem [shape: f32[1,32], index: 18, kind: input, shape index: {}, may-alias: {9,16,18,20,22,24,26}]
  %s19 = inlined_call_operand.vmem [shape: bf16[32,32], index: 19, kind: input, shape index: {}]
  %s20 = inlined_call_operand.vmem [shape: f32[1,32], index: 20, kind: input, shape index: {}, may-alias: {9,16,18,20,22,24,26}]
  %s21 = inlined_call_operand.vmem [shape: f32[7,32], index: 21, kind: input, shape index: {}]
  %s22 = inlined_call_operand.vmem [shape: f32[1,32], index: 22, kind: input, shape index: {}, may-alias: {9,16,18,20,22,24,26}]
  %s23 = inlined_call_operand.vmem [shape: f32[1,32], index: 23, kind: input, shape index: {}]
  %s24 = inlined_call_operand.vmem [shape: f32[1,32], index: 24, kind: input, shape index: {}, may-alias: {9,16,18,20,22,24,26}]
  %s25 = inlined_call_operand.vmem [shape: bf16[32,32], index: 25, kind: input, shape index: {}]
  %s26 = inlined_call_operand.vmem [shape: f32[1,32], index: 26, kind: input, shape index: {}, may-alias: {9,16,18,20,22,24,26}]
  %s27 = inlined_call_operand.vmem [shape: f32[2,8,32], index: 27, kind: output, shape index: {}]
  %s28 = sld [smem:[#allocation0]]
  $region141: #{_lambda_.9} parent=0
    _
  %s30 = ssub.s32 1, %s28
  %s31 = scalar_select 0, %s30, %s28
  loop: start=0, step=1, limit=4
  $region2: #{_lambda_.9} parent=0 // loop_pre_header
    _
  $region3: #{_lambda_.9} parent=0 // loop_header
    %s33 = sphi 0, %s37
    %p34 = scmp.ge.s32.totalorder %s33, 4
    %s43 = sphi 0, %s45
    %s46 = sphi 0, %s43
    %s47 = sphi 0, %s46
    %s63 = sphi 0, %s47
    %s69 = sphi 0, %s71
    %s72 = sphi 0, %s69
    %s73 = sphi 0, %s72
    %s89 = sphi 0, %s73
    %s95 = sphi 0, %s97
    %s98 = sphi 0, %s95
    %s99 = sphi 0, %s98
    %s115 = sphi 0, %s99
    %s119 = sphi 0, %s119
    %s121 = sphi 0, %s119
    %s122 = sphi 0, %s121
    %s136 = sphi 0, %s122
    %s140 = sphi 0, %s140
    %s142 = sphi 0, %s140
    %s143 = sphi 0, %s142
    %s157 = sphi 0, %s143
    %s161 = sphi 0, %s161
    %s163 = sphi 0, %s161
    %s164 = sphi 0, %s163
    %s178 = sphi 0, %s164
    %s182 = sphi 0, %s182
    %s184 = sphi 0, %s182
    %s185 = sphi 0, %s184
    %s199 = sphi 0, %s185
    %s203 = sphi 0, %s203
    %s205 = sphi 0, %s203
    %s206 = sphi 0, %s205
    %s220 = sphi 0, %s206
    %s224 = sphi 0, %s224
    %s226 = sphi 0, %s224
    %s227 = sphi 0, %s226
    %s241 = sphi 0, %s227
    %s245 = sphi 0, %s245
    %s247 = sphi 0, %s245
    %s248 = sphi 0, %s247
    %s262 = sphi 0, %s248
    %s266 = sphi 0, %s266
    %s268 = sphi 0, %s266
    %s269 = sphi 0, %s268
    %s283 = sphi 0, %s269
    %s287 = sphi 0, %s287
    %s289 = sphi 0, %s287
    %s290 = sphi 0, %s289
    %s304 = sphi 0, %s290
    %s308 = sphi 0, %s308
    %s310 = sphi 0, %s308
    %s311 = sphi 0, %s310
    %s325 = sphi 0, %s311
    %s329 = sphi 0, %s329
    %s331 = sphi 0, %s329
    %s332 = sphi 0, %s331
    %s346 = sphi 0, %s332
    %s350 = sphi 0, %s350
    %s352 = sphi 0, %s350
    %s353 = sphi 0, %s352
    %s367 = sphi 0, %s353
    %s371 = sphi 0, %s371
    %s373 = sphi 0, %s371
    %s374 = sphi 0, %s373
    %s388 = sphi 0, %s374
    %s392 = sphi 0, %s392
    %s394 = sphi 0, %s392
    %s395 = sphi 0, %s394
    %s409 = sphi 0, %s395
    %s413 = sphi 0, %s413
    %s415 = sphi 0, %s413
    %s416 = sphi 0, %s415
    %s430 = sphi 0, %s416
    %s434 = sphi 0, %s434
    %s436 = sphi 0, %s434
    %s437 = sphi 0, %s436
    %s451 = sphi 0, %s437
    %s455 = sphi 0, %s455
    %s457 = sphi 0, %s455
    %s458 = sphi 0, %s457
    %s472 = sphi 0, %s458
    %s476 = sphi 0, %s476
    %s478 = sphi 0, %s476
    %s479 = sphi 0, %s478
    %s493 = sphi 0, %s479
    %s497 = sphi 0, %s497
    %s499 = sphi 0, %s497
    %s500 = sphi 0, %s499
    %s514 = sphi 0, %s500
    %s518 = sphi 0, %s518
    %s520 = sphi 0, %s518
    %s521 = sphi 0, %s520
    %s535 = sphi 0, %s521
    %s539 = sphi 0, %s539
    %s541 = sphi 0, %s539
    %s542 = sphi 0, %s541
    %s556 = sphi 0, %s542
    %s560 = sphi 0, %s560
    %s562 = sphi 0, %s560
    %s563 = sphi 0, %s562
    %s577 = sphi 0, %s563
    %s581 = sphi 0, %s581
    %s583 = sphi 0, %s581
    %s584 = sphi 0, %s583
    %s598 = sphi 0, %s584
    %s602 = sphi 0, %s602
    %s604 = sphi 0, %s602
    %s605 = sphi 0, %s604
    %s619 = sphi 0, %s605
    %s625 = sphi 0, %s627
    %s628 = sphi 0, %s625
    %s629 = sphi 0, %s628
    %s645 = sphi 0, %s629
  $region4: #{_lambda_.9} parent=0 // loop_header_branch
    %36 = sbr.rel (%p34) target = $region8
  $region5: #{_lambda_.9} parent=0 // loop_body
    %s38 = ssub.s32 %s33, 1
    %s39 = ssub.s32 %s33, 2
    %s40 = sadd.s32 %s33, 1
    %s41 = ssub.s32 %s33, %s40
    %p42 = scmp.eq.s32.totalorder %s41, 0
    %s44 = sadd.s32 %s43, 1
    %s45 = scalar_select %p42, %s43, %s44
    %p48 = pneg %p42
    %p49 = scmp.eq.s32.totalorder %s33, 1
    %p50 = por %p48, %p49
    %p51 = scmp.ne.s32.totalorder %s43, %s46
    %p52 = scmp.eq.s32.totalorder %s33, 0
    %p53 = por %p51, %p52
    %p54 = scmp.ne.s32.totalorder %s43, %s46
    %p55 = scmp.eq.s32.totalorder %s38, 1
    %p56 = por %p54, %p55
    %p57 = scmp.ne.s32.totalorder %s46, %s47
    %p58 = scmp.eq.s32.totalorder %s38, 0
    %p59 = por %p57, %p58
    %p60 = scmp.ne.s32.totalorder %s46, %s47
    %p61 = scmp.eq.s32.totalorder %s39, 1
    %p62 = por %p60, %p61
    %p64 = scmp.ne.s32.totalorder %s47, %s63
    %p65 = scmp.eq.s32.totalorder %s39, 0
    %p66 = por %p64, %p65
    %s67 = ssub.s32 %s33, %s40
    %p68 = scmp.eq.s32.totalorder %s67, 0
    %s70 = sadd.s32 %s69, 1
    %s71 = scalar_select %p68, %s69, %s70
    %p74 = pneg %p68
    %p75 = scmp.eq.s32.totalorder %s33, 1
    %p76 = por %p74, %p75
    %p77 = scmp.ne.s32.totalorder %s69, %s72
    %p78 = scmp.eq.s32.totalorder %s33, 0
    %p79 = por %p77, %p78
    %p80 = scmp.ne.s32.totalorder %s69, %s72
    %p81 = scmp.eq.s32.totalorder %s38, 1
    %p82 = por %p80, %p81
    %p83 = scmp.ne.s32.totalorder %s72, %s73
    %p84 = scmp.eq.s32.totalorder %s38, 0
    %p85 = por %p83, %p84
    %p86 = scmp.ne.s32.totalorder %s72, %s73
    %p87 = scmp.eq.s32.totalorder %s39, 1
    %p88 = por %p86, %p87
    %p90 = scmp.ne.s32.totalorder %s73, %s89
    %p91 = scmp.eq.s32.totalorder %s39, 0
    %p92 = por %p90, %p91
    %s93 = ssub.s32 %s33, %s40
    %p94 = scmp.eq.s32.totalorder %s93, 0
    %s96 = sadd.s32 %s95, 1
    %s97 = scalar_select %p94, %s95, %s96
    %p100 = pneg %p94
    %p101 = scmp.eq.s32.totalorder %s33, 1
    %p102 = por %p100, %p101
    %p103 = scmp.ne.s32.totalorder %s95, %s98
    %p104 = scmp.eq.s32.totalorder %s33, 0
    %p105 = por %p103, %p104
    %p106 = scmp.ne.s32.totalorder %s95, %s98
    %p107 = scmp.eq.s32.totalorder %s38, 1
    %p108 = por %p106, %p107
    %p109 = scmp.ne.s32.totalorder %s98, %s99
    %p110 = scmp.eq.s32.totalorder %s38, 0
    %p111 = por %p109, %p110
    %p112 = scmp.ne.s32.totalorder %s98, %s99
    %p113 = scmp.eq.s32.totalorder %s39, 1
    %p114 = por %p112, %p113
    %p116 = scmp.ne.s32.totalorder %s99, %s115
    %p117 = scmp.eq.s32.totalorder %s39, 0
    %p118 = por %p116, %p117
    %s120 = sadd.s32 %s119, 1
    %p123 = scmp.eq.s32.totalorder %s33, 1
    %p124 = scmp.ne.s32.totalorder %s119, %s121
    %p125 = scmp.eq.s32.totalorder %s33, 0
    %p126 = por %p124, %p125
    %p127 = scmp.ne.s32.totalorder %s119, %s121
    %p128 = scmp.eq.s32.totalorder %s38, 1
    %p129 = por %p127, %p128
    %p130 = scmp.ne.s32.totalorder %s121, %s122
    %p131 = scmp.eq.s32.totalorder %s38, 0
    %p132 = por %p130, %p131
    %p133 = scmp.ne.s32.totalorder %s121, %s122
    %p134 = scmp.eq.s32.totalorder %s39, 1
    %p135 = por %p133, %p134
    %p137 = scmp.ne.s32.totalorder %s122, %s136
    %p138 = scmp.eq.s32.totalorder %s39, 0
    %p139 = por %p137, %p138
    %s141 = sadd.s32 %s140, 1
    %p144 = scmp.eq.s32.totalorder %s33, 1
    %p145 = scmp.ne.s32.totalorder %s140, %s142
    %p146 = scmp.eq.s32.totalorder %s33, 0
    %p147 = por %p145, %p146
    %p148 = scmp.ne.s32.totalorder %s140, %s142
    %p149 = scmp.eq.s32.totalorder %s38, 1
    %p150 = por %p148, %p149
    %p151 = scmp.ne.s32.totalorder %s142, %s143
    %p152 = scmp.eq.s32.totalorder %s38, 0
    %p153 = por %p151, %p152
    %p154 = scmp.ne.s32.totalorder %s142, %s143
    %p155 = scmp.eq.s32.totalorder %s39, 1
    %p156 = por %p154, %p155
    %p158 = scmp.ne.s32.totalorder %s143, %s157
    %p159 = scmp.eq.s32.totalorder %s39, 0
    %p160 = por %p158, %p159
    %s162 = sadd.s32 %s161, 1
    %p165 = scmp.eq.s32.totalorder %s33, 1
    %p166 = scmp.ne.s32.totalorder %s161, %s163
    %p167 = scmp.eq.s32.totalorder %s33, 0
    %p168 = por %p166, %p167
    %p169 = scmp.ne.s32.totalorder %s161, %s163
    %p170 = scmp.eq.s32.totalorder %s38, 1
    %p171 = por %p169, %p170
    %p172 = scmp.ne.s32.totalorder %s163, %s164
    %p173 = scmp.eq.s32.totalorder %s38, 0
    %p174 = por %p172, %p173
    %p175 = scmp.ne.s32.totalorder %s163, %s164
    %p176 = scmp.eq.s32.totalorder %s39, 1
    %p177 = por %p175, %p176
    %p179 = scmp.ne.s32.totalorder %s164, %s178
    %p180 = scmp.eq.s32.totalorder %s39, 0
    %p181 = por %p179, %p180
    %s183 = sadd.s32 %s182, 1
    %p186 = scmp.eq.s32.totalorder %s33, 1
    %p187 = scmp.ne.s32.totalorder %s182, %s184
    %p188 = scmp.eq.s32.totalorder %s33, 0
    %p189 = por %p187, %p188
    %p190 = scmp.ne.s32.totalorder %s182, %s184
    %p191 = scmp.eq.s32.totalorder %s38, 1
    %p192 = por %p190, %p191
    %p193 = scmp.ne.s32.totalorder %s184, %s185
    %p194 = scmp.eq.s32.totalorder %s38, 0
    %p195 = por %p193, %p194
    %p196 = scmp.ne.s32.totalorder %s184, %s185
    %p197 = scmp.eq.s32.totalorder %s39, 1
    %p198 = por %p196, %p197
    %p200 = scmp.ne.s32.totalorder %s185, %s199
    %p201 = scmp.eq.s32.totalorder %s39, 0
    %p202 = por %p200, %p201
    %s204 = sadd.s32 %s203, 1
    %p207 = scmp.eq.s32.totalorder %s33, 1
    %p208 = scmp.ne.s32.totalorder %s203, %s205
    %p209 = scmp.eq.s32.totalorder %s33, 0
    %p210 = por %p208, %p209
    %p211 = scmp.ne.s32.totalorder %s203, %s205
    %p212 = scmp.eq.s32.totalorder %s38, 1
    %p213 = por %p211, %p212
    %p214 = scmp.ne.s32.totalorder %s205, %s206
    %p215 = scmp.eq.s32.totalorder %s38, 0
    %p216 = por %p214, %p215
    %p217 = scmp.ne.s32.totalorder %s205, %s206
    %p218 = scmp.eq.s32.totalorder %s39, 1
    %p219 = por %p217, %p218
    %p221 = scmp.ne.s32.totalorder %s206, %s220
    %p222 = scmp.eq.s32.totalorder %s39, 0
    %p223 = por %p221, %p222
    %s225 = sadd.s32 %s224, 1
    %p228 = scmp.eq.s32.totalorder %s33, 1
    %p229 = scmp.ne.s32.totalorder %s224, %s226
    %p230 = scmp.eq.s32.totalorder %s33, 0
    %p231 = por %p229, %p230
    %p232 = scmp.ne.s32.totalorder %s224, %s226
    %p233 = scmp.eq.s32.totalorder %s38, 1
    %p234 = por %p232, %p233
    %p235 = scmp.ne.s32.totalorder %s226, %s227
    %p236 = scmp.eq.s32.totalorder %s38, 0
    %p237 = por %p235, %p236
    %p238 = scmp.ne.s32.totalorder %s226, %s227
    %p239 = scmp.eq.s32.totalorder %s39, 1
    %p240 = por %p238, %p239
    %p242 = scmp.ne.s32.totalorder %s227, %s241
    %p243 = scmp.eq.s32.totalorder %s39, 0
    %p244 = por %p242, %p243
    %s246 = sadd.s32 %s245, 1
    %p249 = scmp.eq.s32.totalorder %s33, 1
    %p250 = scmp.ne.s32.totalorder %s245, %s247
    %p251 = scmp.eq.s32.totalorder %s33, 0
    %p252 = por %p250, %p251
    %p253 = scmp.ne.s32.totalorder %s245, %s247
    %p254 = scmp.eq.s32.totalorder %s38, 1
    %p255 = por %p253, %p254
    %p256 = scmp.ne.s32.totalorder %s247, %s248
    %p257 = scmp.eq.s32.totalorder %s38, 0
    %p258 = por %p256, %p257
    %p259 = scmp.ne.s32.totalorder %s247, %s248
    %p260 = scmp.eq.s32.totalorder %s39, 1
    %p261 = por %p259, %p260
    %p263 = scmp.ne.s32.totalorder %s248, %s262
    %p264 = scmp.eq.s32.totalorder %s39, 0
    %p265 = por %p263, %p264
    %s267 = sadd.s32 %s266, 1
    %p270 = scmp.eq.s32.totalorder %s33, 1
    %p271 = scmp.ne.s32.totalorder %s266, %s268
    %p272 = scmp.eq.s32.totalorder %s33, 0
    %p273 = por %p271, %p272
    %p274 = scmp.ne.s32.totalorder %s266, %s268
    %p275 = scmp.eq.s32.totalorder %s38, 1
    %p276 = por %p274, %p275
    %p277 = scmp.ne.s32.totalorder %s268, %s269
    %p278 = scmp.eq.s32.totalorder %s38, 0
    %p279 = por %p277, %p278
    %p280 = scmp.ne.s32.totalorder %s268, %s269
    %p281 = scmp.eq.s32.totalorder %s39, 1
    %p282 = por %p280, %p281
    %p284 = scmp.ne.s32.totalorder %s269, %s283
    %p285 = scmp.eq.s32.totalorder %s39, 0
    %p286 = por %p284, %p285
    %s288 = sadd.s32 %s287, 1
    %p291 = scmp.eq.s32.totalorder %s33, 1
    %p292 = scmp.ne.s32.totalorder %s287, %s289
    %p293 = scmp.eq.s32.totalorder %s33, 0
    %p294 = por %p292, %p293
    %p295 = scmp.ne.s32.totalorder %s287, %s289
    %p296 = scmp.eq.s32.totalorder %s38, 1
    %p297 = por %p295, %p296
    %p298 = scmp.ne.s32.totalorder %s289, %s290
    %p299 = scmp.eq.s32.totalorder %s38, 0
    %p300 = por %p298, %p299
    %p301 = scmp.ne.s32.totalorder %s289, %s290
    %p302 = scmp.eq.s32.totalorder %s39, 1
    %p303 = por %p301, %p302
    %p305 = scmp.ne.s32.totalorder %s290, %s304
    %p306 = scmp.eq.s32.totalorder %s39, 0
    %p307 = por %p305, %p306
    %s309 = sadd.s32 %s308, 1
    %p312 = scmp.eq.s32.totalorder %s33, 1
    %p313 = scmp.ne.s32.totalorder %s308, %s310
    %p314 = scmp.eq.s32.totalorder %s33, 0
    %p315 = por %p313, %p314
    %p316 = scmp.ne.s32.totalorder %s308, %s310
    %p317 = scmp.eq.s32.totalorder %s38, 1
    %p318 = por %p316, %p317
    %p319 = scmp.ne.s32.totalorder %s310, %s311
    %p320 = scmp.eq.s32.totalorder %s38, 0
    %p321 = por %p319, %p320
    %p322 = scmp.ne.s32.totalorder %s310, %s311
    %p323 = scmp.eq.s32.totalorder %s39, 1
    %p324 = por %p322, %p323
    %p326 = scmp.ne.s32.totalorder %s311, %s325
    %p327 = scmp.eq.s32.totalorder %s39, 0
    %p328 = por %p326, %p327
    %s330 = sadd.s32 %s329, 1
    %p333 = scmp.eq.s32.totalorder %s33, 1
    %p334 = scmp.ne.s32.totalorder %s329, %s331
    %p335 = scmp.eq.s32.totalorder %s33, 0
    %p336 = por %p334, %p335
    %p337 = scmp.ne.s32.totalorder %s329, %s331
    %p338 = scmp.eq.s32.totalorder %s38, 1
    %p339 = por %p337, %p338
    %p340 = scmp.ne.s32.totalorder %s331, %s332
    %p341 = scmp.eq.s32.totalorder %s38, 0
    %p342 = por %p340, %p341
    %p343 = scmp.ne.s32.totalorder %s331, %s332
    %p344 = scmp.eq.s32.totalorder %s39, 1
    %p345 = por %p343, %p344
    %p347 = scmp.ne.s32.totalorder %s332, %s346
    %p348 = scmp.eq.s32.totalorder %s39, 0
    %p349 = por %p347, %p348
    %s351 = sadd.s32 %s350, 1
    %p354 = scmp.eq.s32.totalorder %s33, 1
    %p355 = scmp.ne.s32.totalorder %s350, %s352
    %p356 = scmp.eq.s32.totalorder %s33, 0
    %p357 = por %p355, %p356
    %p358 = scmp.ne.s32.totalorder %s350, %s352
    %p359 = scmp.eq.s32.totalorder %s38, 1
    %p360 = por %p358, %p359
    %p361 = scmp.ne.s32.totalorder %s352, %s353
    %p362 = scmp.eq.s32.totalorder %s38, 0
    %p363 = por %p361, %p362
    %p364 = scmp.ne.s32.totalorder %s352, %s353
    %p365 = scmp.eq.s32.totalorder %s39, 1
    %p366 = por %p364, %p365
    %p368 = scmp.ne.s32.totalorder %s353, %s367
    %p369 = scmp.eq.s32.totalorder %s39, 0
    %p370 = por %p368, %p369
    %s372 = sadd.s32 %s371, 1
    %p375 = scmp.eq.s32.totalorder %s33, 1
    %p376 = scmp.ne.s32.totalorder %s371, %s373
    %p377 = scmp.eq.s32.totalorder %s33, 0
    %p378 = por %p376, %p377
    %p379 = scmp.ne.s32.totalorder %s371, %s373
    %p380 = scmp.eq.s32.totalorder %s38, 1
    %p381 = por %p379, %p380
    %p382 = scmp.ne.s32.totalorder %s373, %s374
    %p383 = scmp.eq.s32.totalorder %s38, 0
    %p384 = por %p382, %p383
    %p385 = scmp.ne.s32.totalorder %s373, %s374
    %p386 = scmp.eq.s32.totalorder %s39, 1
    %p387 = por %p385, %p386
    %p389 = scmp.ne.s32.totalorder %s374, %s388
    %p390 = scmp.eq.s32.totalorder %s39, 0
    %p391 = por %p389, %p390
    %s393 = sadd.s32 %s392, 1
    %p396 = scmp.eq.s32.totalorder %s33, 1
    %p397 = scmp.ne.s32.totalorder %s392, %s394
    %p398 = scmp.eq.s32.totalorder %s33, 0
    %p399 = por %p397, %p398
    %p400 = scmp.ne.s32.totalorder %s392, %s394
    %p401 = scmp.eq.s32.totalorder %s38, 1
    %p402 = por %p400, %p401
    %p403 = scmp.ne.s32.totalorder %s394, %s395
    %p404 = scmp.eq.s32.totalorder %s38, 0
    %p405 = por %p403, %p404
    %p406 = scmp.ne.s32.totalorder %s394, %s395
    %p407 = scmp.eq.s32.totalorder %s39, 1
    %p408 = por %p406, %p407
    %p410 = scmp.ne.s32.totalorder %s395, %s409
    %p411 = scmp.eq.s32.totalorder %s39, 0
    %p412 = por %p410, %p411
    %s414 = sadd.s32 %s413, 1
    %p417 = scmp.eq.s32.totalorder %s33, 1
    %p418 = scmp.ne.s32.totalorder %s413, %s415
    %p419 = scmp.eq.s32.totalorder %s33, 0
    %p420 = por %p418, %p419
    %p421 = scmp.ne.s32.totalorder %s413, %s415
    %p422 = scmp.eq.s32.totalorder %s38, 1
    %p423 = por %p421, %p422
    %p424 = scmp.ne.s32.totalorder %s415, %s416
    %p425 = scmp.eq.s32.totalorder %s38, 0
    %p426 = por %p424, %p425
    %p427 = scmp.ne.s32.totalorder %s415, %s416
    %p428 = scmp.eq.s32.totalorder %s39, 1
    %p429 = por %p427, %p428
    %p431 = scmp.ne.s32.totalorder %s416, %s430
    %p432 = scmp.eq.s32.totalorder %s39, 0
    %p433 = por %p431, %p432
    %s435 = sadd.s32 %s434, 1
    %p438 = scmp.eq.s32.totalorder %s33, 1
    %p439 = scmp.ne.s32.totalorder %s434, %s436
    %p440 = scmp.eq.s32.totalorder %s33, 0
    %p441 = por %p439, %p440
    %p442 = scmp.ne.s32.totalorder %s434, %s436
    %p443 = scmp.eq.s32.totalorder %s38, 1
    %p444 = por %p442, %p443
    %p445 = scmp.ne.s32.totalorder %s436, %s437
    %p446 = scmp.eq.s32.totalorder %s38, 0
    %p447 = por %p445, %p446
    %p448 = scmp.ne.s32.totalorder %s436, %s437
    %p449 = scmp.eq.s32.totalorder %s39, 1
    %p450 = por %p448, %p449
    %p452 = scmp.ne.s32.totalorder %s437, %s451
    %p453 = scmp.eq.s32.totalorder %s39, 0
    %p454 = por %p452, %p453
    %s456 = sadd.s32 %s455, 1
    %p459 = scmp.eq.s32.totalorder %s33, 1
    %p460 = scmp.ne.s32.totalorder %s455, %s457
    %p461 = scmp.eq.s32.totalorder %s33, 0
    %p462 = por %p460, %p461
    %p463 = scmp.ne.s32.totalorder %s455, %s457
    %p464 = scmp.eq.s32.totalorder %s38, 1
    %p465 = por %p463, %p464
    %p466 = scmp.ne.s32.totalorder %s457, %s458
    %p467 = scmp.eq.s32.totalorder %s38, 0
    %p468 = por %p466, %p467
    %p469 = scmp.ne.s32.totalorder %s457, %s458
    %p470 = scmp.eq.s32.totalorder %s39, 1
    %p471 = por %p469, %p470
    %p473 = scmp.ne.s32.totalorder %s458, %s472
    %p474 = scmp.eq.s32.totalorder %s39, 0
    %p475 = por %p473, %p474
    %s477 = sadd.s32 %s476, 1
    %p480 = scmp.eq.s32.totalorder %s33, 1
    %p481 = scmp.ne.s32.totalorder %s476, %s478
    %p482 = scmp.eq.s32.totalorder %s33, 0
    %p483 = por %p481, %p482
    %p484 = scmp.ne.s32.totalorder %s476, %s478
    %p485 = scmp.eq.s32.totalorder %s38, 1
    %p486 = por %p484, %p485
    %p487 = scmp.ne.s32.totalorder %s478, %s479
    %p488 = scmp.eq.s32.totalorder %s38, 0
    %p489 = por %p487, %p488
    %p490 = scmp.ne.s32.totalorder %s478, %s479
    %p491 = scmp.eq.s32.totalorder %s39, 1
    %p492 = por %p490, %p491
    %p494 = scmp.ne.s32.totalorder %s479, %s493
    %p495 = scmp.eq.s32.totalorder %s39, 0
    %p496 = por %p494, %p495
    %s498 = sadd.s32 %s497, 1
    %p501 = scmp.eq.s32.totalorder %s33, 1
    %p502 = scmp.ne.s32.totalorder %s497, %s499
    %p503 = scmp.eq.s32.totalorder %s33, 0
    %p504 = por %p502, %p503
    %p505 = scmp.ne.s32.totalorder %s497, %s499
    %p506 = scmp.eq.s32.totalorder %s38, 1
    %p507 = por %p505, %p506
    %p508 = scmp.ne.s32.totalorder %s499, %s500
    %p509 = scmp.eq.s32.totalorder %s38, 0
    %p510 = por %p508, %p509
    %p511 = scmp.ne.s32.totalorder %s499, %s500
    %p512 = scmp.eq.s32.totalorder %s39, 1
    %p513 = por %p511, %p512
    %p515 = scmp.ne.s32.totalorder %s500, %s514
    %p516 = scmp.eq.s32.totalorder %s39, 0
    %p517 = por %p515, %p516
    %s519 = sadd.s32 %s518, 1
    %p522 = scmp.eq.s32.totalorder %s33, 1
    %p523 = scmp.ne.s32.totalorder %s518, %s520
    %p524 = scmp.eq.s32.totalorder %s33, 0
    %p525 = por %p523, %p524
    %p526 = scmp.ne.s32.totalorder %s518, %s520
    %p527 = scmp.eq.s32.totalorder %s38, 1
    %p528 = por %p526, %p527
    %p529 = scmp.ne.s32.totalorder %s520, %s521
    %p530 = scmp.eq.s32.totalorder %s38, 0
    %p531 = por %p529, %p530
    %p532 = scmp.ne.s32.totalorder %s520, %s521
    %p533 = scmp.eq.s32.totalorder %s39, 1
    %p534 = por %p532, %p533
    %p536 = scmp.ne.s32.totalorder %s521, %s535
    %p537 = scmp.eq.s32.totalorder %s39, 0
    %p538 = por %p536, %p537
    %s540 = sadd.s32 %s539, 1
    %p543 = scmp.eq.s32.totalorder %s33, 1
    %p544 = scmp.ne.s32.totalorder %s539, %s541
    %p545 = scmp.eq.s32.totalorder %s33, 0
    %p546 = por %p544, %p545
    %p547 = scmp.ne.s32.totalorder %s539, %s541
    %p548 = scmp.eq.s32.totalorder %s38, 1
    %p549 = por %p547, %p548
    %p550 = scmp.ne.s32.totalorder %s541, %s542
    %p551 = scmp.eq.s32.totalorder %s38, 0
    %p552 = por %p550, %p551
    %p553 = scmp.ne.s32.totalorder %s541, %s542
    %p554 = scmp.eq.s32.totalorder %s39, 1
    %p555 = por %p553, %p554
    %p557 = scmp.ne.s32.totalorder %s542, %s556
    %p558 = scmp.eq.s32.totalorder %s39, 0
    %p559 = por %p557, %p558
    %s561 = sadd.s32 %s560, 1
    %p564 = scmp.eq.s32.totalorder %s33, 1
    %p565 = scmp.ne.s32.totalorder %s560, %s562
    %p566 = scmp.eq.s32.totalorder %s33, 0
    %p567 = por %p565, %p566
    %p568 = scmp.ne.s32.totalorder %s560, %s562
    %p569 = scmp.eq.s32.totalorder %s38, 1
    %p570 = por %p568, %p569
    %p571 = scmp.ne.s32.totalorder %s562, %s563
    %p572 = scmp.eq.s32.totalorder %s38, 0
    %p573 = por %p571, %p572
    %p574 = scmp.ne.s32.totalorder %s562, %s563
    %p575 = scmp.eq.s32.totalorder %s39, 1
    %p576 = por %p574, %p575
    %p578 = scmp.ne.s32.totalorder %s563, %s577
    %p579 = scmp.eq.s32.totalorder %s39, 0
    %p580 = por %p578, %p579
    %s582 = sadd.s32 %s581, 1
    %p585 = scmp.eq.s32.totalorder %s33, 1
    %p586 = scmp.ne.s32.totalorder %s581, %s583
    %p587 = scmp.eq.s32.totalorder %s33, 0
    %p588 = por %p586, %p587
    %p589 = scmp.ne.s32.totalorder %s581, %s583
    %p590 = scmp.eq.s32.totalorder %s38, 1
    %p591 = por %p589, %p590
    %p592 = scmp.ne.s32.totalorder %s583, %s584
    %p593 = scmp.eq.s32.totalorder %s38, 0
    %p594 = por %p592, %p593
    %p595 = scmp.ne.s32.totalorder %s583, %s584
    %p596 = scmp.eq.s32.totalorder %s39, 1
    %p597 = por %p595, %p596
    %p599 = scmp.ne.s32.totalorder %s584, %s598
    %p600 = scmp.eq.s32.totalorder %s39, 0
    %p601 = por %p599, %p600
    %s603 = sadd.s32 %s602, 1
    %p606 = scmp.eq.s32.totalorder %s33, 1
    %p607 = scmp.ne.s32.totalorder %s602, %s604
    %p608 = scmp.eq.s32.totalorder %s33, 0
    %p609 = por %p607, %p608
    %p610 = scmp.ne.s32.totalorder %s602, %s604
    %p611 = scmp.eq.s32.totalorder %s38, 1
    %p612 = por %p610, %p611
    %p613 = scmp.ne.s32.totalorder %s604, %s605
    %p614 = scmp.eq.s32.totalorder %s38, 0
    %p615 = por %p613, %p614
    %p616 = scmp.ne.s32.totalorder %s604, %s605
    %p617 = scmp.eq.s32.totalorder %s39, 1
    %p618 = por %p616, %p617
    %p620 = scmp.ne.s32.totalorder %s605, %s619
    %p621 = scmp.eq.s32.totalorder %s39, 0
    %p622 = por %p620, %p621
    %s623 = ssub.s32 %s33, %s40
    %p624 = scmp.eq.s32.totalorder %s623, 0
    %s626 = sadd.s32 %s625, 1
    %s627 = scalar_select %p624, %s625, %s626
    %p630 = pneg %p624
    %p631 = scmp.eq.s32.totalorder %s33, 1
    %p632 = por %p630, %p631
    %p633 = scmp.ne.s32.totalorder %s625, %s628
    %p634 = scmp.eq.s32.totalorder %s33, 0
    %p635 = por %p633, %p634
    %p636 = scmp.ne.s32.totalorder %s625, %s628
    %p637 = scmp.eq.s32.totalorder %s38, 1
    %p638 = por %p636, %p637
    %p639 = scmp.ne.s32.totalorder %s628, %s629
    %p640 = scmp.eq.s32.totalorder %s38, 0
    %p641 = por %p639, %p640
    %p642 = scmp.ne.s32.totalorder %s628, %s629
    %p643 = scmp.eq.s32.totalorder %s39, 1
    %p644 = por %p642, %p643
    %p646 = scmp.ne.s32.totalorder %s629, %s645
    %p647 = scmp.eq.s32.totalorder %s39, 0
    %p648 = por %p646, %p647
    %p649 = scmp.le.s32.totalorder 1, %s33
    %p650 = scmp.lt.s32.totalorder %s33, 3
    %p651 = pnand %p649, %p650
    %p652 = pneg %p651
    // Predicated region
    $region9: #{_lambda_.9} parent=5 // pred_check
      _
    $region10: #{_lambda_.9} parent=5 // pred_check_branch
      %654 = sbr.rel (%p651) target = $region12
    $region11: #{_lambda_.9} parent=5 // pred_region
      %s655 = ssub.s32 %s33, 1
      // Predicated region
      $region13: #{_lambda_.9} parent=11 // pred_check
        %p656 = pneg %p132
      $region14: #{_lambda_.9} parent=11 // pred_check_branch
        %658 = sbr.rel (%p656) target = $region16
      $region15: #{_lambda_.9} parent=11 // pred_region
        _
      $region16: #{_lambda_.9} parent=11 // pred_fallthru
        _
      // Predicated region
      $region17: #{_lambda_.9} parent=11 // pred_check
        %p659 = pneg %p153
      $region18: #{_lambda_.9} parent=11 // pred_check_branch
        %661 = sbr.rel (%p659) target = $region20
      $region19: #{_lambda_.9} parent=11 // pred_region
        _
      $region20: #{_lambda_.9} parent=11 // pred_fallthru
        _
      // Predicated region
      $region21: #{_lambda_.9} parent=11 // pred_check
        %p662 = pneg %p174
      $region22: #{_lambda_.9} parent=11 // pred_check_branch
        %664 = sbr.rel (%p662) target = $region24
      $region23: #{_lambda_.9} parent=11 // pred_region
        _
      $region24: #{_lambda_.9} parent=11 // pred_fallthru
        _
      // Predicated region
      $region25: #{_lambda_.9} parent=11 // pred_check
        %p665 = pneg %p195
      $region26: #{_lambda_.9} parent=11 // pred_check_branch
        %667 = sbr.rel (%p665) target = $region28
      $region27: #{_lambda_.9} parent=11 // pred_region
        _
      $region28: #{_lambda_.9} parent=11 // pred_fallthru
        _
      // Predicated region
      $region29: #{_lambda_.9} parent=11 // pred_check
        %p668 = pneg %p216
      $region30: #{_lambda_.9} parent=11 // pred_check_branch
        %670 = sbr.rel (%p668) target = $region32
      $region31: #{_lambda_.9} parent=11 // pred_region
        _
      $region32: #{_lambda_.9} parent=11 // pred_fallthru
        _
      // Predicated region
      $region33: #{_lambda_.9} parent=11 // pred_check
        %p671 = pneg %p237
      $region34: #{_lambda_.9} parent=11 // pred_check_branch
        %673 = sbr.rel (%p671) target = $region36
      $region35: #{_lambda_.9} parent=11 // pred_region
        _
      $region36: #{_lambda_.9} parent=11 // pred_fallthru
        _
      // Predicated region
      $region37: #{_lambda_.9} parent=11 // pred_check
        %p674 = pneg %p258
      $region38: #{_lambda_.9} parent=11 // pred_check_branch
        %676 = sbr.rel (%p674) target = $region40
      $region39: #{_lambda_.9} parent=11 // pred_region
        _
      $region40: #{_lambda_.9} parent=11 // pred_fallthru
        _
      // Predicated region
      $region41: #{_lambda_.9} parent=11 // pred_check
        %p677 = pneg %p279
      $region42: #{_lambda_.9} parent=11 // pred_check_branch
        %679 = sbr.rel (%p677) target = $region44
      $region43: #{_lambda_.9} parent=11 // pred_region
        _
      $region44: #{_lambda_.9} parent=11 // pred_fallthru
        _
      // Predicated region
      $region45: #{_lambda_.9} parent=11 // pred_check
        %p680 = pneg %p300
      $region46: #{_lambda_.9} parent=11 // pred_check_branch
        %682 = sbr.rel (%p680) target = $region48
      $region47: #{_lambda_.9} parent=11 // pred_region
        _
      $region48: #{_lambda_.9} parent=11 // pred_fallthru
        _
      // Predicated region
      $region49: #{_lambda_.9} parent=11 // pred_check
        %p683 = pneg %p321
      $region50: #{_lambda_.9} parent=11 // pred_check_branch
        %685 = sbr.rel (%p683) target = $region52
      $region51: #{_lambda_.9} parent=11 // pred_region
        _
      $region52: #{_lambda_.9} parent=11 // pred_fallthru
        _
      // Predicated region
      $region53: #{_lambda_.9} parent=11 // pred_check
        %p686 = pneg %p342
      $region54: #{_lambda_.9} parent=11 // pred_check_branch
        %688 = sbr.rel (%p686) target = $region56
      $region55: #{_lambda_.9} parent=11 // pred_region
        _
      $region56: #{_lambda_.9} parent=11 // pred_fallthru
        _
      // Predicated region
      $region57: #{_lambda_.9} parent=11 // pred_check
        %p689 = pneg %p363
      $region58: #{_lambda_.9} parent=11 // pred_check_branch
        %691 = sbr.rel (%p689) target = $region60
      $region59: #{_lambda_.9} parent=11 // pred_region
        _
      $region60: #{_lambda_.9} parent=11 // pred_fallthru
        _
      // Predicated region
      $region61: #{_lambda_.9} parent=11 // pred_check
        %p692 = pneg %p384
      $region62: #{_lambda_.9} parent=11 // pred_check_branch
        %694 = sbr.rel (%p692) target = $region64
      $region63: #{_lambda_.9} parent=11 // pred_region
        _
      $region64: #{_lambda_.9} parent=11 // pred_fallthru
        _
      // Predicated region
      $region65: #{_lambda_.9} parent=11 // pred_check
        %p695 = pneg %p405
      $region66: #{_lambda_.9} parent=11 // pred_check_branch
        %697 = sbr.rel (%p695) target = $region68
      $region67: #{_lambda_.9} parent=11 // pred_region
        _
      $region68: #{_lambda_.9} parent=11 // pred_fallthru
        _
      // Predicated region
      $region69: #{_lambda_.9} parent=11 // pred_check
        %p698 = pneg %p426
      $region70: #{_lambda_.9} parent=11 // pred_check_branch
        %700 = sbr.rel (%p698) target = $region72
      $region71: #{_lambda_.9} parent=11 // pred_region
        _
      $region72: #{_lambda_.9} parent=11 // pred_fallthru
        _
      // Predicated region
      $region73: #{_lambda_.9} parent=11 // pred_check
        %p701 = pneg %p447
      $region74: #{_lambda_.9} parent=11 // pred_check_branch
        %703 = sbr.rel (%p701) target = $region76
      $region75: #{_lambda_.9} parent=11 // pred_region
        _
      $region76: #{_lambda_.9} parent=11 // pred_fallthru
        _
      // Predicated region
      $region77: #{_lambda_.9} parent=11 // pred_check
        %p704 = pneg %p468
      $region78: #{_lambda_.9} parent=11 // pred_check_branch
        %706 = sbr.rel (%p704) target = $region80
      $region79: #{_lambda_.9} parent=11 // pred_region
        _
      $region80: #{_lambda_.9} parent=11 // pred_fallthru
        _
      // Predicated region
      $region81: #{_lambda_.9} parent=11 // pred_check
        %p707 = pneg %p489
      $region82: #{_lambda_.9} parent=11 // pred_check_branch
        %709 = sbr.rel (%p707) target = $region84
      $region83: #{_lambda_.9} parent=11 // pred_region
        _
      $region84: #{_lambda_.9} parent=11 // pred_fallthru
        _
      // Predicated region
      $region85: #{_lambda_.9} parent=11 // pred_check
        %p710 = pneg %p510
      $region86: #{_lambda_.9} parent=11 // pred_check_branch
        %712 = sbr.rel (%p710) target = $region88
      $region87: #{_lambda_.9} parent=11 // pred_region
        _
      $region88: #{_lambda_.9} parent=11 // pred_fallthru
        _
      // Predicated region
      $region89: #{_lambda_.9} parent=11 // pred_check
        %p713 = pneg %p531
      $region90: #{_lambda_.9} parent=11 // pred_check_branch
        %715 = sbr.rel (%p713) target = $region92
      $region91: #{_lambda_.9} parent=11 // pred_region
        _
      $region92: #{_lambda_.9} parent=11 // pred_fallthru
        _
      // Predicated region
      $region93: #{_lambda_.9} parent=11 // pred_check
        %p716 = pneg %p552
      $region94: #{_lambda_.9} parent=11 // pred_check_branch
        %718 = sbr.rel (%p716) target = $region96
      $region95: #{_lambda_.9} parent=11 // pred_region
        _
      $region96: #{_lambda_.9} parent=11 // pred_fallthru
        _
      // Predicated region
      $region97: #{_lambda_.9} parent=11 // pred_check
        %p719 = pneg %p573
      $region98: #{_lambda_.9} parent=11 // pred_check_branch
        %721 = sbr.rel (%p719) target = $region100
      $region99: #{_lambda_.9} parent=11 // pred_region
        _
      $region100: #{_lambda_.9} parent=11 // pred_fallthru
        _
      // Predicated region
      $region101: #{_lambda_.9} parent=11 // pred_check
        %p722 = pneg %p594
      $region102: #{_lambda_.9} parent=11 // pred_check_branch
        %724 = sbr.rel (%p722) target = $region104
      $region103: #{_lambda_.9} parent=11 // pred_region
        _
      $region104: #{_lambda_.9} parent=11 // pred_fallthru
        _
      // Predicated region
      $region105: #{_lambda_.9} parent=11 // pred_check
        %p725 = pneg %p615
      $region106: #{_lambda_.9} parent=11 // pred_check_branch
        %727 = sbr.rel (%p725) target = $region108
      $region107: #{_lambda_.9} parent=11 // pred_region
        _
      $region108: #{_lambda_.9} parent=11 // pred_fallthru
        _
    $region12: #{_lambda_.9} parent=5 // pred_fallthru
      _
    %p728 = scmp.lt.s32.totalorder %s33, 2
    // Predicated region
    $region109: #{_lambda_.9} parent=5 // pred_check
      %p729 = pneg %p728
    $region110: #{_lambda_.9} parent=5 // pred_check_branch
      %731 = sbr.rel (%p729) target = $region112
    $region111: #{_lambda_.9} parent=5 // pred_region
      // Predicated region
      $region113: #{_lambda_.9} parent=111 // pred_check
        %p732 = pneg %p53
      $region114: #{_lambda_.9} parent=111 // pred_check_branch
        %734 = sbr.rel (%p732) target = $region116
      $region115: #{_lambda_.9} parent=111 // pred_region
        %p735 = scmp.lt.s32.totalorder %s33, 1
        %s736 = scalar_select %p735, %s33, 1
        %s737 = smul.addr %s736, 8
        %s738 = scalar_lea.vmem %s0, %s737
      $region116: #{_lambda_.9} parent=111 // pred_fallthru
        _
      // Predicated region
      $region117: #{_lambda_.9} parent=111 // pred_check
        %p739 = pneg %p79
      $region118: #{_lambda_.9} parent=111 // pred_check_branch
        %741 = sbr.rel (%p739) target = $region120
      $region119: #{_lambda_.9} parent=111 // pred_region
        %p742 = scmp.lt.s32.totalorder %s33, 1
        %s743 = scalar_select %p742, %s33, 1
        %s744 = scalar_lea.vmem %s1, %s743
      $region120: #{_lambda_.9} parent=111 // pred_fallthru
        _
      // Predicated region
      $region121: #{_lambda_.9} parent=111 // pred_check
        %p745 = pneg %p105
      $region122: #{_lambda_.9} parent=111 // pred_check_branch
        %747 = sbr.rel (%p745) target = $region124
      $region123: #{_lambda_.9} parent=111 // pred_region
        %p748 = scmp.lt.s32.totalorder %s33, 1
        %s749 = scalar_select %p748, %s33, 1
        %s750 = smul.addr %s749, 8
        %s751 = scalar_lea.vmem %s2, %s750
      $region124: #{_lambda_.9} parent=111 // pred_fallthru
        _
    $region112: #{_lambda_.9} parent=5 // pred_fallthru
      _
    %p752 = scmp.le.s32.totalorder 1, %s33
    %p753 = scmp.lt.s32.totalorder %s33, 3
    %p754 = pnand %p752, %p753
    %p755 = pneg %p754
    // Predicated region
    $region125: #{_lambda_.9} parent=5 // pred_check
      _
    $region126: #{_lambda_.9} parent=5 // pred_check_branch
      %757 = sbr.rel (%p754) target = $region128
    $region127: #{_lambda_.9} parent=5 // pred_region
      %s758 = ssub.s32 %s33, 1
      %p759 = scmp.lt.s32.totalorder %s38, 1
      %s760 = scalar_select %p759, %s38, 1
      %s761 = smul.addr %s760, 8
      %s762 = scalar_lea.vmem %s0, %s761
      %p763 = pneg %p59
      %p764 = pneg %p56
      %p765 = scmp.lt.s32.totalorder %s38, 1
      %s766 = scalar_select %p765, %s38, 1
      %s767 = scalar_lea.vmem %s1, %s766
      %p768 = pneg %p85
      %p769 = pneg %p82
      %p770 = scmp.lt.s32.totalorder %s38, 1
      %s771 = scalar_select %p770, %s38, 1
      %s772 = smul.addr %s771, 8
      %s773 = scalar_lea.vmem %s2, %s772
      %p774 = pneg %p111
      %p775 = pneg %p108
      %p776 = pneg %p132
      %p777 = pneg %p129
      %p778 = pneg %p153
      %p779 = pneg %p150
      %p780 = pneg %p174
      %p781 = pneg %p171
      %p782 = pneg %p195
      %p783 = pneg %p192
      %p784 = pneg %p216
      %p785 = pneg %p213
      %p786 = pneg %p237
      %p787 = pneg %p234
      %p788 = pneg %p258
      %p789 = pneg %p255
      %p790 = pneg %p279
      %p791 = pneg %p276
      %p792 = pneg %p300
      %p793 = pneg %p297
      %p794 = pneg %p321
      %p795 = pneg %p318
      %p796 = pneg %p342
      %p797 = pneg %p339
      %p798 = pneg %p363
      %p799 = pneg %p360
      %p800 = pneg %p384
      %p801 = pneg %p381
      %p802 = pneg %p405
      %p803 = pneg %p402
      %p804 = pneg %p426
      %p805 = pneg %p423
      %p806 = pneg %p447
      %p807 = pneg %p444
      %p808 = pneg %p468
      %p809 = pneg %p465
      %p810 = pneg %p489
      %p811 = pneg %p486
      %p812 = pneg %p510
      %p813 = pneg %p507
      %p814 = pneg %p531
      %p815 = pneg %p528
      %p816 = pneg %p552
      %p817 = pneg %p549
      %p818 = pneg %p573
      %p819 = pneg %p570
      %p820 = pneg %p594
      %p821 = pneg %p591
      %p822 = pneg %p615
      %p823 = pneg %p612
      %p824 = pneg %p641
      %p825 = pneg %p638
      %p826 = scmp.lt.s32.totalorder %s38, 1
      %s827 = scalar_select %p826, %s38, 1
      %s828 = smul.addr %s827, 8
      %s829 = scalar_lea.vmem %s27, %s828
      %p830 = scmp.lt.s32.totalorder %s38, 1
      %s831 = scalar_select %p830, %s38, 1
      %s832 = smul.addr %s831, 8
      %s833 = scalar_lea.vmem %s0, %s832
      %p834 = scmp.lt.s32.totalorder %s38, 1
      %s835 = scalar_select %p834, %s38, 1
      %s836 = scalar_lea.vmem %s1, %s835
      %p837 = scmp.lt.s32.totalorder %s38, 1
      %s838 = scalar_select %p837, %s38, 1
      %s839 = smul.addr %s838, 8
      %s840 = scalar_lea.vmem %s2, %s839
      %p841 = scmp.lt.s32.totalorder %s38, 1
      %s842 = scalar_select %p841, %s38, 1
      %s843 = smul.addr %s842, 8
      %s844 = scalar_lea.vmem %s27, %s843
      %v846 = vld [vmem:[%s833] sm:$0xff]
      %v847 = vld [vmem:[%s4] sm:$0x1f]
      %v848 = vld [vmem:[%s5] sm:$0x1f]
      %vm849 = vcmask 261120
      %v850 = vsel %vm849, %v846, 0.0
      %851 = vadd.xlane.f32.xlu0 %v850
      %v852 = vpop.xlane.xlu0 %851
      %v853 = vrcp.pop 32.0
      %v854 = vmul.f32 %v852, %v853
      %v855 = vsub.f32 %v846, %v854
      %v856 = vmul.f32 %v855, %v855
      %v857 = vsel %vm849, %v856, 0.0
      %858 = vadd.xlane.f32.xlu0 %v857
      %v859 = vpop.xlane.xlu0 %858
      %v860 = vmul.f32 %v859, %v853
      %v861 = vadd.f32 %v860, 1e-05
      %v862 = vrsqrt.pop %v861
      %v863 = vmul.f32 %v855, %v862
      %v864 = vlaneseq
      %v865 = vshrl.u32 %v864, 7
      %v866 = vsub.s32 0, %v865
      %v867 = vrot.slane %v847, %v866
      %v868 = vmul.f32 %v863, %v867
      %v869 = vlaneseq
      %v870 = vshrl.u32 %v869, 7
      %v871 = vsub.s32 0, %v870
      %v872 = vrot.slane %v848, %v871
      %v873 = vadd.f32 %v868, %v872
      %v874 = vpack.c.bf16 %v873, %v873
      %v875 = vld [vmem:[%s6] sm:$0xf]
      %v876 = vld [vmem:[%s6 + $0x4] sm:$0xf]
      %v877 = vld [vmem:[%s6 + $0x8] sm:$0xf]
      %v878 = vld [vmem:[%s6 + $0xc] sm:$0xf]
      %v879 = vld [vmem:[%s7] sm:$0x1]
      %v881 = vlaneseq
      %v882 = vshrl.u32 %v881, 7
      %v883 = vsub.s32 0, %v882
      %v884 = vrot.slane %v879, %v883
      %v890 = vunpack.c.l.b16 %v875
      %v891 = vunpack.c.l.b16 %v876
      %v892 = vunpack.c.l.b16 %v877
      %v893 = vunpack.c.l.b16 %v878
      %v894 = vpack.c.b16 %v891, %v890
      %v895 = vpack.c.b16 %v893, %v892
      %v899 = vsel %vm849, %v874, 0
      %901 = vmatprep.subr.bf16.mxu0 0
      %902 = vmatpush1.bf16.msra.mxu0 %v894
      %903 = vmatprep.subr.bf16.mxu0 0
      %904 = vmatpush1.bf16.msra.mxu0 %v895
      %905 = vmatprep.subr.bf16.mxu0 0
      %906 = vmatpush1.bf16.msra.mxu0 0
      %907 = vmatprep.subr.bf16.mxu0 0
      %908 = vmatpush1.bf16.msra.mxu0 0
      %909 = vmatprep.subr.bf16.mxu0 0
      %910 = vmatpush1.bf16.msra.mxu0 0
      %911 = vmatprep.subr.bf16.mxu0 0
      %912 = vmatpush1.bf16.msra.mxu0 0
      %913 = vmatprep.subr.bf16.mxu0 0
      %914 = vmatpush1.bf16.msra.mxu0 0
      %915 = vmatprep.subr.bf16.mxu0 0
      %916 = vmatpush1.bf16.msra.mxu0 0
      %917 = vmatprep.subr.bf16.mxu0 0
      %918 = vmatpush1.bf16.msra.mxu0 0
      %919 = vmatprep.subr.bf16.mxu0 0
      %920 = vmatpush1.bf16.msra.mxu0 0
      %921 = vmatprep.subr.bf16.mxu0 0
      %922 = vmatpush1.bf16.msra.mxu0 0
      %923 = vmatprep.subr.bf16.mxu0 0
      %924 = vmatpush1.bf16.msra.mxu0 0
      %925 = vmatprep.subr.bf16.mxu0 0
      %926 = vmatpush1.bf16.msra.mxu0 0
      %927 = vmatprep.subr.bf16.mxu0 0
      %928 = vmatpush1.bf16.msra.mxu0 0
      %929 = vmatprep.subr.bf16.mxu0 0
      %930 = vmatpush1.bf16.msra.mxu0 0
      %931 = vmatprep.subr.bf16.mxu0 0
      %932 = vmatpush1.bf16.msra.mxu0 0
      %933 = vmatprep.mubr.bf16.mxu0 0
      %934 = vmatmul.mubr.bf16.gmra.mrb[0].mxu0 %v899
      %v935 = vpop.f32.mrb[0].mxu0
      %v936 = vadd.f32 %v884, %v935
      %v937 = vpop.f32.mrb[0].mxu0
      %v938 = vpop.f32.mrb[0].mxu0
      %v939 = vpop.f32.mrb[0].mxu0
      %940 = vdwg.mxu0
      %v941 = vxor.u32 %v936, 2147483648
      %v942 = vmul.f32 %v941, 1.442695
      %v943 = vpow.pop %v942
      %v944 = vadd.f32 %v943, 1.0
      %v945 = vrcp.pop %v944
      %v946 = vmul.f32 1.0, %v945
      %v947 = vmul.f32 %v936, %v946
      %v948 = vpack.c.bf16 %v947, %v947
      %v949 = vld [vmem:[%s8] sm:$0xf]
      %v950 = vld [vmem:[%s8 + $0x4] sm:$0xf]
      %v951 = vld [vmem:[%s8 + $0x8] sm:$0xf]
      %v952 = vld [vmem:[%s8 + $0xc] sm:$0xf]
      %v953 = vld [vmem:[%s8 + $0x10] sm:$0xf]
      %v954 = vld [vmem:[%s8 + $0x14] sm:$0xf]
      %v955 = vld [vmem:[%s8 + $0x18] sm:$0xf]
      %v956 = vld [vmem:[%s8 + $0x1c] sm:$0xf]
      %v957 = vld [vmem:[%s9] sm:$0x1]
      %v959 = vlaneseq
      %v960 = vshrl.u32 %v959, 7
      %v961 = vsub.s32 0, %v960
      %v962 = vrot.slane %v957, %v961
      %v972 = vunpack.c.l.b16 %v949
      %v973 = vunpack.c.l.b16 %v950
      %v974 = vunpack.c.l.b16 %v951
      %v975 = vunpack.c.l.b16 %v952
      %v976 = vunpack.c.l.b16 %v953
      %v977 = vunpack.c.l.b16 %v954
      %v978 = vunpack.c.l.b16 %v955
      %v979 = vunpack.c.l.b16 %v956
      %v980 = vpack.c.b16 %v973, %v972
      %v981 = vpack.c.b16 %v975, %v974
      %v982 = vpack.c.b16 %v977, %v976
      %v983 = vpack.c.b16 %v979, %v978
      %vm988 = vcmask 523264
      %v990 = vsel %vm988, %v948, 0
      %992 = vmatprep.subr.bf16.mxu0 0
      %993 = vmatpush1.bf16.msra.mxu0 %v980
      %994 = vmatprep.subr.bf16.mxu0 0
      %995 = vmatpush1.bf16.msra.mxu0 %v981
      %996 = vmatprep.subr.bf16.mxu0 0
      %997 = vmatpush1.bf16.msra.mxu0 %v982
      %998 = vmatprep.subr.bf16.mxu0 0
      %999 = vmatpush1.bf16.msra.mxu0 %v983
      %1000 = vmatprep.subr.bf16.mxu0 0
      %1001 = vmatpush1.bf16.msra.mxu0 0
      %1002 = vmatprep.subr.bf16.mxu0 0
      %1003 = vmatpush1.bf16.msra.mxu0 0
      %1004 = vmatprep.subr.bf16.mxu0 0
      %1005 = vmatpush1.bf16.msra.mxu0 0
      %1006 = vmatprep.subr.bf16.mxu0 0
      %1007 = vmatpush1.bf16.msra.mxu0 0
      %1008 = vmatprep.subr.bf16.mxu0 0
      %1009 = vmatpush1.bf16.msra.mxu0 0
      %1010 = vmatprep.subr.bf16.mxu0 0
      %1011 = vmatpush1.bf16.msra.mxu0 0
      %1012 = vmatprep.subr.bf16.mxu0 0
      %1013 = vmatpush1.bf16.msra.mxu0 0
      %1014 = vmatprep.subr.bf16.mxu0 0
      %1015 = vmatpush1.bf16.msra.mxu0 0
      %1016 = vmatprep.subr.bf16.mxu0 0
      %1017 = vmatpush1.bf16.msra.mxu0 0
      %1018 = vmatprep.subr.bf16.mxu0 0
      %1019 = vmatpush1.bf16.msra.mxu0 0
      %1020 = vmatprep.subr.bf16.mxu0 0
      %1021 = vmatpush1.bf16.msra.mxu0 0
      %1022 = vmatprep.subr.bf16.mxu0 0
      %1023 = vmatpush1.bf16.msra.mxu0 0
      %1024 = vmatprep.mubr.bf16.mxu0 0
      %1025 = vmatmul.mubr.bf16.gmra.mrb[0].mxu0 %v990
      %v1026 = vpop.f32.mrb[0].mxu0
      %v1027 = vadd.f32 %v962, %v1026
      %v1028 = vpop.f32.mrb[0].mxu0
      %v1029 = vpop.f32.mrb[0].mxu0
      %v1030 = vpop.f32.mrb[0].mxu0
      %1031 = vdwg.mxu0
      %v1032 = vmul.f32 %v1027, 0.5
      %v1033 = vadd.f32 %v846, %v1032
      %v1034 = vsel %vm849, %v1033, 0.0
      %1035 = vadd.xlane.f32.xlu0 %v1034
      %v1036 = vpop.xlane.xlu0 %1035
      %v1037 = vmul.f32 %v1036, %v853
      %v1038 = vsub.f32 %v1033, %v1037
      %v1039 = vmul.f32 %v1038, %v1038
      %v1040 = vsel %vm849, %v1039, 0.0
      %1041 = vadd.xlane.f32.xlu0 %v1040
      %v1042 = vpop.xlane.xlu0 %1041
      %v1043 = vmul.f32 %v1042, %v853
      %v1044 = vadd.f32 %v1043, 1e-05
      %v1045 = vrsqrt.pop %v1044
      %v1046 = vmul.f32 %v1038, %v1045
      %v1047 = vlaneseq
      %v1048 = vshrl.u32 %v1047, 7
      %v1049 = vsub.s32 1, %v1048
      %v1050 = vrot.slane %v847, %v1049
      %v1051 = vmul.f32 %v1046, %v1050
      %v1052 = vlaneseq
      %v1053 = vshrl.u32 %v1052, 7
      %v1054 = vsub.s32 1, %v1053
      %v1055 = vrot.slane %v848, %v1054
      %v1056 = vadd.f32 %v1051, %v1055
      %v1057 = vpack.c.bf16 %v1056, %v1056
      %v1058 = vld [vmem:[%s10] sm:$0xf]
      %v1059 = vld [vmem:[%s10 + $0x4] sm:$0xf]
      %v1060 = vld [vmem:[%s10 + $0x8] sm:$0xf]
      %v1061 = vld [vmem:[%s10 + $0xc] sm:$0xf]
      %v1062 = vld [vmem:[%s11] sm:$0x1]
      %v1064 = vlaneseq
      %v1065 = vshrl.u32 %v1064, 7
      %v1066 = vsub.s32 0, %v1065
      %v1067 = vrot.slane %v1062, %v1066
      %v1073 = vunpack.c.l.b16 %v1058
      %v1074 = vunpack.c.l.b16 %v1059
      %v1075 = vunpack.c.l.b16 %v1060
      %v1076 = vunpack.c.l.b16 %v1061
      %v1077 = vpack.c.b16 %v1074, %v1073
      %v1078 = vpack.c.b16 %v1076, %v1075
      %v1082 = vsel %vm849, %v1057, 0
      %1084 = vmatprep.subr.bf16.mxu0 0
      %1085 = vmatpush1.bf16.msra.mxu0 %v1077
      %1086 = vmatprep.subr.bf16.mxu0 0
      %1087 = vmatpush1.bf16.msra.mxu0 %v1078
      %1088 = vmatprep.subr.bf16.mxu0 0
      %1089 = vmatpush1.bf16.msra.mxu0 0
      %1090 = vmatprep.subr.bf16.mxu0 0
      %1091 = vmatpush1.bf16.msra.mxu0 0
      %1092 = vmatprep.subr.bf16.mxu0 0
      %1093 = vmatpush1.bf16.msra.mxu0 0
      %1094 = vmatprep.subr.bf16.mxu0 0
      %1095 = vmatpush1.bf16.msra.mxu0 0
      %1096 = vmatprep.subr.bf16.mxu0 0
      %1097 = vmatpush1.bf16.msra.mxu0 0
      %1098 = vmatprep.subr.bf16.mxu0 0
      %1099 = vmatpush1.bf16.msra.mxu0 0
      %1100 = vmatprep.subr.bf16.mxu0 0
      %1101 = vmatpush1.bf16.msra.mxu0 0
      %1102 = vmatprep.subr.bf16.mxu0 0
      %1103 = vmatpush1.bf16.msra.mxu0 0
      %1104 = vmatprep.subr.bf16.mxu0 0
      %1105 = vmatpush1.bf16.msra.mxu0 0
      %1106 = vmatprep.subr.bf16.mxu0 0
      %1107 = vmatpush1.bf16.msra.mxu0 0
      %1108 = vmatprep.subr.bf16.mxu0 0
      %1109 = vmatpush1.bf16.msra.mxu0 0
      %1110 = vmatprep.subr.bf16.mxu0 0
      %1111 = vmatpush1.bf16.msra.mxu0 0
      %1112 = vmatprep.subr.bf16.mxu0 0
      %1113 = vmatpush1.bf16.msra.mxu0 0
      %1114 = vmatprep.subr.bf16.mxu0 0
      %1115 = vmatpush1.bf16.msra.mxu0 0
      %1116 = vmatprep.mubr.bf16.mxu0 0
      %1117 = vmatmul.mubr.bf16.gmra.mrb[0].mxu0 %v1082
      %v1118 = vpop.f32.mrb[0].mxu0
      %v1119 = vadd.f32 %v1067, %v1118
      %v1120 = vpop.f32.mrb[0].mxu0
      %v1121 = vpop.f32.mrb[0].mxu0
      %v1122 = vpop.f32.mrb[0].mxu0
      %1123 = vdwg.mxu0
      %v1124 = vld [vmem:[%s3] sm:$0xff]
      %v1125 = vld [vmem:[%s3 + $0x8] sm:$0x7f]
      %v1126 = vpack.c.bf16 %v1125, %v1124
      %v1127 = vld [vmem:[%s12] sm:$0xf]
      %v1128 = vld [vmem:[%s12 + $0x4] sm:$0xf]
      %v1129 = vld [vmem:[%s12 + $0x8] sm:$0xf]
      %v1130 = vld [vmem:[%s12 + $0xc] sm:$0xf]
      %v1135 = vunpack.c.l.b16 %v1127
      %v1136 = vunpack.c.l.b16 %v1128
      %v1137 = vunpack.c.l.b16 %v1129
      %v1138 = vunpack.c.l.b16 %v1130
      %v1139 = vpack.c.b16 %v1136, %v1135
      %v1140 = vpack.c.b16 %v1138, %v1137
      %v1144 = vsel %vm849, %v1126, 0
      %1146 = vmatprep.subr.bf16.mxu0 0
      %1147 = vmatpush1.bf16.msra.mxu0 %v1139
      %1148 = vmatprep.subr.bf16.mxu0 0
      %1149 = vmatpush1.bf16.msra.mxu0 %v1140
      %1150 = vmatprep.subr.bf16.mxu0 0
      %1151 = vmatpush1.bf16.msra.mxu0 0
      %1152 = vmatprep.subr.bf16.mxu0 0
      %1153 = vmatpush1.bf16.msra.mxu0 0
      %1154 = vmatprep.subr.bf16.mxu0 0
      %1155 = vmatpush1.bf16.msra.mxu0 0
      %1156 = vmatprep.subr.bf16.mxu0 0
      %1157 = vmatpush1.bf16.msra.mxu0 0
      %1158 = vmatprep.subr.bf16.mxu0 0
      %1159 = vmatpush1.bf16.msra.mxu0 0
      %1160 = vmatprep.subr.bf16.mxu0 0
      %1161 = vmatpush1.bf16.msra.mxu0 0
      %1162 = vmatprep.subr.bf16.mxu0 0
      %1163 = vmatpush1.bf16.msra.mxu0 0
      %1164 = vmatprep.subr.bf16.mxu0 0
      %1165 = vmatpush1.bf16.msra.mxu0 0
      %1166 = vmatprep.subr.bf16.mxu0 0
      %1167 = vmatpush1.bf16.msra.mxu0 0
      %1168 = vmatprep.subr.bf16.mxu0 0
      %1169 = vmatpush1.bf16.msra.mxu0 0
      %1170 = vmatprep.subr.bf16.mxu0 0
      %1171 = vmatpush1.bf16.msra.mxu0 0
      %1172 = vmatprep.subr.bf16.mxu0 0
      %1173 = vmatpush1.bf16.msra.mxu0 0
      %1174 = vmatprep.subr.bf16.mxu0 0
      %1175 = vmatpush1.bf16.msra.mxu0 0
      %1176 = vmatprep.subr.bf16.mxu0 0
      %1177 = vmatpush1.bf16.msra.mxu0 0
      %1178 = vmatprep.mubr.bf16.mxu0 0
      %1179 = vmatmul.mubr.bf16.gmra.mrb[0].mxu0 %v1144
      %v1180 = vpop.f32.mrb[0].mxu0
      %v1181 = vadd.f32 0.0, %v1180
      %v1182 = vpop.f32.mrb[0].mxu0
      %v1183 = vpop.f32.mrb[0].mxu0
      %v1184 = vadd.f32 0.0, %v1183
      %v1185 = vpop.f32.mrb[0].mxu0
      %1186 = vdwg.mxu0
      %v1187 = vld [vmem:[%s13] sm:$0x1]
      %v1189 = vlaneseq
      %v1190 = vshrl.u32 %v1189, 7
      %v1191 = vsub.s32 0, %v1190
      %v1192 = vrot.slane %v1187, %v1191
      %v1194 = vadd.f32 %v1119, %v1192
      %v1195 = vld [vmem:[%s14] sm:$0x1]
      %v1197 = vlaneseq
      %v1198 = vshrl.u32 %v1197, 7
      %v1199 = vsub.s32 0, %v1198
      %v1200 = vrot.slane %v1195, %v1199
      %v1202 = vadd.f32 %v1119, %v1200
      %v1203 = vld [vmem:[%s836] sm:$0x1]
      %vm1204 = vcmp.eq.f32.partialorder %v1203, 0.0
      %vm1205 = vcmask 64512
      %v1207 = vsel %vm1205, %v1202, 0
      %v1210 = vsel %vm1205, %v1181, 0
      %v1213 = vsel %vm1205, %v1184, 0
      %1215 = vmatprep.subr.mxu0 0.0
      %1216 = vmatpush1.xpose.msra.mxu0 %v1210
      %1217 = vmatprep.subr.mxu0 0.0
      %1218 = vmatpush1.xpose.msra.mxu0 %v1213
      %1219 = vmatprep.subr.mxu0 0.0
      %1220 = vmatpush1.xpose.msra.mxu0 0.0
      %1221 = vmatprep.subr.mxu0 0.0
      %1222 = vmatpush1.xpose.msra.mxu0 0.0
      %1223 = vmatprep.subr.mxu0 0.0
      %1224 = vmatpush1.xpose.msra.mxu0 0.0
      %1225 = vmatprep.subr.mxu0 0.0
      %1226 = vmatpush1.xpose.msra.mxu0 0.0
      %1227 = vmatprep.subr.mxu0 0.0
      %1228 = vmatpush1.xpose.msra.mxu0 0.0
      %1229 = vmatprep.subr.mxu0 0.0
      %1230 = vmatpush1.xpose.msra.mxu0 0.0
      %1231 = vmatprep.subr.mxu0 0.0
      %1232 = vmatpush1.xpose.msra.mxu0 0.0
      %1233 = vmatprep.subr.mxu0 0.0
      %1234 = vmatpush1.xpose.msra.mxu0 0.0
      %1235 = vmatprep.subr.mxu0 0.0
      %1236 = vmatpush1.xpose.msra.mxu0 0.0
      %1237 = vmatprep.subr.mxu0 0.0
      %1238 = vmatpush1.xpose.msra.mxu0 0.0
      %1239 = vmatprep.subr.mxu0 0.0
      %1240 = vmatpush1.xpose.msra.mxu0 0.0
      %1241 = vmatprep.subr.mxu0 0.0
      %1242 = vmatpush1.xpose.msra.mxu0 0.0
      %1243 = vmatprep.subr.mxu0 0.0
      %1244 = vmatpush1.xpose.msra.mxu0 0.0
      %1245 = vmatprep.subr.mxu0 0.0
      %1246 = vmatpush1.xpose.msra.mxu0 0.0
      %1247 = vmatprep.subr.mxu0 0.0
      %1248 = vmatpush1.xpose.msra.mxu0 0.0
      %1249 = vmatprep.subr.mxu0 0.0
      %1250 = vmatpush1.xpose.msra.mxu0 0.0
      %1251 = vmatprep.subr.mxu0 0.0
      %1252 = vmatpush1.xpose.msra.mxu0 0.0
      %1253 = vmatprep.subr.mxu0 0.0
      %1254 = vmatpush1.xpose.msra.mxu0 0.0
      %1255 = vmatprep.subr.mxu0 0.0
      %1256 = vmatpush1.xpose.msra.mxu0 0.0
      %1257 = vmatprep.subr.mxu0 0.0
      %1258 = vmatpush1.xpose.msra.mxu0 0.0
      %1259 = vmatprep.subr.mxu0 0.0
      %1260 = vmatpush1.xpose.msra.mxu0 0.0
      %1261 = vmatprep.subr.mxu0 0.0
      %1262 = vmatpush1.xpose.msra.mxu0 0.0
      %1263 = vmatprep.subr.mxu0 0.0
      %1264 = vmatpush1.xpose.msra.mxu0 0.0
      %1265 = vmatprep.subr.mxu0 0.0
      %1266 = vmatpush1.xpose.msra.mxu0 0.0
      %1267 = vmatprep.subr.mxu0 0.0
      %1268 = vmatpush1.xpose.msra.mxu0 0.0
      %1269 = vmatprep.subr.mxu0 0.0
      %1270 = vmatpush1.xpose.msra.mxu0 0.0
      %1271 = vmatprep.subr.mxu0 0.0
      %1272 = vmatpush1.xpose.msra.mxu0 0.0
      %1273 = vmatprep.subr.mxu0 0.0
      %1274 = vmatpush1.xpose.msra.mxu0 0.0
      %1275 = vmatprep.subr.mxu0 0.0
      %1276 = vmatpush1.xpose.msra.mxu0 0.0
      %1277 = vmatprep.subr.mxu0 0.0
      %1278 = vmatpush1.xpose.msra.mxu0 0.0
      %1279 = vmatprep.mubr.f32.mxu0 0.0
      %1280 = vmatmul.mubr.f32.gmra.mrb[0].mxu0 %v1207
      %v1281 = vpop.f32.mrb[0].mxu0
      %v1282 = vadd.f32 0.0, %v1281
      %v1283 = vpop.f32.mrb[0].mxu0
      %1284 = vdwg.mxu0
      %1286 = vrot.lane.b32.xlu0 %v1282, 1
      %v1287 = vpop.permute.xlu0 %1286
      %1289 = vrot.lane.b32.xlu0 %v1282, 2
      %v1290 = vpop.permute.xlu0 %1289
      %1292 = vrot.lane.b32.xlu0 %v1282, 3
      %v1293 = vpop.permute.xlu0 %1292
      %1295 = vrot.lane.b32.xlu0 %v1282, 4
      %v1296 = vpop.permute.xlu0 %1295
      %1298 = vrot.lane.b32.xlu0 %v1282, 5
      %v1299 = vpop.permute.xlu0 %1298
      %1301 = vrot.lane.b32.xlu0 %v1282, 6
      %v1302 = vpop.permute.xlu0 %1301
      %1304 = vrot.lane.b32.xlu0 %v1282, 7
      %v1305 = vpop.permute.xlu0 %1304
      %vm1307 = vcmask 1040384
      %v1308 = vsel %vm1307, %v1282, %v1287
      %vm1309 = vcmask 1041408
      %v1310 = vsel %vm1309, %v1308, %v1290
      %vm1311 = vcmask 1042432
      %v1312 = vsel %vm1311, %v1310, %v1293
      %vm1313 = vcmask 1043456
      %v1314 = vsel %vm1313, %v1312, %v1296
      %vm1315 = vcmask 1044480
      %v1316 = vsel %vm1315, %v1314, %v1299
      %vm1317 = vcmask 1045504
      %v1318 = vsel %vm1317, %v1316, %v1302
      %vm1319 = vcmask 1046528
      %v1320 = vsel %vm1319, %v1318, %v1305
      %1322 = vrot.lane.b32.xlu0 %v1119, 96
      %v1323 = vpop.permute.xlu0 %1322
      %1325 = vrot.lane.b32.xlu0 %v1320, 121
      %v1326 = vpop.permute.xlu0 %1325
      %v1329 = vsel %vm1205, %v1194, 0
      %v1331 = vsel %vm1205, %v1323, 0
      %1333 = vmatprep.subr.mxu0 0.0
      %1334 = vmatpush1.xpose.msra.mxu0 %v1331
      %1335 = vmatprep.subr.mxu0 0.0
      %1336 = vmatpush1.xpose.msra.mxu0 0.0
      %1337 = vmatprep.subr.mxu0 0.0
      %1338 = vmatpush1.xpose.msra.mxu0 0.0
      %1339 = vmatprep.subr.mxu0 0.0
      %1340 = vmatpush1.xpose.msra.mxu0 0.0
      %1341 = vmatprep.subr.mxu0 0.0
      %1342 = vmatpush1.xpose.msra.mxu0 0.0
      %1343 = vmatprep.subr.mxu0 0.0
      %1344 = vmatpush1.xpose.msra.mxu0 0.0
      %1345 = vmatprep.subr.mxu0 0.0
      %1346 = vmatpush1.xpose.msra.mxu0 0.0
      %1347 = vmatprep.subr.mxu0 0.0
      %1348 = vmatpush1.xpose.msra.mxu0 0.0
      %1349 = vmatprep.subr.mxu0 0.0
      %1350 = vmatpush1.xpose.msra.mxu0 0.0
      %1351 = vmatprep.subr.mxu0 0.0
      %1352 = vmatpush1.xpose.msra.mxu0 0.0
      %1353 = vmatprep.subr.mxu0 0.0
      %1354 = vmatpush1.xpose.msra.mxu0 0.0
      %1355 = vmatprep.subr.mxu0 0.0
      %1356 = vmatpush1.xpose.msra.mxu0 0.0
      %1357 = vmatprep.subr.mxu0 0.0
      %1358 = vmatpush1.xpose.msra.mxu0 0.0
      %1359 = vmatprep.subr.mxu0 0.0
      %1360 = vmatpush1.xpose.msra.mxu0 0.0
      %1361 = vmatprep.subr.mxu0 0.0
      %1362 = vmatpush1.xpose.msra.mxu0 0.0
      %1363 = vmatprep.subr.mxu0 0.0
      %1364 = vmatpush1.xpose.msra.mxu0 0.0
      %1365 = vmatprep.subr.mxu0 0.0
      %1366 = vmatpush1.xpose.msra.mxu0 0.0
      %1367 = vmatprep.subr.mxu0 0.0
      %1368 = vmatpush1.xpose.msra.mxu0 0.0
      %1369 = vmatprep.subr.mxu0 0.0
      %1370 = vmatpush1.xpose.msra.mxu0 0.0
      %1371 = vmatprep.subr.mxu0 0.0
      %1372 = vmatpush1.xpose.msra.mxu0 0.0
      %1373 = vmatprep.subr.mxu0 0.0
      %1374 = vmatpush1.xpose.msra.mxu0 0.0
      %1375 = vmatprep.subr.mxu0 0.0
      %1376 = vmatpush1.xpose.msra.mxu0 0.0
      %1377 = vmatprep.subr.mxu0 0.0
      %1378 = vmatpush1.xpose.msra.mxu0 0.0
      %1379 = vmatprep.subr.mxu0 0.0
      %1380 = vmatpush1.xpose.msra.mxu0 0.0
      %1381 = vmatprep.subr.mxu0 0.0
      %1382 = vmatpush1.xpose.msra.mxu0 0.0
      %1383 = vmatprep.subr.mxu0 0.0
      %1384 = vmatpush1.xpose.msra.mxu0 0.0
      %1385 = vmatprep.subr.mxu0 0.0
      %1386 = vmatpush1.xpose.msra.mxu0 0.0
      %1387 = vmatprep.subr.mxu0 0.0
      %1388 = vmatpush1.xpose.msra.mxu0 0.0
      %1389 = vmatprep.subr.mxu0 0.0
      %1390 = vmatpush1.xpose.msra.mxu0 0.0
      %1391 = vmatprep.subr.mxu0 0.0
      %1392 = vmatpush1.xpose.msra.mxu0 0.0
      %1393 = vmatprep.subr.mxu0 0.0
      %1394 = vmatpush1.xpose.msra.mxu0 0.0
      %1395 = vmatprep.subr.mxu0 0.0
      %1396 = vmatpush1.xpose.msra.mxu0 0.0
      %1397 = vmatprep.mubr.f32.mxu0 0.0
      %1398 = vmatmul.mubr.f32.gmra.mrb[0].mxu0 %v1329
      %v1399 = vpop.f32.mrb[0].mxu0
      %v1400 = vadd.f32 %v1326, %v1399
      %v1401 = vpop.f32.mrb[0].mxu0
      %1402 = vdwg.mxu0
      %v1403 = vmul.f32 %v1400, 0.35355338
      %v1404 = vsel %vm1204, 1, 0
      %v1405 = vlaneseq
      %v1406 = vshrl.u32 %v1405, 7
      %v1407 = vsub.s32 0, %v1406
      %v1408 = vrot.slane %v1404, %v1407
      %vm1409 = vcmp.eq.s32.totalorder %v1408, 1
      %v1410 = vsel %vm1409, -3.4028235e+38, %v1403
      %v1411 = vsel %vm1205, %v1410, -inf
      %1412 = vmax.xlane.f32.xlu0 %v1411
      %v1413 = vpop.xlane.xlu0 %1412
      %v1414 = vsub.f32 %v1410, %v1413
      %v1415 = vmul.f32 %v1414, 1.442695
      %v1416 = vpow.pop %v1415
      %v1417 = vsel %vm1205, %v1416, 0.0
      %1418 = vadd.xlane.f32.xlu0 %v1417
      %v1419 = vpop.xlane.xlu0 %1418
      %v1420 = vrcp.pop %v1419
      %v1421 = vmul.f32 %v1416, %v1420
      %v1422 = vsel %vm1409, 0.0, %v1421
      %1423 = vrot.lane.b32.xlu0 %v1119, 64
      %v1424 = vpop.permute.xlu0 %1423
      %v1427 = vsel %vm1205, %v1422, 0
      %1429 = vmatprep.subr.mxu0 0.0
      %1430 = vmatpush1.msra.mxu0 %v1424
      %1431 = vmatprep.subr.mxu0 0.0
      %1432 = vmatpush1.msra.mxu0 0.0
      %1433 = vmatprep.subr.mxu0 0.0
      %1434 = vmatpush1.msra.mxu0 0.0
      %1435 = vmatprep.subr.mxu0 0.0
      %1436 = vmatpush1.msra.mxu0 0.0
      %1437 = vmatprep.subr.mxu0 0.0
      %1438 = vmatpush1.msra.mxu0 0.0
      %1439 = vmatprep.subr.mxu0 0.0
      %1440 = vmatpush1.msra.mxu0 0.0
      %1441 = vmatprep.subr.mxu0 0.0
      %1442 = vmatpush1.msra.mxu0 0.0
      %1443 = vmatprep.subr.mxu0 0.0
      %1444 = vmatpush1.msra.mxu0 0.0
      %1445 = vmatprep.subr.mxu0 0.0
      %1446 = vmatpush1.msra.mxu0 0.0
      %1447 = vmatprep.subr.mxu0 0.0
      %1448 = vmatpush1.msra.mxu0 0.0
      %1449 = vmatprep.subr.mxu0 0.0
      %1450 = vmatpush1.msra.mxu0 0.0
      %1451 = vmatprep.subr.mxu0 0.0
      %1452 = vmatpush1.msra.mxu0 0.0
      %1453 = vmatprep.subr.mxu0 0.0
      %1454 = vmatpush1.msra.mxu0 0.0
      %1455 = vmatprep.subr.mxu0 0.0
      %1456 = vmatpush1.msra.mxu0 0.0
      %1457 = vmatprep.subr.mxu0 0.0
      %1458 = vmatpush1.msra.mxu0 0.0
      %1459 = vmatprep.subr.mxu0 0.0
      %1460 = vmatpush1.msra.mxu0 0.0
      %1461 = vmatprep.subr.mxu0 0.0
      %1462 = vmatpush1.msra.mxu0 0.0
      %1463 = vmatprep.subr.mxu0 0.0
      %1464 = vmatpush1.msra.mxu0 0.0
      %1465 = vmatprep.subr.mxu0 0.0
      %1466 = vmatpush1.msra.mxu0 0.0
      %1467 = vmatprep.subr.mxu0 0.0
      %1468 = vmatpush1.msra.mxu0 0.0
      %1469 = vmatprep.subr.mxu0 0.0
      %1470 = vmatpush1.msra.mxu0 0.0
      %1471 = vmatprep.subr.mxu0 0.0
      %1472 = vmatpush1.msra.mxu0 0.0
      %1473 = vmatprep.subr.mxu0 0.0
      %1474 = vmatpush1.msra.mxu0 0.0
      %1475 = vmatprep.subr.mxu0 0.0
      %1476 = vmatpush1.msra.mxu0 0.0
      %1477 = vmatprep.subr.mxu0 0.0
      %1478 = vmatpush1.msra.mxu0 0.0
      %1479 = vmatprep.subr.mxu0 0.0
      %1480 = vmatpush1.msra.mxu0 0.0
      %1481 = vmatprep.subr.mxu0 0.0
      %1482 = vmatpush1.msra.mxu0 0.0
      %1483 = vmatprep.subr.mxu0 0.0
      %1484 = vmatpush1.msra.mxu0 0.0
      %1485 = vmatprep.subr.mxu0 0.0
      %1486 = vmatpush1.msra.mxu0 0.0
      %1487 = vmatprep.subr.mxu0 0.0
      %1488 = vmatpush1.msra.mxu0 0.0
      %1489 = vmatprep.subr.mxu0 0.0
      %1490 = vmatpush1.msra.mxu0 0.0
      %1491 = vmatprep.subr.mxu0 0.0
      %1492 = vmatpush1.msra.mxu0 0.0
      %1493 = vmatprep.mubr.f32.mxu0 0.0
      %1494 = vmatmul.mubr.f32.gmra.mrb[0].mxu0 %v1427
      %v1495 = vpop.f32.mrb[0].mxu0
      %v1496 = vadd.f32 0.0, %v1495
      %v1497 = vpop.f32.mrb[0].mxu0
      %1498 = vdwg.mxu0
      %1499 = vrot.lane.b32.xlu0 %v1202, 120
      %v1500 = vpop.permute.xlu0 %1499
      %1501 = vrot.lane.b32.xlu0 %v1181, 120
      %v1502 = vpop.permute.xlu0 %1501
      %1503 = vrot.lane.b32.xlu0 %v1184, 120
      %v1504 = vpop.permute.xlu0 %1503
      %v1505 = vsel %vm1205, %v1500, 0
      %v1507 = vsel %vm1205, %v1502, 0
      %v1509 = vsel %vm1205, %v1504, 0
      %1511 = vmatprep.subr.mxu0 0.0
      %1512 = vmatpush1.xpose.msra.mxu0 %v1507
      %1513 = vmatprep.subr.mxu0 0.0
      %1514 = vmatpush1.xpose.msra.mxu0 %v1509
      %1515 = vmatprep.subr.mxu0 0.0
      %1516 = vmatpush1.xpose.msra.mxu0 0.0
      %1517 = vmatprep.subr.mxu0 0.0
      %1518 = vmatpush1.xpose.msra.mxu0 0.0
      %1519 = vmatprep.subr.mxu0 0.0
      %1520 = vmatpush1.xpose.msra.mxu0 0.0
      %1521 = vmatprep.subr.mxu0 0.0
      %1522 = vmatpush1.xpose.msra.mxu0 0.0
      %1523 = vmatprep.subr.mxu0 0.0
      %1524 = vmatpush1.xpose.msra.mxu0 0.0
      %1525 = vmatprep.subr.mxu0 0.0
      %1526 = vmatpush1.xpose.msra.mxu0 0.0
      %1527 = vmatprep.subr.mxu0 0.0
      %1528 = vmatpush1.xpose.msra.mxu0 0.0
      %1529 = vmatprep.subr.mxu0 0.0
      %1530 = vmatpush1.xpose.msra.mxu0 0.0
      %1531 = vmatprep.subr.mxu0 0.0
      %1532 = vmatpush1.xpose.msra.mxu0 0.0
      %1533 = vmatprep.subr.mxu0 0.0
      %1534 = vmatpush1.xpose.msra.mxu0 0.0
      %1535 = vmatprep.subr.mxu0 0.0
      %1536 = vmatpush1.xpose.msra.mxu0 0.0
      %1537 = vmatprep.subr.mxu0 0.0
      %1538 = vmatpush1.xpose.msra.mxu0 0.0
      %1539 = vmatprep.subr.mxu0 0.0
      %1540 = vmatpush1.xpose.msra.mxu0 0.0
      %1541 = vmatprep.subr.mxu0 0.0
      %1542 = vmatpush1.xpose.msra.mxu0 0.0
      %1543 = vmatprep.subr.mxu0 0.0
      %1544 = vmatpush1.xpose.msra.mxu0 0.0
      %1545 = vmatprep.subr.mxu0 0.0
      %1546 = vmatpush1.xpose.msra.mxu0 0.0
      %1547 = vmatprep.subr.mxu0 0.0
      %1548 = vmatpush1.xpose.msra.mxu0 0.0
      %1549 = vmatprep.subr.mxu0 0.0
      %1550 = vmatpush1.xpose.msra.mxu0 0.0
      %1551 = vmatprep.subr.mxu0 0.0
      %1552 = vmatpush1.xpose.msra.mxu0 0.0
      %1553 = vmatprep.subr.mxu0 0.0
      %1554 = vmatpush1.xpose.msra.mxu0 0.0
      %1555 = vmatprep.subr.mxu0 0.0
      %1556 = vmatpush1.xpose.msra.mxu0 0.0
      %1557 = vmatprep.subr.mxu0 0.0
      %1558 = vmatpush1.xpose.msra.mxu0 0.0
      %1559 = vmatprep.subr.mxu0 0.0
      %1560 = vmatpush1.xpose.msra.mxu0 0.0
      %1561 = vmatprep.subr.mxu0 0.0
      %1562 = vmatpush1.xpose.msra.mxu0 0.0
      %1563 = vmatprep.subr.mxu0 0.0
      %1564 = vmatpush1.xpose.msra.mxu0 0.0
      %1565 = vmatprep.subr.mxu0 0.0
      %1566 = vmatpush1.xpose.msra.mxu0 0.0
      %1567 = vmatprep.subr.mxu0 0.0
      %1568 = vmatpush1.xpose.msra.mxu0 0.0
      %1569 = vmatprep.subr.mxu0 0.0
      %1570 = vmatpush1.xpose.msra.mxu0 0.0
      %1571 = vmatprep.subr.mxu0 0.0
      %1572 = vmatpush1.xpose.msra.mxu0 0.0
      %1573 = vmatprep.subr.mxu0 0.0
      %1574 = vmatpush1.xpose.msra.mxu0 0.0
      %1575 = vmatprep.mubr.f32.mxu0 0.0
      %1576 = vmatmul.mubr.f32.gmra.mrb[0].mxu0 %v1505
      %v1577 = vpop.f32.mrb[0].mxu0
      %v1578 = vadd.f32 0.0, %v1577
      %v1579 = vpop.f32.mrb[0].mxu0
      %1580 = vdwg.mxu0
      %1582 = vrot.lane.b32.xlu0 %v1578, 1
      %v1583 = vpop.permute.xlu0 %1582
      %1585 = vrot.lane.b32.xlu0 %v1578, 2
      %v1586 = vpop.permute.xlu0 %1585
      %1588 = vrot.lane.b32.xlu0 %v1578, 3
      %v1589 = vpop.permute.xlu0 %1588
      %1591 = vrot.lane.b32.xlu0 %v1578, 4
      %v1592 = vpop.permute.xlu0 %1591
      %1594 = vrot.lane.b32.xlu0 %v1578, 5
      %v1595 = vpop.permute.xlu0 %1594
      %1597 = vrot.lane.b32.xlu0 %v1578, 6
      %v1598 = vpop.permute.xlu0 %1597
      %1600 = vrot.lane.b32.xlu0 %v1578, 7
      %v1601 = vpop.permute.xlu0 %1600
      %v1603 = vsel %vm1307, %v1578, %v1583
      %v1604 = vsel %vm1309, %v1603, %v1586
      %v1605 = vsel %vm1311, %v1604, %v1589
      %v1606 = vsel %vm1313, %v1605, %v1592
      %v1607 = vsel %vm1315, %v1606, %v1595
      %v1608 = vsel %vm1317, %v1607, %v1598
      %v1609 = vsel %vm1319, %v1608, %v1601
      %1610 = vrot.lane.b32.xlu0 %v1194, 120
      %v1611 = vpop.permute.xlu0 %1610
      %1612 = vrot.lane.b32.xlu0 %v1119, 88
      %v1613 = vpop.permute.xlu0 %1612
      %1615 = vrot.lane.b32.xlu0 %v1609, 121
      %v1616 = vpop.permute.xlu0 %1615
      %v1618 = vsel %vm1205, %v1611, 0
      %v1620 = vsel %vm1205, %v1613, 0
      %1622 = vmatprep.subr.mxu0 0.0
      %1623 = vmatpush1.xpose.msra.mxu0 %v1620
      %1624 = vmatprep.subr.mxu0 0.0
      %1625 = vmatpush1.xpose.msra.mxu0 0.0
      %1626 = vmatprep.subr.mxu0 0.0
      %1627 = vmatpush1.xpose.msra.mxu0 0.0
      %1628 = vmatprep.subr.mxu0 0.0
      %1629 = vmatpush1.xpose.msra.mxu0 0.0
      %1630 = vmatprep.subr.mxu0 0.0
      %1631 = vmatpush1.xpose.msra.mxu0 0.0
      %1632 = vmatprep.subr.mxu0 0.0
      %1633 = vmatpush1.xpose.msra.mxu0 0.0
      %1634 = vmatprep.subr.mxu0 0.0
      %1635 = vmatpush1.xpose.msra.mxu0 0.0
      %1636 = vmatprep.subr.mxu0 0.0
      %1637 = vmatpush1.xpose.msra.mxu0 0.0
      %1638 = vmatprep.subr.mxu0 0.0
      %1639 = vmatpush1.xpose.msra.mxu0 0.0
      %1640 = vmatprep.subr.mxu0 0.0
      %1641 = vmatpush1.xpose.msra.mxu0 0.0
      %1642 = vmatprep.subr.mxu0 0.0
      %1643 = vmatpush1.xpose.msra.mxu0 0.0
      %1644 = vmatprep.subr.mxu0 0.0
      %1645 = vmatpush1.xpose.msra.mxu0 0.0
      %1646 = vmatprep.subr.mxu0 0.0
      %1647 = vmatpush1.xpose.msra.mxu0 0.0
      %1648 = vmatprep.subr.mxu0 0.0
      %1649 = vmatpush1.xpose.msra.mxu0 0.0
      %1650 = vmatprep.subr.mxu0 0.0
      %1651 = vmatpush1.xpose.msra.mxu0 0.0
      %1652 = vmatprep.subr.mxu0 0.0
      %1653 = vmatpush1.xpose.msra.mxu0 0.0
      %1654 = vmatprep.subr.mxu0 0.0
      %1655 = vmatpush1.xpose.msra.mxu0 0.0
      %1656 = vmatprep.subr.mxu0 0.0
      %1657 = vmatpush1.xpose.msra.mxu0 0.0
      %1658 = vmatprep.subr.mxu0 0.0
      %1659 = vmatpush1.xpose.msra.mxu0 0.0
      %1660 = vmatprep.subr.mxu0 0.0
      %1661 = vmatpush1.xpose.msra.mxu0 0.0
      %1662 = vmatprep.subr.mxu0 0.0
      %1663 = vmatpush1.xpose.msra.mxu0 0.0
      %1664 = vmatprep.subr.mxu0 0.0
      %1665 = vmatpush1.xpose.msra.mxu0 0.0
      %1666 = vmatprep.subr.mxu0 0.0
      %1667 = vmatpush1.xpose.msra.mxu0 0.0
      %1668 = vmatprep.subr.mxu0 0.0
      %1669 = vmatpush1.xpose.msra.mxu0 0.0
      %1670 = vmatprep.subr.mxu0 0.0
      %1671 = vmatpush1.xpose.msra.mxu0 0.0
      %1672 = vmatprep.subr.mxu0 0.0
      %1673 = vmatpush1.xpose.msra.mxu0 0.0
      %1674 = vmatprep.subr.mxu0 0.0
      %1675 = vmatpush1.xpose.msra.mxu0 0.0
      %1676 = vmatprep.subr.mxu0 0.0
      %1677 = vmatpush1.xpose.msra.mxu0 0.0
      %1678 = vmatprep.subr.mxu0 0.0
      %1679 = vmatpush1.xpose.msra.mxu0 0.0
      %1680 = vmatprep.subr.mxu0 0.0
      %1681 = vmatpush1.xpose.msra.mxu0 0.0
      %1682 = vmatprep.subr.mxu0 0.0
      %1683 = vmatpush1.xpose.msra.mxu0 0.0
      %1684 = vmatprep.subr.mxu0 0.0
      %1685 = vmatpush1.xpose.msra.mxu0 0.0
      %1686 = vmatprep.mubr.f32.mxu0 0.0
      %1687 = vmatmul.mubr.f32.gmra.mrb[0].mxu0 %v1618
      %v1688 = vpop.f32.mrb[0].mxu0
      %v1689 = vadd.f32 %v1616, %v1688
      %v1690 = vpop.f32.mrb[0].mxu0
      %1691 = vdwg.mxu0
      %v1692 = vmul.f32 %v1689, 0.35355338
      %v1693 = vsel %vm1409, -3.4028235e+38, %v1692
      %v1694 = vsel %vm1205, %v1693, -inf
      %1695 = vmax.xlane.f32.xlu0 %v1694
      %v1696 = vpop.xlane.xlu0 %1695
      %v1697 = vsub.f32 %v1693, %v1696
      %v1698 = vmul.f32 %v1697, 1.442695
      %v1699 = vpow.pop %v1698
      %v1700 = vsel %vm1205, %v1699, 0.0
      %1701 = vadd.xlane.f32.xlu0 %v1700
      %v1702 = vpop.xlane.xlu0 %1701
      %v1703 = vrcp.pop %v1702
      %v1704 = vmul.f32 %v1699, %v1703
      %v1705 = vsel %vm1409, 0.0, %v1704
      %1706 = vrot.lane.b32.xlu0 %v1119, 56
      %v1707 = vpop.permute.xlu0 %1706
      %v1710 = vsel %vm1205, %v1705, 0
      %1712 = vmatprep.subr.mxu0 0.0
      %1713 = vmatpush1.msra.mxu0 %v1707
      %1714 = vmatprep.subr.mxu0 0.0
      %1715 = vmatpush1.msra.mxu0 0.0
      %1716 = vmatprep.subr.mxu0 0.0
      %1717 = vmatpush1.msra.mxu0 0.0
      %1718 = vmatprep.subr.mxu0 0.0
      %1719 = vmatpush1.msra.mxu0 0.0
      %1720 = vmatprep.subr.mxu0 0.0
      %1721 = vmatpush1.msra.mxu0 0.0
      %1722 = vmatprep.subr.mxu0 0.0
      %1723 = vmatpush1.msra.mxu0 0.0
      %1724 = vmatprep.subr.mxu0 0.0
      %1725 = vmatpush1.msra.mxu0 0.0
      %1726 = vmatprep.subr.mxu0 0.0
      %1727 = vmatpush1.msra.mxu0 0.0
      %1728 = vmatprep.subr.mxu0 0.0
      %1729 = vmatpush1.msra.mxu0 0.0
      %1730 = vmatprep.subr.mxu0 0.0
      %1731 = vmatpush1.msra.mxu0 0.0
      %1732 = vmatprep.subr.mxu0 0.0
      %1733 = vmatpush1.msra.mxu0 0.0
      %1734 = vmatprep.subr.mxu0 0.0
      %1735 = vmatpush1.msra.mxu0 0.0
      %1736 = vmatprep.subr.mxu0 0.0
      %1737 = vmatpush1.msra.mxu0 0.0
      %1738 = vmatprep.subr.mxu0 0.0
      %1739 = vmatpush1.msra.mxu0 0.0
      %1740 = vmatprep.subr.mxu0 0.0
      %1741 = vmatpush1.msra.mxu0 0.0
      %1742 = vmatprep.subr.mxu0 0.0
      %1743 = vmatpush1.msra.mxu0 0.0
      %1744 = vmatprep.subr.mxu0 0.0
      %1745 = vmatpush1.msra.mxu0 0.0
      %1746 = vmatprep.subr.mxu0 0.0
      %1747 = vmatpush1.msra.mxu0 0.0
      %1748 = vmatprep.subr.mxu0 0.0
      %1749 = vmatpush1.msra.mxu0 0.0
      %1750 = vmatprep.subr.mxu0 0.0
      %1751 = vmatpush1.msra.mxu0 0.0
      %1752 = vmatprep.subr.mxu0 0.0
      %1753 = vmatpush1.msra.mxu0 0.0
      %1754 = vmatprep.subr.mxu0 0.0
      %1755 = vmatpush1.msra.mxu0 0.0
      %1756 = vmatprep.subr.mxu0 0.0
      %1757 = vmatpush1.msra.mxu0 0.0
      %1758 = vmatprep.subr.mxu0 0.0
      %1759 = vmatpush1.msra.mxu0 0.0
      %1760 = vmatprep.subr.mxu0 0.0
      %1761 = vmatpush1.msra.mxu0 0.0
      %1762 = vmatprep.subr.mxu0 0.0
      %1763 = vmatpush1.msra.mxu0 0.0
      %1764 = vmatprep.subr.mxu0 0.0
      %1765 = vmatpush1.msra.mxu0 0.0
      %1766 = vmatprep.subr.mxu0 0.0
      %1767 = vmatpush1.msra.mxu0 0.0
      %1768 = vmatprep.subr.mxu0 0.0
      %1769 = vmatpush1.msra.mxu0 0.0
      %1770 = vmatprep.subr.mxu0 0.0
      %1771 = vmatpush1.msra.mxu0 0.0
      %1772 = vmatprep.subr.mxu0 0.0
      %1773 = vmatpush1.msra.mxu0 0.0
      %1774 = vmatprep.subr.mxu0 0.0
      %1775 = vmatpush1.msra.mxu0 0.0
      %1776 = vmatprep.mubr.f32.mxu0 0.0
      %1777 = vmatmul.mubr.f32.gmra.mrb[0].mxu0 %v1710
      %v1778 = vpop.f32.mrb[0].mxu0
      %v1779 = vadd.f32 0.0, %v1778
      %v1780 = vpop.f32.mrb[0].mxu0
      %1781 = vdwg.mxu0
      %1782 = vrot.lane.b32.xlu0 %v1202, 112
      %v1783 = vpop.permute.xlu0 %1782
      %1784 = vrot.lane.b32.xlu0 %v1181, 112
      %v1785 = vpop.permute.xlu0 %1784
      %1786 = vrot.lane.b32.xlu0 %v1184, 112
      %v1787 = vpop.permute.xlu0 %1786
      %v1788 = vsel %vm1205, %v1783, 0
      %v1790 = vsel %vm1205, %v1785, 0
      %v1792 = vsel %vm1205, %v1787, 0
      %1794 = vmatprep.subr.mxu0 0.0
      %1795 = vmatpush1.xpose.msra.mxu0 %v1790
      %1796 = vmatprep.subr.mxu0 0.0
      %1797 = vmatpush1.xpose.msra.mxu0 %v1792
      %1798 = vmatprep.subr.mxu0 0.0
      %1799 = vmatpush1.xpose.msra.mxu0 0.0
      %1800 = vmatprep.subr.mxu0 0.0
      %1801 = vmatpush1.xpose.msra.mxu0 0.0
      %1802 = vmatprep.subr.mxu0 0.0
      %1803 = vmatpush1.xpose.msra.mxu0 0.0
      %1804 = vmatprep.subr.mxu0 0.0
      %1805 = vmatpush1.xpose.msra.mxu0 0.0
      %1806 = vmatprep.subr.mxu0 0.0
      %1807 = vmatpush1.xpose.msra.mxu0 0.0
      %1808 = vmatprep.subr.mxu0 0.0
      %1809 = vmatpush1.xpose.msra.mxu0 0.0
      %1810 = vmatprep.subr.mxu0 0.0
      %1811 = vmatpush1.xpose.msra.mxu0 0.0
      %1812 = vmatprep.subr.mxu0 0.0
      %1813 = vmatpush1.xpose.msra.mxu0 0.0
      %1814 = vmatprep.subr.mxu0 0.0
      %1815 = vmatpush1.xpose.msra.mxu0 0.0
      %1816 = vmatprep.subr.mxu0 0.0
      %1817 = vmatpush1.xpose.msra.mxu0 0.0
      %1818 = vmatprep.subr.mxu0 0.0
      %1819 = vmatpush1.xpose.msra.mxu0 0.0
      %1820 = vmatprep.subr.mxu0 0.0
      %1821 = vmatpush1.xpose.msra.mxu0 0.0
      %1822 = vmatprep.subr.mxu0 0.0
      %1823 = vmatpush1.xpose.msra.mxu0 0.0
      %1824 = vmatprep.subr.mxu0 0.0
      %1825 = vmatpush1.xpose.msra.mxu0 0.0
      %1826 = vmatprep.subr.mxu0 0.0
      %1827 = vmatpush1.xpose.msra.mxu0 0.0
      %1828 = vmatprep.subr.mxu0 0.0
      %1829 = vmatpush1.xpose.msra.mxu0 0.0
      %1830 = vmatprep.subr.mxu0 0.0
      %1831 = vmatpush1.xpose.msra.mxu0 0.0
      %1832 = vmatprep.subr.mxu0 0.0
      %1833 = vmatpush1.xpose.msra.mxu0 0.0
      %1834 = vmatprep.subr.mxu0 0.0
      %1835 = vmatpush1.xpose.msra.mxu0 0.0
      %1836 = vmatprep.subr.mxu0 0.0
      %1837 = vmatpush1.xpose.msra.mxu0 0.0
      %1838 = vmatprep.subr.mxu0 0.0
      %1839 = vmatpush1.xpose.msra.mxu0 0.0
      %1840 = vmatprep.subr.mxu0 0.0
      %1841 = vmatpush1.xpose.msra.mxu0 0.0
      %1842 = vmatprep.subr.mxu0 0.0
      %1843 = vmatpush1.xpose.msra.mxu0 0.0
      %1844 = vmatprep.subr.mxu0 0.0
      %1845 = vmatpush1.xpose.msra.mxu0 0.0
      %1846 = vmatprep.subr.mxu0 0.0
      %1847 = vmatpush1.xpose.msra.mxu0 0.0
      %1848 = vmatprep.subr.mxu0 0.0
      %1849 = vmatpush1.xpose.msra.mxu0 0.0
      %1850 = vmatprep.subr.mxu0 0.0
      %1851 = vmatpush1.xpose.msra.mxu0 0.0
      %1852 = vmatprep.subr.mxu0 0.0
      %1853 = vmatpush1.xpose.msra.mxu0 0.0
      %1854 = vmatprep.subr.mxu0 0.0
      %1855 = vmatpush1.xpose.msra.mxu0 0.0
      %1856 = vmatprep.subr.mxu0 0.0
      %1857 = vmatpush1.xpose.msra.mxu0 0.0
      %1858 = vmatprep.mubr.f32.mxu0 0.0
      %1859 = vmatmul.mubr.f32.gmra.mrb[0].mxu0 %v1788
      %v1860 = vpop.f32.mrb[0].mxu0
      %v1861 = vadd.f32 0.0, %v1860
      %v1862 = vpop.f32.mrb[0].mxu0
      %1863 = vdwg.mxu0
      %1865 = vrot.lane.b32.xlu0 %v1861, 1
      %v1866 = vpop.permute.xlu0 %1865
      %1868 = vrot.lane.b32.xlu0 %v1861, 2
      %v1869 = vpop.permute.xlu0 %1868
      %1871 = vrot.lane.b32.xlu0 %v1861, 3
      %v1872 = vpop.permute.xlu0 %1871
      %1874 = vrot.lane.b32.xlu0 %v1861, 4
      %v1875 = vpop.permute.xlu0 %1874
      %1877 = vrot.lane.b32.xlu0 %v1861, 5
      %v1878 = vpop.permute.xlu0 %1877
      %1880 = vrot.lane.b32.xlu0 %v1861, 6
      %v1881 = vpop.permute.xlu0 %1880
      %1883 = vrot.lane.b32.xlu0 %v1861, 7
      %v1884 = vpop.permute.xlu0 %1883
      %v1886 = vsel %vm1307, %v1861, %v1866
      %v1887 = vsel %vm1309, %v1886, %v1869
      %v1888 = vsel %vm1311, %v1887, %v1872
      %v1889 = vsel %vm1313, %v1888, %v1875
      %v1890 = vsel %vm1315, %v1889, %v1878
      %v1891 = vsel %vm1317, %v1890, %v1881
      %v1892 = vsel %vm1319, %v1891, %v1884
      %1893 = vrot.lane.b32.xlu0 %v1194, 112
      %v1894 = vpop.permute.xlu0 %1893
      %1895 = vrot.lane.b32.xlu0 %v1119, 80
      %v1896 = vpop.permute.xlu0 %1895
      %1898 = vrot.lane.b32.xlu0 %v1892, 121
      %v1899 = vpop.permute.xlu0 %1898
      %v1901 = vsel %vm1205, %v1894, 0
      %v1903 = vsel %vm1205, %v1896, 0
      %1905 = vmatprep.subr.mxu0 0.0
      %1906 = vmatpush1.xpose.msra.mxu0 %v1903
      %1907 = vmatprep.subr.mxu0 0.0
      %1908 = vmatpush1.xpose.msra.mxu0 0.0
      %1909 = vmatprep.subr.mxu0 0.0
      %1910 = vmatpush1.xpose.msra.mxu0 0.0
      %1911 = vmatprep.subr.mxu0 0.0
      %1912 = vmatpush1.xpose.msra.mxu0 0.0
      %1913 = vmatprep.subr.mxu0 0.0
      %1914 = vmatpush1.xpose.msra.mxu0 0.0
      %1915 = vmatprep.subr.mxu0 0.0
      %1916 = vmatpush1.xpose.msra.mxu0 0.0
      %1917 = vmatprep.subr.mxu0 0.0
      %1918 = vmatpush1.xpose.msra.mxu0 0.0
      %1919 = vmatprep.subr.mxu0 0.0
      %1920 = vmatpush1.xpose.msra.mxu0 0.0
      %1921 = vmatprep.subr.mxu0 0.0
      %1922 = vmatpush1.xpose.msra.mxu0 0.0
      %1923 = vmatprep.subr.mxu0 0.0
      %1924 = vmatpush1.xpose.msra.mxu0 0.0
      %1925 = vmatprep.subr.mxu0 0.0
      %1926 = vmatpush1.xpose.msra.mxu0 0.0
      %1927 = vmatprep.subr.mxu0 0.0
      %1928 = vmatpush1.xpose.msra.mxu0 0.0
      %1929 = vmatprep.subr.mxu0 0.0
      %1930 = vmatpush1.xpose.msra.mxu0 0.0
      %1931 = vmatprep.subr.mxu0 0.0
      %1932 = vmatpush1.xpose.msra.mxu0 0.0
      %1933 = vmatprep.subr.mxu0 0.0
      %1934 = vmatpush1.xpose.msra.mxu0 0.0
      %1935 = vmatprep.subr.mxu0 0.0
      %1936 = vmatpush1.xpose.msra.mxu0 0.0
      %1937 = vmatprep.subr.mxu0 0.0
      %1938 = vmatpush1.xpose.msra.mxu0 0.0
      %1939 = vmatprep.subr.mxu0 0.0
      %1940 = vmatpush1.xpose.msra.mxu0 0.0
      %1941 = vmatprep.subr.mxu0 0.0
      %1942 = vmatpush1.xpose.msra.mxu0 0.0
      %1943 = vmatprep.subr.mxu0 0.0
      %1944 = vmatpush1.xpose.msra.mxu0 0.0
      %1945 = vmatprep.subr.mxu0 0.0
      %1946 = vmatpush1.xpose.msra.mxu0 0.0
      %1947 = vmatprep.subr.mxu0 0.0
      %1948 = vmatpush1.xpose.msra.mxu0 0.0
      %1949 = vmatprep.subr.mxu0 0.0
      %1950 = vmatpush1.xpose.msra.mxu0 0.0
      %1951 = vmatprep.subr.mxu0 0.0
      %1952 = vmatpush1.xpose.msra.mxu0 0.0
      %1953 = vmatprep.subr.mxu0 0.0
      %1954 = vmatpush1.xpose.msra.mxu0 0.0
      %1955 = vmatprep.subr.mxu0 0.0
      %1956 = vmatpush1.xpose.msra.mxu0 0.0
      %1957 = vmatprep.subr.mxu0 0.0
      %1958 = vmatpush1.xpose.msra.mxu0 0.0
      %1959 = vmatprep.subr.mxu0 0.0
      %1960 = vmatpush1.xpose.msra.mxu0 0.0
      %1961 = vmatprep.subr.mxu0 0.0
      %1962 = vmatpush1.xpose.msra.mxu0 0.0
      %1963 = vmatprep.subr.mxu0 0.0
      %1964 = vmatpush1.xpose.msra.mxu0 0.0
      %1965 = vmatprep.subr.mxu0 0.0
      %1966 = vmatpush1.xpose.msra.mxu0 0.0
      %1967 = vmatprep.subr.mxu0 0.0
      %1968 = vmatpush1.xpose.msra.mxu0 0.0
      %1969 = vmatprep.mubr.f32.mxu0 0.0
      %1970 = vmatmul.mubr.f32.gmra.mrb[0].mxu0 %v1901
      %v1971 = vpop.f32.mrb[0].mxu0
      %v1972 = vadd.f32 %v1899, %v1971
      %v1973 = vpop.f32.mrb[0].mxu0
      %1974 = vdwg.mxu0
      %v1975 = vmul.f32 %v1972, 0.35355338
      %v1976 = vsel %vm1409, -3.4028235e+38, %v1975
      %v1977 = vsel %vm1205, %v1976, -inf
      %1978 = vmax.xlane.f32.xlu0 %v1977
      %v1979 = vpop.xlane.xlu0 %1978
      %v1980 = vsub.f32 %v1976, %v1979
      %v1981 = vmul.f32 %v1980, 1.442695
      %v1982 = vpow.pop %v1981
      %v1983 = vsel %vm1205, %v1982, 0.0
      %1984 = vadd.xlane.f32.xlu0 %v1983
      %v1985 = vpop.xlane.xlu0 %1984
      %v1986 = vrcp.pop %v1985
      %v1987 = vmul.f32 %v1982, %v1986
      %v1988 = vsel %vm1409, 0.0, %v1987
      %1989 = vrot.lane.b32.xlu0 %v1119, 48
      %v1990 = vpop.permute.xlu0 %1989
      %v1993 = vsel %vm1205, %v1988, 0
      %1995 = vmatprep.subr.mxu0 0.0
      %1996 = vmatpush1.msra.mxu0 %v1990
      %1997 = vmatprep.subr.mxu0 0.0
      %1998 = vmatpush1.msra.mxu0 0.0
      %1999 = vmatprep.subr.mxu0 0.0
      %2000 = vmatpush1.msra.mxu0 0.0
      %2001 = vmatprep.subr.mxu0 0.0
      %2002 = vmatpush1.msra.mxu0 0.0
      %2003 = vmatprep.subr.mxu0 0.0
      %2004 = vmatpush1.msra.mxu0 0.0
      %2005 = vmatprep.subr.mxu0 0.0
      %2006 = vmatpush1.msra.mxu0 0.0
      %2007 = vmatprep.subr.mxu0 0.0
      %2008 = vmatpush1.msra.mxu0 0.0
      %2009 = vmatprep.subr.mxu0 0.0
      %2010 = vmatpush1.msra.mxu0 0.0
      %2011 = vmatprep.subr.mxu0 0.0
      %2012 = vmatpush1.msra.mxu0 0.0
      %2013 = vmatprep.subr.mxu0 0.0
      %2014 = vmatpush1.msra.mxu0 0.0
      %2015 = vmatprep.subr.mxu0 0.0
      %2016 = vmatpush1.msra.mxu0 0.0
      %2017 = vmatprep.subr.mxu0 0.0
      %2018 = vmatpush1.msra.mxu0 0.0
      %2019 = vmatprep.subr.mxu0 0.0
      %2020 = vmatpush1.msra.mxu0 0.0
      %2021 = vmatprep.subr.mxu0 0.0
      %2022 = vmatpush1.msra.mxu0 0.0
      %2023 = vmatprep.subr.mxu0 0.0
      %2024 = vmatpush1.msra.mxu0 0.0
      %2025 = vmatprep.subr.mxu0 0.0
      %2026 = vmatpush1.msra.mxu0 0.0
      %2027 = vmatprep.subr.mxu0 0.0
      %2028 = vmatpush1.msra.mxu0 0.0
      %2029 = vmatprep.subr.mxu0 0.0
      %2030 = vmatpush1.msra.mxu0 0.0
      %2031 = vmatprep.subr.mxu0 0.0
      %2032 = vmatpush1.msra.mxu0 0.0
      %2033 = vmatprep.subr.mxu0 0.0
      %2034 = vmatpush1.msra.mxu0 0.0
      %2035 = vmatprep.subr.mxu0 0.0
      %2036 = vmatpush1.msra.mxu0 0.0
      %2037 = vmatprep.subr.mxu0 0.0
      %2038 = vmatpush1.msra.mxu0 0.0
      %2039 = vmatprep.subr.mxu0 0.0
      %2040 = vmatpush1.msra.mxu0 0.0
      %2041 = vmatprep.subr.mxu0 0.0
      %2042 = vmatpush1.msra.mxu0 0.0
      %2043 = vmatprep.subr.mxu0 0.0
      %2044 = vmatpush1.msra.mxu0 0.0
      %2045 = vmatprep.subr.mxu0 0.0
      %2046 = vmatpush1.msra.mxu0 0.0
      %2047 = vmatprep.subr.mxu0 0.0
      %2048 = vmatpush1.msra.mxu0 0.0
      %2049 = vmatprep.subr.mxu0 0.0
      %2050 = vmatpush1.msra.mxu0 0.0
      %2051 = vmatprep.subr.mxu0 0.0
      %2052 = vmatpush1.msra.mxu0 0.0
      %2053 = vmatprep.subr.mxu0 0.0
      %2054 = vmatpush1.msra.mxu0 0.0
      %2055 = vmatprep.subr.mxu0 0.0
      %2056 = vmatpush1.msra.mxu0 0.0
      %2057 = vmatprep.subr.mxu0 0.0
      %2058 = vmatpush1.msra.mxu0 0.0
      %2059 = vmatprep.mubr.f32.mxu0 0.0
      %2060 = vmatmul.mubr.f32.gmra.mrb[0].mxu0 %v1993
      %v2061 = vpop.f32.mrb[0].mxu0
      %v2062 = vadd.f32 0.0, %v2061
      %v2063 = vpop.f32.mrb[0].mxu0
      %2064 = vdwg.mxu0
      %2065 = vrot.lane.b32.xlu0 %v1202, 104
      %v2066 = vpop.permute.xlu0 %2065
      %2067 = vrot.lane.b32.xlu0 %v1181, 104
      %v2068 = vpop.permute.xlu0 %2067
      %2069 = vrot.lane.b32.xlu0 %v1184, 104
      %v2070 = vpop.permute.xlu0 %2069
      %v2071 = vsel %vm1205, %v2066, 0
      %v2073 = vsel %vm1205, %v2068, 0
      %v2075 = vsel %vm1205, %v2070, 0
      %2077 = vmatprep.subr.mxu0 0.0
      %2078 = vmatpush1.xpose.msra.mxu0 %v2073
      %2079 = vmatprep.subr.mxu0 0.0
      %2080 = vmatpush1.xpose.msra.mxu0 %v2075
      %2081 = vmatprep.subr.mxu0 0.0
      %2082 = vmatpush1.xpose.msra.mxu0 0.0
      %2083 = vmatprep.subr.mxu0 0.0
      %2084 = vmatpush1.xpose.msra.mxu0 0.0
      %2085 = vmatprep.subr.mxu0 0.0
      %2086 = vmatpush1.xpose.msra.mxu0 0.0
      %2087 = vmatprep.subr.mxu0 0.0
      %2088 = vmatpush1.xpose.msra.mxu0 0.0
      %2089 = vmatprep.subr.mxu0 0.0
      %2090 = vmatpush1.xpose.msra.mxu0 0.0
      %2091 = vmatprep.subr.mxu0 0.0
      %2092 = vmatpush1.xpose.msra.mxu0 0.0
      %2093 = vmatprep.subr.mxu0 0.0
      %2094 = vmatpush1.xpose.msra.mxu0 0.0
      %2095 = vmatprep.subr.mxu0 0.0
      %2096 = vmatpush1.xpose.msra.mxu0 0.0
      %2097 = vmatprep.subr.mxu0 0.0
      %2098 = vmatpush1.xpose.msra.mxu0 0.0
      %2099 = vmatprep.subr.mxu0 0.0
      %2100 = vmatpush1.xpose.msra.mxu0 0.0
      %2101 = vmatprep.subr.mxu0 0.0
      %2102 = vmatpush1.xpose.msra.mxu0 0.0
      %2103 = vmatprep.subr.mxu0 0.0
      %2104 = vmatpush1.xpose.msra.mxu0 0.0
      %2105 = vmatprep.subr.mxu0 0.0
      %2106 = vmatpush1.xpose.msra.mxu0 0.0
      %2107 = vmatprep.subr.mxu0 0.0
      %2108 = vmatpush1.xpose.msra.mxu0 0.0
      %2109 = vmatprep.subr.mxu0 0.0
      %2110 = vmatpush1.xpose.msra.mxu0 0.0
      %2111 = vmatprep.subr.mxu0 0.0
      %2112 = vmatpush1.xpose.msra.mxu0 0.0
      %2113 = vmatprep.subr.mxu0 0.0
      %2114 = vmatpush1.xpose.msra.mxu0 0.0
      %2115 = vmatprep.subr.mxu0 0.0
      %2116 = vmatpush1.xpose.msra.mxu0 0.0
      %2117 = vmatprep.subr.mxu0 0.0
      %2118 = vmatpush1.xpose.msra.mxu0 0.0
      %2119 = vmatprep.subr.mxu0 0.0
      %2120 = vmatpush1.xpose.msra.mxu0 0.0
      %2121 = vmatprep.subr.mxu0 0.0
      %2122 = vmatpush1.xpose.msra.mxu0 0.0
      %2123 = vmatprep.subr.mxu0 0.0
      %2124 = vmatpush1.xpose.msra.mxu0 0.0
      %2125 = vmatprep.subr.mxu0 0.0
      %2126 = vmatpush1.xpose.msra.mxu0 0.0
      %2127 = vmatprep.subr.mxu0 0.0
      %2128 = vmatpush1.xpose.msra.mxu0 0.0
      %2129 = vmatprep.subr.mxu0 0.0
      %2130 = vmatpush1.xpose.msra.mxu0 0.0
      %2131 = vmatprep.subr.mxu0 0.0
      %2132 = vmatpush1.xpose.msra.mxu0 0.0
      %2133 = vmatprep.subr.mxu0 0.0
      %2134 = vmatpush1.xpose.msra.mxu0 0.0
      %2135 = vmatprep.subr.mxu0 0.0
      %2136 = vmatpush1.xpose.msra.mxu0 0.0
      %2137 = vmatprep.subr.mxu0 0.0
      %2138 = vmatpush1.xpose.msra.mxu0 0.0
      %2139 = vmatprep.subr.mxu0 0.0
      %2140 = vmatpush1.xpose.msra.mxu0 0.0
      %2141 = vmatprep.mubr.f32.mxu0 0.0
      %2142 = vmatmul.mubr.f32.gmra.mrb[0].mxu0 %v2071
      %v2143 = vpop.f32.mrb[0].mxu0
      %v2144 = vadd.f32 0.0, %v2143
      %v2145 = vpop.f32.mrb[0].mxu0
      %2146 = vdwg.mxu0
      %2148 = vrot.lane.b32.xlu0 %v2144, 1
      %v2149 = vpop.permute.xlu0 %2148
      %2151 = vrot.lane.b32.xlu0 %v2144, 2
      %v2152 = vpop.permute.xlu0 %2151
      %2154 = vrot.lane.b32.xlu0 %v2144, 3
      %v2155 = vpop.permute.xlu0 %2154
      %2157 = vrot.lane.b32.xlu0 %v2144, 4
      %v2158 = vpop.permute.xlu0 %2157
      %2160 = vrot.lane.b32.xlu0 %v2144, 5
      %v2161 = vpop.permute.xlu0 %2160
      %2163 = vrot.lane.b32.xlu0 %v2144, 6
      %v2164 = vpop.permute.xlu0 %2163
      %2166 = vrot.lane.b32.xlu0 %v2144, 7
      %v2167 = vpop.permute.xlu0 %2166
      %v2169 = vsel %vm1307, %v2144, %v2149
      %v2170 = vsel %vm1309, %v2169, %v2152
      %v2171 = vsel %vm1311, %v2170, %v2155
      %v2172 = vsel %vm1313, %v2171, %v2158
      %v2173 = vsel %vm1315, %v2172, %v2161
      %v2174 = vsel %vm1317, %v2173, %v2164
      %v2175 = vsel %vm1319, %v2174, %v2167
      %2176 = vrot.lane.b32.xlu0 %v1194, 104
      %v2177 = vpop.permute.xlu0 %2176
      %2178 = vrot.lane.b32.xlu0 %v1119, 72
      %v2179 = vpop.permute.xlu0 %2178
      %2181 = vrot.lane.b32.xlu0 %v2175, 121
      %v2182 = vpop.permute.xlu0 %2181
      %v2184 = vsel %vm1205, %v2177, 0
      %v2186 = vsel %vm1205, %v2179, 0
      %2188 = vmatprep.subr.mxu0 0.0
      %2189 = vmatpush1.xpose.msra.mxu0 %v2186
      %2190 = vmatprep.subr.mxu0 0.0
      %2191 = vmatpush1.xpose.msra.mxu0 0.0
      %2192 = vmatprep.subr.mxu0 0.0
      %2193 = vmatpush1.xpose.msra.mxu0 0.0
      %2194 = vmatprep.subr.mxu0 0.0
      %2195 = vmatpush1.xpose.msra.mxu0 0.0
      %2196 = vmatprep.subr.mxu0 0.0
      %2197 = vmatpush1.xpose.msra.mxu0 0.0
      %2198 = vmatprep.subr.mxu0 0.0
      %2199 = vmatpush1.xpose.msra.mxu0 0.0
      %2200 = vmatprep.subr.mxu0 0.0
      %2201 = vmatpush1.xpose.msra.mxu0 0.0
      %2202 = vmatprep.subr.mxu0 0.0
      %2203 = vmatpush1.xpose.msra.mxu0 0.0
      %2204 = vmatprep.subr.mxu0 0.0
      %2205 = vmatpush1.xpose.msra.mxu0 0.0
      %2206 = vmatprep.subr.mxu0 0.0
      %2207 = vmatpush1.xpose.msra.mxu0 0.0
      %2208 = vmatprep.subr.mxu0 0.0
      %2209 = vmatpush1.xpose.msra.mxu0 0.0
      %2210 = vmatprep.subr.mxu0 0.0
      %2211 = vmatpush1.xpose.msra.mxu0 0.0
      %2212 = vmatprep.subr.mxu0 0.0
      %2213 = vmatpush1.xpose.msra.mxu0 0.0
      %2214 = vmatprep.subr.mxu0 0.0
      %2215 = vmatpush1.xpose.msra.mxu0 0.0
      %2216 = vmatprep.subr.mxu0 0.0
      %2217 = vmatpush1.xpose.msra.mxu0 0.0
      %2218 = vmatprep.subr.mxu0 0.0
      %2219 = vmatpush1.xpose.msra.mxu0 0.0
      %2220 = vmatprep.subr.mxu0 0.0
      %2221 = vmatpush1.xpose.msra.mxu0 0.0
      %2222 = vmatprep.subr.mxu0 0.0
      %2223 = vmatpush1.xpose.msra.mxu0 0.0
      %2224 = vmatprep.subr.mxu0 0.0
      %2225 = vmatpush1.xpose.msra.mxu0 0.0
      %2226 = vmatprep.subr.mxu0 0.0
      %2227 = vmatpush1.xpose.msra.mxu0 0.0
      %2228 = vmatprep.subr.mxu0 0.0
      %2229 = vmatpush1.xpose.msra.mxu0 0.0
      %2230 = vmatprep.subr.mxu0 0.0
      %2231 = vmatpush1.xpose.msra.mxu0 0.0
      %2232 = vmatprep.subr.mxu0 0.0
      %2233 = vmatpush1.xpose.msra.mxu0 0.0
      %2234 = vmatprep.subr.mxu0 0.0
      %2235 = vmatpush1.xpose.msra.mxu0 0.0
      %2236 = vmatprep.subr.mxu0 0.0
      %2237 = vmatpush1.xpose.msra.mxu0 0.0
      %2238 = vmatprep.subr.mxu0 0.0
      %2239 = vmatpush1.xpose.msra.mxu0 0.0
      %2240 = vmatprep.subr.mxu0 0.0
      %2241 = vmatpush1.xpose.msra.mxu0 0.0
      %2242 = vmatprep.subr.mxu0 0.0
      %2243 = vmatpush1.xpose.msra.mxu0 0.0
      %2244 = vmatprep.subr.mxu0 0.0
      %2245 = vmatpush1.xpose.msra.mxu0 0.0
      %2246 = vmatprep.subr.mxu0 0.0
      %2247 = vmatpush1.xpose.msra.mxu0 0.0
      %2248 = vmatprep.subr.mxu0 0.0
      %2249 = vmatpush1.xpose.msra.mxu0 0.0
      %2250 = vmatprep.subr.mxu0 0.0
      %2251 = vmatpush1.xpose.msra.mxu0 0.0
      %2252 = vmatprep.mubr.f32.mxu0 0.0
      %2253 = vmatmul.mubr.f32.gmra.mrb[0].mxu0 %v2184
      %v2254 = vpop.f32.mrb[0].mxu0
      %v2255 = vadd.f32 %v2182, %v2254
      %v2256 = vpop.f32.mrb[0].mxu0
      %2257 = vdwg.mxu0
      %v2258 = vmul.f32 %v2255, 0.35355338
      %v2259 = vsel %vm1409, -3.4028235e+38, %v2258
      %v2260 = vsel %vm1205, %v2259, -inf
      %2261 = vmax.xlane.f32.xlu0 %v2260
      %v2262 = vpop.xlane.xlu0 %2261
      %v2263 = vsub.f32 %v2259, %v2262
      %v2264 = vmul.f32 %v2263, 1.442695
      %v2265 = vpow.pop %v2264
      %v2266 = vsel %vm1205, %v2265, 0.0
      %2267 = vadd.xlane.f32.xlu0 %v2266
      %v2268 = vpop.xlane.xlu0 %2267
      %v2269 = vrcp.pop %v2268
      %v2270 = vmul.f32 %v2265, %v2269
      %v2271 = vsel %vm1409, 0.0, %v2270
      %2272 = vrot.lane.b32.xlu0 %v1119, 40
      %v2273 = vpop.permute.xlu0 %2272
      %v2276 = vsel %vm1205, %v2271, 0
      %2278 = vmatprep.subr.mxu0 0.0
      %2279 = vmatpush1.msra.mxu0 %v2273
      %2280 = vmatprep.subr.mxu0 0.0
      %2281 = vmatpush1.msra.mxu0 0.0
      %2282 = vmatprep.subr.mxu0 0.0
      %2283 = vmatpush1.msra.mxu0 0.0
      %2284 = vmatprep.subr.mxu0 0.0
      %2285 = vmatpush1.msra.mxu0 0.0
      %2286 = vmatprep.subr.mxu0 0.0
      %2287 = vmatpush1.msra.mxu0 0.0
      %2288 = vmatprep.subr.mxu0 0.0
      %2289 = vmatpush1.msra.mxu0 0.0
      %2290 = vmatprep.subr.mxu0 0.0
      %2291 = vmatpush1.msra.mxu0 0.0
      %2292 = vmatprep.subr.mxu0 0.0
      %2293 = vmatpush1.msra.mxu0 0.0
      %2294 = vmatprep.subr.mxu0 0.0
      %2295 = vmatpush1.msra.mxu0 0.0
      %2296 = vmatprep.subr.mxu0 0.0
      %2297 = vmatpush1.msra.mxu0 0.0
      %2298 = vmatprep.subr.mxu0 0.0
      %2299 = vmatpush1.msra.mxu0 0.0
      %2300 = vmatprep.subr.mxu0 0.0
      %2301 = vmatpush1.msra.mxu0 0.0
      %2302 = vmatprep.subr.mxu0 0.0
      %2303 = vmatpush1.msra.mxu0 0.0
      %2304 = vmatprep.subr.mxu0 0.0
      %2305 = vmatpush1.msra.mxu0 0.0
      %2306 = vmatprep.subr.mxu0 0.0
      %2307 = vmatpush1.msra.mxu0 0.0
      %2308 = vmatprep.subr.mxu0 0.0
      %2309 = vmatpush1.msra.mxu0 0.0
      %2310 = vmatprep.subr.mxu0 0.0
      %2311 = vmatpush1.msra.mxu0 0.0
      %2312 = vmatprep.subr.mxu0 0.0
      %2313 = vmatpush1.msra.mxu0 0.0
      %2314 = vmatprep.subr.mxu0 0.0
      %2315 = vmatpush1.msra.mxu0 0.0
      %2316 = vmatprep.subr.mxu0 0.0
      %2317 = vmatpush1.msra.mxu0 0.0
      %2318 = vmatprep.subr.mxu0 0.0
      %2319 = vmatpush1.msra.mxu0 0.0
      %2320 = vmatprep.subr.mxu0 0.0
      %2321 = vmatpush1.msra.mxu0 0.0
      %2322 = vmatprep.subr.mxu0 0.0
      %2323 = vmatpush1.msra.mxu0 0.0
      %2324 = vmatprep.subr.mxu0 0.0
      %2325 = vmatpush1.msra.mxu0 0.0
      %2326 = vmatprep.subr.mxu0 0.0
      %2327 = vmatpush1.msra.mxu0 0.0
      %2328 = vmatprep.subr.mxu0 0.0
      %2329 = vmatpush1.msra.mxu0 0.0
      %2330 = vmatprep.subr.mxu0 0.0
      %2331 = vmatpush1.msra.mxu0 0.0
      %2332 = vmatprep.subr.mxu0 0.0
      %2333 = vmatpush1.msra.mxu0 0.0
      %2334 = vmatprep.subr.mxu0 0.0
      %2335 = vmatpush1.msra.mxu0 0.0
      %2336 = vmatprep.subr.mxu0 0.0
      %2337 = vmatpush1.msra.mxu0 0.0
      %2338 = vmatprep.subr.mxu0 0.0
      %2339 = vmatpush1.msra.mxu0 0.0
      %2340 = vmatprep.subr.mxu0 0.0
      %2341 = vmatpush1.msra.mxu0 0.0
      %2342 = vmatprep.mubr.f32.mxu0 0.0
      %2343 = vmatmul.mubr.f32.gmra.mrb[0].mxu0 %v2276
      %v2344 = vpop.f32.mrb[0].mxu0
      %v2345 = vadd.f32 0.0, %v2344
      %v2346 = vpop.f32.mrb[0].mxu0
      %2347 = vdwg.mxu0
      %2349 = vrot.lane.b32.xlu0 %v1779, 8
      %v2350 = vpop.permute.xlu0 %2349
      %2353 = vrot.lane.b32.xlu0 %v2062, 16
      %v2354 = vpop.permute.xlu0 %2353
      %2357 = vrot.lane.b32.xlu0 %v2345, 24
      %v2358 = vpop.permute.xlu0 %2357
      %v2360 = vsel %vm1205, %v1496, %v2350
      %vm2361 = vcmask 130048
      %v2362 = vsel %vm2361, %v2360, %v2354
      %vm2363 = vcmask 195584
      %v2364 = vsel %vm2363, %v2362, %v2358
      %v2365 = vpack.c.bf16 %v2364, %v2364
      %v2366 = vld [vmem:[%s15] sm:$0xf]
      %v2367 = vld [vmem:[%s15 + $0x4] sm:$0xf]
      %v2368 = vld [vmem:[%s15 + $0x8] sm:$0xf]
      %v2369 = vld [vmem:[%s15 + $0xc] sm:$0xf]
      %v2370 = vld [vmem:[%s16] sm:$0x1]
      %v2372 = vlaneseq
      %v2373 = vshrl.u32 %v2372, 7
      %v2374 = vsub.s32 0, %v2373
      %v2375 = vrot.slane %v2370, %v2374
      %v2381 = vunpack.c.l.b16 %v2366
      %v2382 = vunpack.c.l.b16 %v2367
      %v2383 = vunpack.c.l.b16 %v2368
      %v2384 = vunpack.c.l.b16 %v2369
      %v2385 = vpack.c.b16 %v2382, %v2381
      %v2386 = vpack.c.b16 %v2384, %v2383
      %v2390 = vsel %vm849, %v2365, 0
      %2392 = vmatprep.subr.bf16.mxu0 0
      %2393 = vmatpush1.bf16.msra.mxu0 %v2385
      %2394 = vmatprep.subr.bf16.mxu0 0
      %2395 = vmatpush1.bf16.msra.mxu0 %v2386
      %2396 = vmatprep.subr.bf16.mxu0 0
      %2397 = vmatpush1.bf16.msra.mxu0 0
      %2398 = vmatprep.subr.bf16.mxu0 0
      %2399 = vmatpush1.bf16.msra.mxu0 0
      %2400 = vmatprep.subr.bf16.mxu0 0
      %2401 = vmatpush1.bf16.msra.mxu0 0
      %2402 = vmatprep.subr.bf16.mxu0 0
      %2403 = vmatpush1.bf16.msra.mxu0 0
      %2404 = vmatprep.subr.bf16.mxu0 0
      %2405 = vmatpush1.bf16.msra.mxu0 0
      %2406 = vmatprep.subr.bf16.mxu0 0
      %2407 = vmatpush1.bf16.msra.mxu0 0
      %2408 = vmatprep.subr.bf16.mxu0 0
      %2409 = vmatpush1.bf16.msra.mxu0 0
      %2410 = vmatprep.subr.bf16.mxu0 0
      %2411 = vmatpush1.bf16.msra.mxu0 0
      %2412 = vmatprep.subr.bf16.mxu0 0
      %2413 = vmatpush1.bf16.msra.mxu0 0
      %2414 = vmatprep.subr.bf16.mxu0 0
      %2415 = vmatpush1.bf16.msra.mxu0 0
      %2416 = vmatprep.subr.bf16.mxu0 0
      %2417 = vmatpush1.bf16.msra.mxu0 0
      %2418 = vmatprep.subr.bf16.mxu0 0
      %2419 = vmatpush1.bf16.msra.mxu0 0
      %2420 = vmatprep.subr.bf16.mxu0 0
      %2421 = vmatpush1.bf16.msra.mxu0 0
      %2422 = vmatprep.subr.bf16.mxu0 0
      %2423 = vmatpush1.bf16.msra.mxu0 0
      %2424 = vmatprep.mubr.bf16.mxu0 0
      %2425 = vmatmul.mubr.bf16.gmra.mrb[0].mxu0 %v2390
      %v2426 = vpop.f32.mrb[0].mxu0
      %v2427 = vadd.f32 %v2375, %v2426
      %v2428 = vpop.f32.mrb[0].mxu0
      %v2429 = vpop.f32.mrb[0].mxu0
      %v2430 = vpop.f32.mrb[0].mxu0
      %2431 = vdwg.mxu0
      %v2432 = vadd.f32 %v1033, %v2427
      %v2433 = vsel %vm849, %v2432, 0.0
      %2434 = vadd.xlane.f32.xlu0 %v2433
      %v2435 = vpop.xlane.xlu0 %2434
      %v2436 = vmul.f32 %v2435, %v853
      %v2437 = vsub.f32 %v2432, %v2436
      %v2438 = vmul.f32 %v2437, %v2437
      %v2439 = vsel %vm849, %v2438, 0.0
      %2440 = vadd.xlane.f32.xlu0 %v2439
      %v2441 = vpop.xlane.xlu0 %2440
      %v2442 = vmul.f32 %v2441, %v853
      %v2443 = vadd.f32 %v2442, 1e-05
      %v2444 = vrsqrt.pop %v2443
      %v2445 = vmul.f32 %v2437, %v2444
      %v2446 = vlaneseq
      %v2447 = vshrl.u32 %v2446, 7
      %v2448 = vsub.s32 2, %v2447
      %v2449 = vrot.slane %v847, %v2448
      %v2450 = vmul.f32 %v2445, %v2449
      %v2451 = vlaneseq
      %v2452 = vshrl.u32 %v2451, 7
      %v2453 = vsub.s32 2, %v2452
      %v2454 = vrot.slane %v848, %v2453
      %v2455 = vadd.f32 %v2450, %v2454
      %v2456 = vpack.c.bf16 %v2455, %v2455
      %v2457 = vld [vmem:[%s17] sm:$0xf]
      %v2458 = vld [vmem:[%s17 + $0x4] sm:$0xf]
      %v2459 = vld [vmem:[%s17 + $0x8] sm:$0xf]
      %v2460 = vld [vmem:[%s17 + $0xc] sm:$0xf]
      %v2461 = vld [vmem:[%s18] sm:$0x1]
      %v2463 = vlaneseq
      %v2464 = vshrl.u32 %v2463, 7
      %v2465 = vsub.s32 0, %v2464
      %v2466 = vrot.slane %v2461, %v2465
      %v2472 = vunpack.c.l.b16 %v2457
      %v2473 = vunpack.c.l.b16 %v2458
      %v2474 = vunpack.c.l.b16 %v2459
      %v2475 = vunpack.c.l.b16 %v2460
      %v2476 = vpack.c.b16 %v2473, %v2472
      %v2477 = vpack.c.b16 %v2475, %v2474
      %v2481 = vsel %vm849, %v2456, 0
      %2483 = vmatprep.subr.bf16.mxu0 0
      %2484 = vmatpush1.bf16.msra.mxu0 %v2476
      %2485 = vmatprep.subr.bf16.mxu0 0
      %2486 = vmatpush1.bf16.msra.mxu0 %v2477
      %2487 = vmatprep.subr.bf16.mxu0 0
      %2488 = vmatpush1.bf16.msra.mxu0 0
      %2489 = vmatprep.subr.bf16.mxu0 0
      %2490 = vmatpush1.bf16.msra.mxu0 0
      %2491 = vmatprep.subr.bf16.mxu0 0
      %2492 = vmatpush1.bf16.msra.mxu0 0
      %2493 = vmatprep.subr.bf16.mxu0 0
      %2494 = vmatpush1.bf16.msra.mxu0 0
      %2495 = vmatprep.subr.bf16.mxu0 0
      %2496 = vmatpush1.bf16.msra.mxu0 0
      %2497 = vmatprep.subr.bf16.mxu0 0
      %2498 = vmatpush1.bf16.msra.mxu0 0
      %2499 = vmatprep.subr.bf16.mxu0 0
      %2500 = vmatpush1.bf16.msra.mxu0 0
      %2501 = vmatprep.subr.bf16.mxu0 0
      %2502 = vmatpush1.bf16.msra.mxu0 0
      %2503 = vmatprep.subr.bf16.mxu0 0
      %2504 = vmatpush1.bf16.msra.mxu0 0
      %2505 = vmatprep.subr.bf16.mxu0 0
      %2506 = vmatpush1.bf16.msra.mxu0 0
      %2507 = vmatprep.subr.bf16.mxu0 0
      %2508 = vmatpush1.bf16.msra.mxu0 0
      %2509 = vmatprep.subr.bf16.mxu0 0
      %2510 = vmatpush1.bf16.msra.mxu0 0
      %2511 = vmatprep.subr.bf16.mxu0 0
      %2512 = vmatpush1.bf16.msra.mxu0 0
      %2513 = vmatprep.subr.bf16.mxu0 0
      %2514 = vmatpush1.bf16.msra.mxu0 0
      %2515 = vmatprep.mubr.bf16.mxu0 0
      %2516 = vmatmul.mubr.bf16.gmra.mrb[0].mxu0 %v2481
      %v2517 = vpop.f32.mrb[0].mxu0
      %v2518 = vadd.f32 %v2466, %v2517
      %v2519 = vpop.f32.mrb[0].mxu0
      %v2520 = vpop.f32.mrb[0].mxu0
      %v2521 = vpop.f32.mrb[0].mxu0
      %2522 = vdwg.mxu0
      %v2523 = vld [vmem:[%s19] sm:$0xf]
      %v2524 = vld [vmem:[%s19 + $0x4] sm:$0xf]
      %v2525 = vld [vmem:[%s19 + $0x8] sm:$0xf]
      %v2526 = vld [vmem:[%s19 + $0xc] sm:$0xf]
      %v2527 = vld [vmem:[%s20] sm:$0x1]
      %v2529 = vlaneseq
      %v2530 = vshrl.u32 %v2529, 7
      %v2531 = vsub.s32 0, %v2530
      %v2532 = vrot.slane %v2527, %v2531
      %v2538 = vunpack.c.l.b16 %v2523
      %v2539 = vunpack.c.l.b16 %v2524
      %v2540 = vunpack.c.l.b16 %v2525
      %v2541 = vunpack.c.l.b16 %v2526
      %v2542 = vpack.c.b16 %v2539, %v2538
      %v2543 = vpack.c.b16 %v2541, %v2540
      %2546 = vmatprep.subr.bf16.mxu0 0
      %2547 = vmatpush1.bf16.msra.mxu0 %v2542
      %2548 = vmatprep.subr.bf16.mxu0 0
      %2549 = vmatpush1.bf16.msra.mxu0 %v2543
      %2550 = vmatprep.subr.bf16.mxu0 0
      %2551 = vmatpush1.bf16.msra.mxu0 0
      %2552 = vmatprep.subr.bf16.mxu0 0
      %2553 = vmatpush1.bf16.msra.mxu0 0
      %2554 = vmatprep.subr.bf16.mxu0 0
      %2555 = vmatpush1.bf16.msra.mxu0 0
      %2556 = vmatprep.subr.bf16.mxu0 0
      %2557 = vmatpush1.bf16.msra.mxu0 0
      %2558 = vmatprep.subr.bf16.mxu0 0
      %2559 = vmatpush1.bf16.msra.mxu0 0
      %2560 = vmatprep.subr.bf16.mxu0 0
      %2561 = vmatpush1.bf16.msra.mxu0 0
      %2562 = vmatprep.subr.bf16.mxu0 0
      %2563 = vmatpush1.bf16.msra.mxu0 0
      %2564 = vmatprep.subr.bf16.mxu0 0
      %2565 = vmatpush1.bf16.msra.mxu0 0
      %2566 = vmatprep.subr.bf16.mxu0 0
      %2567 = vmatpush1.bf16.msra.mxu0 0
      %2568 = vmatprep.subr.bf16.mxu0 0
      %2569 = vmatpush1.bf16.msra.mxu0 0
      %2570 = vmatprep.subr.bf16.mxu0 0
      %2571 = vmatpush1.bf16.msra.mxu0 0
      %2572 = vmatprep.subr.bf16.mxu0 0
      %2573 = vmatpush1.bf16.msra.mxu0 0
      %2574 = vmatprep.subr.bf16.mxu0 0
      %2575 = vmatpush1.bf16.msra.mxu0 0
      %2576 = vmatprep.subr.bf16.mxu0 0
      %2577 = vmatpush1.bf16.msra.mxu0 0
      %2578 = vmatprep.mubr.bf16.mxu0 0
      %2579 = vmatmul.mubr.bf16.gmra.mrb[0].mxu0 %v2481
      %v2580 = vpop.f32.mrb[0].mxu0
      %v2581 = vadd.f32 %v2532, %v2580
      %v2582 = vpop.f32.mrb[0].mxu0
      %v2583 = vpop.f32.mrb[0].mxu0
      %v2584 = vpop.f32.mrb[0].mxu0
      %2585 = vdwg.mxu0
      %v2586 = vxor.u32 %v2581, 2147483648
      %v2587 = vmul.f32 %v2586, 1.442695
      %v2588 = vpow.pop %v2587
      %v2589 = vadd.f32 %v2588, 1.0
      %v2590 = vrcp.pop %v2589
      %v2591 = vmul.f32 1.0, %v2590
      %v2592 = vmul.f32 %v2518, %v2591
      %v2593 = vlaneseq
      %v2594 = vshrl.u32 %v2593, 7
      %v2595 = vlaneseq
      %v2596 = vand.u32 %v2595, 127
      %v2597 = vld [vmem:[%s21] sm:$0x7f]
      %v2598 = vadd.s32 %v2594, 4294967293
      %vm2599 = vcmp.eq.s32.totalorder %v2596, %v2598
      %v2600 = vsel %vm2599, 1, 0
      %v2601 = vcvt.s32.f32 %v2600
      %v2603 = vsel %vm1205, %v2601, 0
      %2605 = vmatprep.subr.mxu0 0.0
      %2606 = vmatpush1.msra.mxu0 %v2592
      %2607 = vmatprep.subr.mxu0 0.0
      %2608 = vmatpush1.msra.mxu0 0.0
      %2609 = vmatprep.subr.mxu0 0.0
      %2610 = vmatpush1.msra.mxu0 0.0
      %2611 = vmatprep.subr.mxu0 0.0
      %2612 = vmatpush1.msra.mxu0 0.0
      %2613 = vmatprep.subr.mxu0 0.0
      %2614 = vmatpush1.msra.mxu0 0.0
      %2615 = vmatprep.subr.mxu0 0.0
      %2616 = vmatpush1.msra.mxu0 0.0
      %2617 = vmatprep.subr.mxu0 0.0
      %2618 = vmatpush1.msra.mxu0 0.0
      %2619 = vmatprep.subr.mxu0 0.0
      %2620 = vmatpush1.msra.mxu0 0.0
      %2621 = vmatprep.subr.mxu0 0.0
      %2622 = vmatpush1.msra.mxu0 0.0
      %2623 = vmatprep.subr.mxu0 0.0
      %2624 = vmatpush1.msra.mxu0 0.0
      %2625 = vmatprep.subr.mxu0 0.0
      %2626 = vmatpush1.msra.mxu0 0.0
      %2627 = vmatprep.subr.mxu0 0.0
      %2628 = vmatpush1.msra.mxu0 0.0
      %2629 = vmatprep.subr.mxu0 0.0
      %2630 = vmatpush1.msra.mxu0 0.0
      %2631 = vmatprep.subr.mxu0 0.0
      %2632 = vmatpush1.msra.mxu0 0.0
      %2633 = vmatprep.subr.mxu0 0.0
      %2634 = vmatpush1.msra.mxu0 0.0
      %2635 = vmatprep.subr.mxu0 0.0
      %2636 = vmatpush1.msra.mxu0 0.0
      %2637 = vmatprep.subr.mxu0 0.0
      %2638 = vmatpush1.msra.mxu0 0.0
      %2639 = vmatprep.subr.mxu0 0.0
      %2640 = vmatpush1.msra.mxu0 0.0
      %2641 = vmatprep.subr.mxu0 0.0
      %2642 = vmatpush1.msra.mxu0 0.0
      %2643 = vmatprep.subr.mxu0 0.0
      %2644 = vmatpush1.msra.mxu0 0.0
      %2645 = vmatprep.subr.mxu0 0.0
      %2646 = vmatpush1.msra.mxu0 0.0
      %2647 = vmatprep.subr.mxu0 0.0
      %2648 = vmatpush1.msra.mxu0 0.0
      %2649 = vmatprep.subr.mxu0 0.0
      %2650 = vmatpush1.msra.mxu0 0.0
      %2651 = vmatprep.subr.mxu0 0.0
      %2652 = vmatpush1.msra.mxu0 0.0
      %2653 = vmatprep.subr.mxu0 0.0
      %2654 = vmatpush1.msra.mxu0 0.0
      %2655 = vmatprep.subr.mxu0 0.0
      %2656 = vmatpush1.msra.mxu0 0.0
      %2657 = vmatprep.subr.mxu0 0.0
      %2658 = vmatpush1.msra.mxu0 0.0
      %2659 = vmatprep.subr.mxu0 0.0
      %2660 = vmatpush1.msra.mxu0 0.0
      %2661 = vmatprep.subr.mxu0 0.0
      %2662 = vmatpush1.msra.mxu0 0.0
      %2663 = vmatprep.subr.mxu0 0.0
      %2664 = vmatpush1.msra.mxu0 0.0
      %2665 = vmatprep.subr.mxu0 0.0
      %2666 = vmatpush1.msra.mxu0 0.0
      %2667 = vmatprep.subr.mxu0 0.0
      %2668 = vmatpush1.msra.mxu0 0.0
      %2669 = vmatprep.mubr.f32.mxu0 0.0
      %2670 = vmatmul.mubr.f32.gmra.mrb[0].mxu0 %v2603
      %v2671 = vpop.f32.mrb[0].mxu0
      %v2672 = vadd.f32 0.0, %v2671
      %v2673 = vpop.f32.mrb[0].mxu0
      %2674 = vdwg.mxu0
      %v2675 = vlaneseq
      %v2676 = vshrl.u32 %v2675, 7
      %v2677 = vsub.s32 0, %v2676
      %v2678 = vrot.slane %v2597, %v2677
      %v2679 = vmul.f32 %v2672, %v2678
      %v2680 = vadd.f32 %v2679, 0.0
      %v2681 = vadd.s32 %v2594, 4294967294
      %vm2682 = vcmp.eq.s32.totalorder %v2596, %v2681
      %v2683 = vsel %vm2682, 1, 0
      %v2684 = vcvt.s32.f32 %v2683
      %v2686 = vsel %vm1205, %v2684, 0
      %2688 = vmatprep.subr.mxu0 0.0
      %2689 = vmatpush1.msra.mxu0 %v2592
      %2690 = vmatprep.subr.mxu0 0.0
      %2691 = vmatpush1.msra.mxu0 0.0
      %2692 = vmatprep.subr.mxu0 0.0
      %2693 = vmatpush1.msra.mxu0 0.0
      %2694 = vmatprep.subr.mxu0 0.0
      %2695 = vmatpush1.msra.mxu0 0.0
      %2696 = vmatprep.subr.mxu0 0.0
      %2697 = vmatpush1.msra.mxu0 0.0
      %2698 = vmatprep.subr.mxu0 0.0
      %2699 = vmatpush1.msra.mxu0 0.0
      %2700 = vmatprep.subr.mxu0 0.0
      %2701 = vmatpush1.msra.mxu0 0.0
      %2702 = vmatprep.subr.mxu0 0.0
      %2703 = vmatpush1.msra.mxu0 0.0
      %2704 = vmatprep.subr.mxu0 0.0
      %2705 = vmatpush1.msra.mxu0 0.0
      %2706 = vmatprep.subr.mxu0 0.0
      %2707 = vmatpush1.msra.mxu0 0.0
      %2708 = vmatprep.subr.mxu0 0.0
      %2709 = vmatpush1.msra.mxu0 0.0
      %2710 = vmatprep.subr.mxu0 0.0
      %2711 = vmatpush1.msra.mxu0 0.0
      %2712 = vmatprep.subr.mxu0 0.0
      %2713 = vmatpush1.msra.mxu0 0.0
      %2714 = vmatprep.subr.mxu0 0.0
      %2715 = vmatpush1.msra.mxu0 0.0
      %2716 = vmatprep.subr.mxu0 0.0
      %2717 = vmatpush1.msra.mxu0 0.0
      %2718 = vmatprep.subr.mxu0 0.0
      %2719 = vmatpush1.msra.mxu0 0.0
      %2720 = vmatprep.subr.mxu0 0.0
      %2721 = vmatpush1.msra.mxu0 0.0
      %2722 = vmatprep.subr.mxu0 0.0
      %2723 = vmatpush1.msra.mxu0 0.0
      %2724 = vmatprep.subr.mxu0 0.0
      %2725 = vmatpush1.msra.mxu0 0.0
      %2726 = vmatprep.subr.mxu0 0.0
      %2727 = vmatpush1.msra.mxu0 0.0
      %2728 = vmatprep.subr.mxu0 0.0
      %2729 = vmatpush1.msra.mxu0 0.0
      %2730 = vmatprep.subr.mxu0 0.0
      %2731 = vmatpush1.msra.mxu0 0.0
      %2732 = vmatprep.subr.mxu0 0.0
      %2733 = vmatpush1.msra.mxu0 0.0
      %2734 = vmatprep.subr.mxu0 0.0
      %2735 = vmatpush1.msra.mxu0 0.0
      %2736 = vmatprep.subr.mxu0 0.0
      %2737 = vmatpush1.msra.mxu0 0.0
      %2738 = vmatprep.subr.mxu0 0.0
      %2739 = vmatpush1.msra.mxu0 0.0
      %2740 = vmatprep.subr.mxu0 0.0
      %2741 = vmatpush1.msra.mxu0 0.0
      %2742 = vmatprep.subr.mxu0 0.0
      %2743 = vmatpush1.msra.mxu0 0.0
      %2744 = vmatprep.subr.mxu0 0.0
      %2745 = vmatpush1.msra.mxu0 0.0
      %2746 = vmatprep.subr.mxu0 0.0
      %2747 = vmatpush1.msra.mxu0 0.0
      %2748 = vmatprep.subr.mxu0 0.0
      %2749 = vmatpush1.msra.mxu0 0.0
      %2750 = vmatprep.subr.mxu0 0.0
      %2751 = vmatpush1.msra.mxu0 0.0
      %2752 = vmatprep.mubr.f32.mxu0 0.0
      %2753 = vmatmul.mubr.f32.gmra.mrb[0].mxu0 %v2686
      %v2754 = vpop.f32.mrb[0].mxu0
      %v2755 = vadd.f32 0.0, %v2754
      %v2756 = vpop.f32.mrb[0].mxu0
      %2757 = vdwg.mxu0
      %v2758 = vlaneseq
      %v2759 = vshrl.u32 %v2758, 7
      %v2760 = vsub.s32 1, %v2759
      %v2761 = vrot.slane %v2597, %v2760
      %v2762 = vmul.f32 %v2755, %v2761
      %v2763 = vadd.f32 %v2680, %v2762
      %v2764 = vadd.s32 %v2594, 4294967295
      %vm2765 = vcmp.eq.s32.totalorder %v2596, %v2764
      %v2766 = vsel %vm2765, 1, 0
      %v2767 = vcvt.s32.f32 %v2766
      %v2769 = vsel %vm1205, %v2767, 0
      %2771 = vmatprep.subr.mxu0 0.0
      %2772 = vmatpush1.msra.mxu0 %v2592
      %2773 = vmatprep.subr.mxu0 0.0
      %2774 = vmatpush1.msra.mxu0 0.0
      %2775 = vmatprep.subr.mxu0 0.0
      %2776 = vmatpush1.msra.mxu0 0.0
      %2777 = vmatprep.subr.mxu0 0.0
      %2778 = vmatpush1.msra.mxu0 0.0
      %2779 = vmatprep.subr.mxu0 0.0
      %2780 = vmatpush1.msra.mxu0 0.0
      %2781 = vmatprep.subr.mxu0 0.0
      %2782 = vmatpush1.msra.mxu0 0.0
      %2783 = vmatprep.subr.mxu0 0.0
      %2784 = vmatpush1.msra.mxu0 0.0
      %2785 = vmatprep.subr.mxu0 0.0
      %2786 = vmatpush1.msra.mxu0 0.0
      %2787 = vmatprep.subr.mxu0 0.0
      %2788 = vmatpush1.msra.mxu0 0.0
      %2789 = vmatprep.subr.mxu0 0.0
      %2790 = vmatpush1.msra.mxu0 0.0
      %2791 = vmatprep.subr.mxu0 0.0
      %2792 = vmatpush1.msra.mxu0 0.0
      %2793 = vmatprep.subr.mxu0 0.0
      %2794 = vmatpush1.msra.mxu0 0.0
      %2795 = vmatprep.subr.mxu0 0.0
      %2796 = vmatpush1.msra.mxu0 0.0
      %2797 = vmatprep.subr.mxu0 0.0
      %2798 = vmatpush1.msra.mxu0 0.0
      %2799 = vmatprep.subr.mxu0 0.0
      %2800 = vmatpush1.msra.mxu0 0.0
      %2801 = vmatprep.subr.mxu0 0.0
      %2802 = vmatpush1.msra.mxu0 0.0
      %2803 = vmatprep.subr.mxu0 0.0
      %2804 = vmatpush1.msra.mxu0 0.0
      %2805 = vmatprep.subr.mxu0 0.0
      %2806 = vmatpush1.msra.mxu0 0.0
      %2807 = vmatprep.subr.mxu0 0.0
      %2808 = vmatpush1.msra.mxu0 0.0
      %2809 = vmatprep.subr.mxu0 0.0
      %2810 = vmatpush1.msra.mxu0 0.0
      %2811 = vmatprep.subr.mxu0 0.0
      %2812 = vmatpush1.msra.mxu0 0.0
      %2813 = vmatprep.subr.mxu0 0.0
      %2814 = vmatpush1.msra.mxu0 0.0
      %2815 = vmatprep.subr.mxu0 0.0
      %2816 = vmatpush1.msra.mxu0 0.0
      %2817 = vmatprep.subr.mxu0 0.0
      %2818 = vmatpush1.msra.mxu0 0.0
      %2819 = vmatprep.subr.mxu0 0.0
      %2820 = vmatpush1.msra.mxu0 0.0
      %2821 = vmatprep.subr.mxu0 0.0
      %2822 = vmatpush1.msra.mxu0 0.0
      %2823 = vmatprep.subr.mxu0 0.0
      %2824 = vmatpush1.msra.mxu0 0.0
      %2825 = vmatprep.subr.mxu0 0.0
      %2826 = vmatpush1.msra.mxu0 0.0
      %2827 = vmatprep.subr.mxu0 0.0
      %2828 = vmatpush1.msra.mxu0 0.0
      %2829 = vmatprep.subr.mxu0 0.0
      %2830 = vmatpush1.msra.mxu0 0.0
      %2831 = vmatprep.subr.mxu0 0.0
      %2832 = vmatpush1.msra.mxu0 0.0
      %2833 = vmatprep.subr.mxu0 0.0
      %2834 = vmatpush1.msra.mxu0 0.0
      %2835 = vmatprep.mubr.f32.mxu0 0.0
      %2836 = vmatmul.mubr.f32.gmra.mrb[0].mxu0 %v2769
      %v2837 = vpop.f32.mrb[0].mxu0
      %v2838 = vadd.f32 0.0, %v2837
      %v2839 = vpop.f32.mrb[0].mxu0
      %2840 = vdwg.mxu0
      %v2841 = vlaneseq
      %v2842 = vshrl.u32 %v2841, 7
      %v2843 = vsub.s32 2, %v2842
      %v2844 = vrot.slane %v2597, %v2843
      %v2845 = vmul.f32 %v2838, %v2844
      %v2846 = vadd.f32 %v2763, %v2845
      %vm2847 = vcmp.eq.s32.totalorder %v2596, %v2594
      %v2848 = vsel %vm2847, 1, 0
      %v2849 = vcvt.s32.f32 %v2848
      %v2851 = vsel %vm1205, %v2849, 0
      %2853 = vmatprep.subr.mxu0 0.0
      %2854 = vmatpush1.msra.mxu0 %v2592
      %2855 = vmatprep.subr.mxu0 0.0
      %2856 = vmatpush1.msra.mxu0 0.0
      %2857 = vmatprep.subr.mxu0 0.0
      %2858 = vmatpush1.msra.mxu0 0.0
      %2859 = vmatprep.subr.mxu0 0.0
      %2860 = vmatpush1.msra.mxu0 0.0
      %2861 = vmatprep.subr.mxu0 0.0
      %2862 = vmatpush1.msra.mxu0 0.0
      %2863 = vmatprep.subr.mxu0 0.0
      %2864 = vmatpush1.msra.mxu0 0.0
      %2865 = vmatprep.subr.mxu0 0.0
      %2866 = vmatpush1.msra.mxu0 0.0
      %2867 = vmatprep.subr.mxu0 0.0
      %2868 = vmatpush1.msra.mxu0 0.0
      %2869 = vmatprep.subr.mxu0 0.0
      %2870 = vmatpush1.msra.mxu0 0.0
      %2871 = vmatprep.subr.mxu0 0.0
      %2872 = vmatpush1.msra.mxu0 0.0
      %2873 = vmatprep.subr.mxu0 0.0
      %2874 = vmatpush1.msra.mxu0 0.0
      %2875 = vmatprep.subr.mxu0 0.0
      %2876 = vmatpush1.msra.mxu0 0.0
      %2877 = vmatprep.subr.mxu0 0.0
      %2878 = vmatpush1.msra.mxu0 0.0
      %2879 = vmatprep.subr.mxu0 0.0
      %2880 = vmatpush1.msra.mxu0 0.0
      %2881 = vmatprep.subr.mxu0 0.0
      %2882 = vmatpush1.msra.mxu0 0.0
      %2883 = vmatprep.subr.mxu0 0.0
      %2884 = vmatpush1.msra.mxu0 0.0
      %2885 = vmatprep.subr.mxu0 0.0
      %2886 = vmatpush1.msra.mxu0 0.0
      %2887 = vmatprep.subr.mxu0 0.0
      %2888 = vmatpush1.msra.mxu0 0.0
      %2889 = vmatprep.subr.mxu0 0.0
      %2890 = vmatpush1.msra.mxu0 0.0
      %2891 = vmatprep.subr.mxu0 0.0
      %2892 = vmatpush1.msra.mxu0 0.0
      %2893 = vmatprep.subr.mxu0 0.0
      %2894 = vmatpush1.msra.mxu0 0.0
      %2895 = vmatprep.subr.mxu0 0.0
      %2896 = vmatpush1.msra.mxu0 0.0
      %2897 = vmatprep.subr.mxu0 0.0
      %2898 = vmatpush1.msra.mxu0 0.0
      %2899 = vmatprep.subr.mxu0 0.0
      %2900 = vmatpush1.msra.mxu0 0.0
      %2901 = vmatprep.subr.mxu0 0.0
      %2902 = vmatpush1.msra.mxu0 0.0
      %2903 = vmatprep.subr.mxu0 0.0
      %2904 = vmatpush1.msra.mxu0 0.0
      %2905 = vmatprep.subr.mxu0 0.0
      %2906 = vmatpush1.msra.mxu0 0.0
      %2907 = vmatprep.subr.mxu0 0.0
      %2908 = vmatpush1.msra.mxu0 0.0
      %2909 = vmatprep.subr.mxu0 0.0
      %2910 = vmatpush1.msra.mxu0 0.0
      %2911 = vmatprep.subr.mxu0 0.0
      %2912 = vmatpush1.msra.mxu0 0.0
      %2913 = vmatprep.subr.mxu0 0.0
      %2914 = vmatpush1.msra.mxu0 0.0
      %2915 = vmatprep.subr.mxu0 0.0
      %2916 = vmatpush1.msra.mxu0 0.0
      %2917 = vmatprep.mubr.f32.mxu0 0.0
      %2918 = vmatmul.mubr.f32.gmra.mrb[0].mxu0 %v2851
      %v2919 = vpop.f32.mrb[0].mxu0
      %v2920 = vadd.f32 0.0, %v2919
      %v2921 = vpop.f32.mrb[0].mxu0
      %2922 = vdwg.mxu0
      %v2923 = vlaneseq
      %v2924 = vshrl.u32 %v2923, 7
      %v2925 = vsub.s32 3, %v2924
      %v2926 = vrot.slane %v2597, %v2925
      %v2927 = vmul.f32 %v2920, %v2926
      %v2928 = vadd.f32 %v2846, %v2927
      %v2929 = vadd.s32 %v2594, 1
      %vm2930 = vcmp.eq.s32.totalorder %v2596, %v2929
      %v2931 = vsel %vm2930, 1, 0
      %v2932 = vcvt.s32.f32 %v2931
      %v2934 = vsel %vm1205, %v2932, 0
      %2936 = vmatprep.subr.mxu0 0.0
      %2937 = vmatpush1.msra.mxu0 %v2592
      %2938 = vmatprep.subr.mxu0 0.0
      %2939 = vmatpush1.msra.mxu0 0.0
      %2940 = vmatprep.subr.mxu0 0.0
      %2941 = vmatpush1.msra.mxu0 0.0
      %2942 = vmatprep.subr.mxu0 0.0
      %2943 = vmatpush1.msra.mxu0 0.0
      %2944 = vmatprep.subr.mxu0 0.0
      %2945 = vmatpush1.msra.mxu0 0.0
      %2946 = vmatprep.subr.mxu0 0.0
      %2947 = vmatpush1.msra.mxu0 0.0
      %2948 = vmatprep.subr.mxu0 0.0
      %2949 = vmatpush1.msra.mxu0 0.0
      %2950 = vmatprep.subr.mxu0 0.0
      %2951 = vmatpush1.msra.mxu0 0.0
      %2952 = vmatprep.subr.mxu0 0.0
      %2953 = vmatpush1.msra.mxu0 0.0
      %2954 = vmatprep.subr.mxu0 0.0
      %2955 = vmatpush1.msra.mxu0 0.0
      %2956 = vmatprep.subr.mxu0 0.0
      %2957 = vmatpush1.msra.mxu0 0.0
      %2958 = vmatprep.subr.mxu0 0.0
      %2959 = vmatpush1.msra.mxu0 0.0
      %2960 = vmatprep.subr.mxu0 0.0
      %2961 = vmatpush1.msra.mxu0 0.0
      %2962 = vmatprep.subr.mxu0 0.0
      %2963 = vmatpush1.msra.mxu0 0.0
      %2964 = vmatprep.subr.mxu0 0.0
      %2965 = vmatpush1.msra.mxu0 0.0
      %2966 = vmatprep.subr.mxu0 0.0
      %2967 = vmatpush1.msra.mxu0 0.0
      %2968 = vmatprep.subr.mxu0 0.0
      %2969 = vmatpush1.msra.mxu0 0.0
      %2970 = vmatprep.subr.mxu0 0.0
      %2971 = vmatpush1.msra.mxu0 0.0
      %2972 = vmatprep.subr.mxu0 0.0
      %2973 = vmatpush1.msra.mxu0 0.0
      %2974 = vmatprep.subr.mxu0 0.0
      %2975 = vmatpush1.msra.mxu0 0.0
      %2976 = vmatprep.subr.mxu0 0.0
      %2977 = vmatpush1.msra.mxu0 0.0
      %2978 = vmatprep.subr.mxu0 0.0
      %2979 = vmatpush1.msra.mxu0 0.0
      %2980 = vmatprep.subr.mxu0 0.0
      %2981 = vmatpush1.msra.mxu0 0.0
      %2982 = vmatprep.subr.mxu0 0.0
      %2983 = vmatpush1.msra.mxu0 0.0
      %2984 = vmatprep.subr.mxu0 0.0
      %2985 = vmatpush1.msra.mxu0 0.0
      %2986 = vmatprep.subr.mxu0 0.0
      %2987 = vmatpush1.msra.mxu0 0.0
      %2988 = vmatprep.subr.mxu0 0.0
      %2989 = vmatpush1.msra.mxu0 0.0
      %2990 = vmatprep.subr.mxu0 0.0
      %2991 = vmatpush1.msra.mxu0 0.0
      %2992 = vmatprep.subr.mxu0 0.0
      %2993 = vmatpush1.msra.mxu0 0.0
      %2994 = vmatprep.subr.mxu0 0.0
      %2995 = vmatpush1.msra.mxu0 0.0
      %2996 = vmatprep.subr.mxu0 0.0
      %2997 = vmatpush1.msra.mxu0 0.0
      %2998 = vmatprep.subr.mxu0 0.0
      %2999 = vmatpush1.msra.mxu0 0.0
      %3000 = vmatprep.mubr.f32.mxu0 0.0
      %3001 = vmatmul.mubr.f32.gmra.mrb[0].mxu0 %v2934
      %v3002 = vpop.f32.mrb[0].mxu0
      %v3003 = vadd.f32 0.0, %v3002
      %v3004 = vpop.f32.mrb[0].mxu0
      %3005 = vdwg.mxu0
      %v3006 = vlaneseq
      %v3007 = vshrl.u32 %v3006, 7
      %v3008 = vsub.s32 4, %v3007
      %v3009 = vrot.slane %v2597, %v3008
      %v3010 = vmul.f32 %v3003, %v3009
      %v3011 = vadd.f32 %v2928, %v3010
      %v3012 = vadd.s32 %v2594, 2
      %vm3013 = vcmp.eq.s32.totalorder %v2596, %v3012
      %v3014 = vsel %vm3013, 1, 0
      %v3015 = vcvt.s32.f32 %v3014
      %v3017 = vsel %vm1205, %v3015, 0
      %3019 = vmatprep.subr.mxu0 0.0
      %3020 = vmatpush1.msra.mxu0 %v2592
      %3021 = vmatprep.subr.mxu0 0.0
      %3022 = vmatpush1.msra.mxu0 0.0
      %3023 = vmatprep.subr.mxu0 0.0
      %3024 = vmatpush1.msra.mxu0 0.0
      %3025 = vmatprep.subr.mxu0 0.0
      %3026 = vmatpush1.msra.mxu0 0.0
      %3027 = vmatprep.subr.mxu0 0.0
      %3028 = vmatpush1.msra.mxu0 0.0
      %3029 = vmatprep.subr.mxu0 0.0
      %3030 = vmatpush1.msra.mxu0 0.0
      %3031 = vmatprep.subr.mxu0 0.0
      %3032 = vmatpush1.msra.mxu0 0.0
      %3033 = vmatprep.subr.mxu0 0.0
      %3034 = vmatpush1.msra.mxu0 0.0
      %3035 = vmatprep.subr.mxu0 0.0
      %3036 = vmatpush1.msra.mxu0 0.0
      %3037 = vmatprep.subr.mxu0 0.0
      %3038 = vmatpush1.msra.mxu0 0.0
      %3039 = vmatprep.subr.mxu0 0.0
      %3040 = vmatpush1.msra.mxu0 0.0
      %3041 = vmatprep.subr.mxu0 0.0
      %3042 = vmatpush1.msra.mxu0 0.0
      %3043 = vmatprep.subr.mxu0 0.0
      %3044 = vmatpush1.msra.mxu0 0.0
      %3045 = vmatprep.subr.mxu0 0.0
      %3046 = vmatpush1.msra.mxu0 0.0
      %3047 = vmatprep.subr.mxu0 0.0
      %3048 = vmatpush1.msra.mxu0 0.0
      %3049 = vmatprep.subr.mxu0 0.0
      %3050 = vmatpush1.msra.mxu0 0.0
      %3051 = vmatprep.subr.mxu0 0.0
      %3052 = vmatpush1.msra.mxu0 0.0
      %3053 = vmatprep.subr.mxu0 0.0
      %3054 = vmatpush1.msra.mxu0 0.0
      %3055 = vmatprep.subr.mxu0 0.0
      %3056 = vmatpush1.msra.mxu0 0.0
      %3057 = vmatprep.subr.mxu0 0.0
      %3058 = vmatpush1.msra.mxu0 0.0
      %3059 = vmatprep.subr.mxu0 0.0
      %3060 = vmatpush1.msra.mxu0 0.0
      %3061 = vmatprep.subr.mxu0 0.0
      %3062 = vmatpush1.msra.mxu0 0.0
      %3063 = vmatprep.subr.mxu0 0.0
      %3064 = vmatpush1.msra.mxu0 0.0
      %3065 = vmatprep.subr.mxu0 0.0
      %3066 = vmatpush1.msra.mxu0 0.0
      %3067 = vmatprep.subr.mxu0 0.0
      %3068 = vmatpush1.msra.mxu0 0.0
      %3069 = vmatprep.subr.mxu0 0.0
      %3070 = vmatpush1.msra.mxu0 0.0
      %3071 = vmatprep.subr.mxu0 0.0
      %3072 = vmatpush1.msra.mxu0 0.0
      %3073 = vmatprep.subr.mxu0 0.0
      %3074 = vmatpush1.msra.mxu0 0.0
      %3075 = vmatprep.subr.mxu0 0.0
      %3076 = vmatpush1.msra.mxu0 0.0
      %3077 = vmatprep.subr.mxu0 0.0
      %3078 = vmatpush1.msra.mxu0 0.0
      %3079 = vmatprep.subr.mxu0 0.0
      %3080 = vmatpush1.msra.mxu0 0.0
      %3081 = vmatprep.subr.mxu0 0.0
      %3082 = vmatpush1.msra.mxu0 0.0
      %3083 = vmatprep.mubr.f32.mxu0 0.0
      %3084 = vmatmul.mubr.f32.gmra.mrb[0].mxu0 %v3017
      %v3085 = vpop.f32.mrb[0].mxu0
      %v3086 = vadd.f32 0.0, %v3085
      %v3087 = vpop.f32.mrb[0].mxu0
      %3088 = vdwg.mxu0
      %v3089 = vlaneseq
      %v3090 = vshrl.u32 %v3089, 7
      %v3091 = vsub.s32 5, %v3090
      %v3092 = vrot.slane %v2597, %v3091
      %v3093 = vmul.f32 %v3086, %v3092
      %v3094 = vadd.f32 %v3011, %v3093
      %v3095 = vadd.s32 %v2594, 3
      %vm3096 = vcmp.eq.s32.totalorder %v2596, %v3095
      %v3097 = vsel %vm3096, 1, 0
      %v3098 = vcvt.s32.f32 %v3097
      %v3100 = vsel %vm1205, %v3098, 0
      %3102 = vmatprep.subr.mxu0 0.0
      %3103 = vmatpush1.msra.mxu0 %v2592
      %3104 = vmatprep.subr.mxu0 0.0
      %3105 = vmatpush1.msra.mxu0 0.0
      %3106 = vmatprep.subr.mxu0 0.0
      %3107 = vmatpush1.msra.mxu0 0.0
      %3108 = vmatprep.subr.mxu0 0.0
      %3109 = vmatpush1.msra.mxu0 0.0
      %3110 = vmatprep.subr.mxu0 0.0
      %3111 = vmatpush1.msra.mxu0 0.0
      %3112 = vmatprep.subr.mxu0 0.0
      %3113 = vmatpush1.msra.mxu0 0.0
      %3114 = vmatprep.subr.mxu0 0.0
      %3115 = vmatpush1.msra.mxu0 0.0
      %3116 = vmatprep.subr.mxu0 0.0
      %3117 = vmatpush1.msra.mxu0 0.0
      %3118 = vmatprep.subr.mxu0 0.0
      %3119 = vmatpush1.msra.mxu0 0.0
      %3120 = vmatprep.subr.mxu0 0.0
      %3121 = vmatpush1.msra.mxu0 0.0
      %3122 = vmatprep.subr.mxu0 0.0
      %3123 = vmatpush1.msra.mxu0 0.0
      %3124 = vmatprep.subr.mxu0 0.0
      %3125 = vmatpush1.msra.mxu0 0.0
      %3126 = vmatprep.subr.mxu0 0.0
      %3127 = vmatpush1.msra.mxu0 0.0
      %3128 = vmatprep.subr.mxu0 0.0
      %3129 = vmatpush1.msra.mxu0 0.0
      %3130 = vmatprep.subr.mxu0 0.0
      %3131 = vmatpush1.msra.mxu0 0.0
      %3132 = vmatprep.subr.mxu0 0.0
      %3133 = vmatpush1.msra.mxu0 0.0
      %3134 = vmatprep.subr.mxu0 0.0
      %3135 = vmatpush1.msra.mxu0 0.0
      %3136 = vmatprep.subr.mxu0 0.0
      %3137 = vmatpush1.msra.mxu0 0.0
      %3138 = vmatprep.subr.mxu0 0.0
      %3139 = vmatpush1.msra.mxu0 0.0
      %3140 = vmatprep.subr.mxu0 0.0
      %3141 = vmatpush1.msra.mxu0 0.0
      %3142 = vmatprep.subr.mxu0 0.0
      %3143 = vmatpush1.msra.mxu0 0.0
      %3144 = vmatprep.subr.mxu0 0.0
      %3145 = vmatpush1.msra.mxu0 0.0
      %3146 = vmatprep.subr.mxu0 0.0
      %3147 = vmatpush1.msra.mxu0 0.0
      %3148 = vmatprep.subr.mxu0 0.0
      %3149 = vmatpush1.msra.mxu0 0.0
      %3150 = vmatprep.subr.mxu0 0.0
      %3151 = vmatpush1.msra.mxu0 0.0
      %3152 = vmatprep.subr.mxu0 0.0
      %3153 = vmatpush1.msra.mxu0 0.0
      %3154 = vmatprep.subr.mxu0 0.0
      %3155 = vmatpush1.msra.mxu0 0.0
      %3156 = vmatprep.subr.mxu0 0.0
      %3157 = vmatpush1.msra.mxu0 0.0
      %3158 = vmatprep.subr.mxu0 0.0
      %3159 = vmatpush1.msra.mxu0 0.0
      %3160 = vmatprep.subr.mxu0 0.0
      %3161 = vmatpush1.msra.mxu0 0.0
      %3162 = vmatprep.subr.mxu0 0.0
      %3163 = vmatpush1.msra.mxu0 0.0
      %3164 = vmatprep.subr.mxu0 0.0
      %3165 = vmatpush1.msra.mxu0 0.0
      %3166 = vmatprep.mubr.f32.mxu0 0.0
      %3167 = vmatmul.mubr.f32.gmra.mrb[0].mxu0 %v3100
      %v3168 = vpop.f32.mrb[0].mxu0
      %v3169 = vadd.f32 0.0, %v3168
      %v3170 = vpop.f32.mrb[0].mxu0
      %3171 = vdwg.mxu0
      %v3172 = vlaneseq
      %v3173 = vshrl.u32 %v3172, 7
      %v3174 = vsub.s32 6, %v3173
      %v3175 = vrot.slane %v2597, %v3174
      %v3176 = vmul.f32 %v3169, %v3175
      %v3177 = vadd.f32 %v3094, %v3176
      %v3178 = vld [vmem:[%s22] sm:$0x1]
      %v3180 = vlaneseq
      %v3181 = vshrl.u32 %v3180, 7
      %v3182 = vsub.s32 0, %v3181
      %v3183 = vrot.slane %v3178, %v3182
      %v3185 = vadd.f32 %v3177, %v3183
      %v3186 = vld [vmem:[%s23] sm:$0x1]
      %v3188 = vlaneseq
      %v3189 = vshrl.u32 %v3188, 7
      %v3190 = vsub.s32 0, %v3189
      %v3191 = vrot.slane %v3186, %v3190
      %v3193 = vmul.f32 %v3185, %v3191
      %v3194 = vld [vmem:[%s24] sm:$0x1]
      %v3196 = vlaneseq
      %v3197 = vshrl.u32 %v3196, 7
      %v3198 = vsub.s32 0, %v3197
      %v3199 = vrot.slane %v3194, %v3198
      %v3201 = vadd.f32 %v3193, %v3199
      %v3202 = vxor.u32 %v3201, 2147483648
      %v3203 = vmul.f32 %v3202, 1.442695
      %v3204 = vpow.pop %v3203
      %v3205 = vadd.f32 %v3204, 1.0
      %v3206 = vrcp.pop %v3205
      %v3207 = vmul.f32 1.0, %v3206
      %v3208 = vmul.f32 %v3201, %v3207
      %v3209 = vpack.c.bf16 %v3208, %v3208
      %v3210 = vld [vmem:[%s25] sm:$0xf]
      %v3211 = vld [vmem:[%s25 + $0x4] sm:$0xf]
      %v3212 = vld [vmem:[%s25 + $0x8] sm:$0xf]
      %v3213 = vld [vmem:[%s25 + $0xc] sm:$0xf]
      %v3214 = vld [vmem:[%s26] sm:$0x1]
      %v3216 = vlaneseq
      %v3217 = vshrl.u32 %v3216, 7
      %v3218 = vsub.s32 0, %v3217
      %v3219 = vrot.slane %v3214, %v3218
      %v3225 = vunpack.c.l.b16 %v3210
      %v3226 = vunpack.c.l.b16 %v3211
      %v3227 = vunpack.c.l.b16 %v3212
      %v3228 = vunpack.c.l.b16 %v3213
      %v3229 = vpack.c.b16 %v3226, %v3225
      %v3230 = vpack.c.b16 %v3228, %v3227
      %v3234 = vsel %vm849, %v3209, 0
      %3236 = vmatprep.subr.bf16.mxu0 0
      %3237 = vmatpush1.bf16.msra.mxu0 %v3229
      %3238 = vmatprep.subr.bf16.mxu0 0
      %3239 = vmatpush1.bf16.msra.mxu0 %v3230
      %3240 = vmatprep.subr.bf16.mxu0 0
      %3241 = vmatpush1.bf16.msra.mxu0 0
      %3242 = vmatprep.subr.bf16.mxu0 0
      %3243 = vmatpush1.bf16.msra.mxu0 0
      %3244 = vmatprep.subr.bf16.mxu0 0
      %3245 = vmatpush1.bf16.msra.mxu0 0
      %3246 = vmatprep.subr.bf16.mxu0 0
      %3247 = vmatpush1.bf16.msra.mxu0 0
      %3248 = vmatprep.subr.bf16.mxu0 0
      %3249 = vmatpush1.bf16.msra.mxu0 0
      %3250 = vmatprep.subr.bf16.mxu0 0
      %3251 = vmatpush1.bf16.msra.mxu0 0
      %3252 = vmatprep.subr.bf16.mxu0 0
      %3253 = vmatpush1.bf16.msra.mxu0 0
      %3254 = vmatprep.subr.bf16.mxu0 0
      %3255 = vmatpush1.bf16.msra.mxu0 0
      %3256 = vmatprep.subr.bf16.mxu0 0
      %3257 = vmatpush1.bf16.msra.mxu0 0
      %3258 = vmatprep.subr.bf16.mxu0 0
      %3259 = vmatpush1.bf16.msra.mxu0 0
      %3260 = vmatprep.subr.bf16.mxu0 0
      %3261 = vmatpush1.bf16.msra.mxu0 0
      %3262 = vmatprep.subr.bf16.mxu0 0
      %3263 = vmatpush1.bf16.msra.mxu0 0
      %3264 = vmatprep.subr.bf16.mxu0 0
      %3265 = vmatpush1.bf16.msra.mxu0 0
      %3266 = vmatprep.subr.bf16.mxu0 0
      %3267 = vmatpush1.bf16.msra.mxu0 0
      %3268 = vmatprep.mubr.bf16.mxu0 0
      %3269 = vmatmul.mubr.bf16.gmra.mrb[0].mxu0 %v3234
      %v3270 = vpop.f32.mrb[0].mxu0
      %v3271 = vadd.f32 %v3219, %v3270
      %v3272 = vpop.f32.mrb[0].mxu0
      %v3273 = vpop.f32.mrb[0].mxu0
      %v3274 = vpop.f32.mrb[0].mxu0
      %3275 = vdwg.mxu0
      %v3276 = vld [vmem:[%s840] sm:$0xff]
      %3278 = vset.pattern.permute.xlu0 0
      %3279 = vperm.xlu0 %3278, %v3276
      %v3280 = vpop.permute.xlu0 %3279
      %v3282 = vmul.f32 %v3271, %v3280
      %v3283 = vadd.f32 %v2432, %v3282
      %v3284 = vsel %vm849, %v3283, 0.0
      %3285 = vadd.xlane.f32.xlu0 %v3284
      %v3286 = vpop.xlane.xlu0 %3285
      %v3287 = vmul.f32 %v3286, %v853
      %v3288 = vsub.f32 %v3283, %v3287
      %v3289 = vmul.f32 %v3288, %v3288
      %v3290 = vsel %vm849, %v3289, 0.0
      %3291 = vadd.xlane.f32.xlu0 %v3290
      %v3292 = vpop.xlane.xlu0 %3291
      %v3293 = vmul.f32 %v3292, %v853
      %v3294 = vadd.f32 %v3293, 1e-05
      %v3295 = vrsqrt.pop %v3294
      %v3296 = vmul.f32 %v3288, %v3295
      %v3297 = vlaneseq
      %v3298 = vshrl.u32 %v3297, 7
      %v3299 = vsub.s32 3, %v3298
      %v3300 = vrot.slane %v847, %v3299
      %v3301 = vmul.f32 %v3296, %v3300
      %v3302 = vlaneseq
      %v3303 = vshrl.u32 %v3302, 7
      %v3304 = vsub.s32 3, %v3303
      %v3305 = vrot.slane %v848, %v3304
      %v3306 = vadd.f32 %v3301, %v3305
      %v3307 = vpack.c.bf16 %v3306, %v3306
      %v3309 = vsel %vm849, %v3307, 0
      %3311 = vmatprep.subr.bf16.mxu0 0
      %3312 = vmatpush1.bf16.msra.mxu0 %v894
      %3313 = vmatprep.subr.bf16.mxu0 0
      %3314 = vmatpush1.bf16.msra.mxu0 %v895
      %3315 = vmatprep.subr.bf16.mxu0 0
      %3316 = vmatpush1.bf16.msra.mxu0 0
      %3317 = vmatprep.subr.bf16.mxu0 0
      %3318 = vmatpush1.bf16.msra.mxu0 0
      %3319 = vmatprep.subr.bf16.mxu0 0
      %3320 = vmatpush1.bf16.msra.mxu0 0
      %3321 = vmatprep.subr.bf16.mxu0 0
      %3322 = vmatpush1.bf16.msra.mxu0 0
      %3323 = vmatprep.subr.bf16.mxu0 0
      %3324 = vmatpush1.bf16.msra.mxu0 0
      %3325 = vmatprep.subr.bf16.mxu0 0
      %3326 = vmatpush1.bf16.msra.mxu0 0
      %3327 = vmatprep.subr.bf16.mxu0 0
      %3328 = vmatpush1.bf16.msra.mxu0 0
      %3329 = vmatprep.subr.bf16.mxu0 0
      %3330 = vmatpush1.bf16.msra.mxu0 0
      %3331 = vmatprep.subr.bf16.mxu0 0
      %3332 = vmatpush1.bf16.msra.mxu0 0
      %3333 = vmatprep.subr.bf16.mxu0 0
      %3334 = vmatpush1.bf16.msra.mxu0 0
      %3335 = vmatprep.subr.bf16.mxu0 0
      %3336 = vmatpush1.bf16.msra.mxu0 0
      %3337 = vmatprep.subr.bf16.mxu0 0
      %3338 = vmatpush1.bf16.msra.mxu0 0
      %3339 = vmatprep.subr.bf16.mxu0 0
      %3340 = vmatpush1.bf16.msra.mxu0 0
      %3341 = vmatprep.subr.bf16.mxu0 0
      %3342 = vmatpush1.bf16.msra.mxu0 0
      %3343 = vmatprep.mubr.bf16.mxu0 0
      %3344 = vmatmul.mubr.bf16.gmra.mrb[0].mxu0 %v3309
      %v3345 = vpop.f32.mrb[0].mxu0
      %v3346 = vadd.f32 %v884, %v3345
      %v3347 = vpop.f32.mrb[0].mxu0
      %v3348 = vpop.f32.mrb[0].mxu0
      %v3349 = vpop.f32.mrb[0].mxu0
      %3350 = vdwg.mxu0
      %v3351 = vxor.u32 %v3346, 2147483648
      %v3352 = vmul.f32 %v3351, 1.442695
      %v3353 = vpow.pop %v3352
      %v3354 = vadd.f32 %v3353, 1.0
      %v3355 = vrcp.pop %v3354
      %v3356 = vmul.f32 1.0, %v3355
      %v3357 = vmul.f32 %v3346, %v3356
      %v3358 = vpack.c.bf16 %v3357, %v3357
      %v3360 = vsel %vm988, %v3358, 0
      %3362 = vmatprep.subr.bf16.mxu0 0
      %3363 = vmatpush1.bf16.msra.mxu0 %v980
      %3364 = vmatprep.subr.bf16.mxu0 0
      %3365 = vmatpush1.bf16.msra.mxu0 %v981
      %3366 = vmatprep.subr.bf16.mxu0 0
      %3367 = vmatpush1.bf16.msra.mxu0 %v982
      %3368 = vmatprep.subr.bf16.mxu0 0
      %3369 = vmatpush1.bf16.msra.mxu0 %v983
      %3370 = vmatprep.subr.bf16.mxu0 0
      %3371 = vmatpush1.bf16.msra.mxu0 0
      %3372 = vmatprep.subr.bf16.mxu0 0
      %3373 = vmatpush1.bf16.msra.mxu0 0
      %3374 = vmatprep.subr.bf16.mxu0 0
      %3375 = vmatpush1.bf16.msra.mxu0 0
      %3376 = vmatprep.subr.bf16.mxu0 0
      %3377 = vmatpush1.bf16.msra.mxu0 0
      %3378 = vmatprep.subr.bf16.mxu0 0
      %3379 = vmatpush1.bf16.msra.mxu0 0
      %3380 = vmatprep.subr.bf16.mxu0 0
      %3381 = vmatpush1.bf16.msra.mxu0 0
      %3382 = vmatprep.subr.bf16.mxu0 0
      %3383 = vmatpush1.bf16.msra.mxu0 0
      %3384 = vmatprep.subr.bf16.mxu0 0
      %3385 = vmatpush1.bf16.msra.mxu0 0
      %3386 = vmatprep.subr.bf16.mxu0 0
      %3387 = vmatpush1.bf16.msra.mxu0 0
      %3388 = vmatprep.subr.bf16.mxu0 0
      %3389 = vmatpush1.bf16.msra.mxu0 0
      %3390 = vmatprep.subr.bf16.mxu0 0
      %3391 = vmatpush1.bf16.msra.mxu0 0
      %3392 = vmatprep.subr.bf16.mxu0 0
      %3393 = vmatpush1.bf16.msra.mxu0 0
      %3394 = vmatprep.mubr.bf16.mxu0 0
      %3395 = vmatmul.mubr.bf16.gmra.mrb[0].mxu0 %v3360
      %v3396 = vpop.f32.mrb[0].mxu0
      %v3397 = vadd.f32 %v962, %v3396
      %v3398 = vpop.f32.mrb[0].mxu0
      %v3399 = vpop.f32.mrb[0].mxu0
      %v3400 = vpop.f32.mrb[0].mxu0
      %3401 = vdwg.mxu0
      %v3402 = vmul.f32 %v3397, 0.5
      %v3403 = vadd.f32 %v3283, %v3402
      %v3404 = vsel %vm849, %v3403, 0.0
      %3405 = vadd.xlane.f32.xlu0 %v3404
      %v3406 = vpop.xlane.xlu0 %3405
      %v3407 = vmul.f32 %v3406, %v853
      %v3408 = vsub.f32 %v3403, %v3407
      %v3409 = vmul.f32 %v3408, %v3408
      %v3410 = vsel %vm849, %v3409, 0.0
      %3411 = vadd.xlane.f32.xlu0 %v3410
      %v3412 = vpop.xlane.xlu0 %3411
      %v3413 = vmul.f32 %v3412, %v853
      %v3414 = vadd.f32 %v3413, 1e-05
      %v3415 = vrsqrt.pop %v3414
      %v3416 = vmul.f32 %v3408, %v3415
      %v3417 = vlaneseq
      %v3418 = vshrl.u32 %v3417, 7
      %v3419 = vsub.s32 4, %v3418
      %v3420 = vrot.slane %v847, %v3419
      %v3421 = vmul.f32 %v3416, %v3420
      %v3422 = vlaneseq
      %v3423 = vshrl.u32 %v3422, 7
      %v3424 = vsub.s32 4, %v3423
      %v3425 = vrot.slane %v848, %v3424
      %v3426 = vadd.f32 %v3421, %v3425
      %3427 = vst.msk [vmem:[%s844] sm:$0xff] %vm849, %v3426
      %p3428 = scmp.lt.s32.totalorder %s38, 1
      %s3429 = scalar_select %p3428, %s38, 1
      %s3430 = smul.addr %s3429, 8
      %s3431 = scalar_lea.vmem %s27, %s3430
      // Predicated region
      $region129: #{_lambda_.9} parent=127 // pred_check
        %p3432 = pneg %p638
      $region130: #{_lambda_.9} parent=127 // pred_check_branch
        %3434 = sbr.rel (%p3432) target = $region132
      $region131: #{_lambda_.9} parent=127 // pred_region
        _
      $region132: #{_lambda_.9} parent=127 // pred_fallthru
        _
    $region128: #{_lambda_.9} parent=5 // pred_fallthru
      _
    %p3435 = scmp.le.s32.totalorder 2, %s33
    // Predicated region
    $region133: #{_lambda_.9} parent=5 // pred_check
      %p3436 = pneg %p3435
    $region134: #{_lambda_.9} parent=5 // pred_check_branch
      %3438 = sbr.rel (%p3436) target = $region136
    $region135: #{_lambda_.9} parent=5 // pred_region
      %s3439 = ssub.s32 %s33, 2
      // Predicated region
      $region137: #{_lambda_.9} parent=135 // pred_check
        %p3440 = pneg %p644
      $region138: #{_lambda_.9} parent=135 // pred_check_branch
        %3442 = sbr.rel (%p3440) target = $region140
      $region139: #{_lambda_.9} parent=135 // pred_region
        %p3443 = scmp.lt.s32.totalorder %s39, 1
        %s3444 = scalar_select %p3443, %s39, 1
        %s3445 = smul.addr %s3444, 8
        %s3446 = scalar_lea.vmem %s27, %s3445
      $region140: #{_lambda_.9} parent=135 // pred_fallthru
        _
    $region136: #{_lambda_.9} parent=5 // pred_fallthru
      _
  $region6: #{_lambda_.9} parent=0 // loop_footer
    %s37 = sadd.s32 1, %s33
  $region7: #{_lambda_.9} parent=0 // loop_footer_branch
    %32 = sbr.rel target = $region3
  $region8: #{_lambda_.9} parent=0 // loop_exit
    _

</llo_original>
